<compile_context>
chip_gen: v7x
topology: tpu7x:2x2x1
jax: 0.10.0
libtpu: 0.0.40
codegen_flags: <defaults>
</compile_context>

<pallas_src>
import functools

import jax
import jax.numpy as jnp
from jax.experimental import pallas as pl
from jax.experimental.pallas import tpu as pltpu


def _round_up(n, m):
    return ((n + m - 1) // m) * m


def rnn_chunk_kernel(x_ref, wih_ref, whh_ref, b_ref, wfc_ref, bfc_ref,
                     out_ref, h_ref, *, chunk, tail_len, n_chunks):
    """One grid step processes `chunk` timesteps of the recurrence.

    x_ref   : (chunk*B_pad, I)    time-major rows: row t*B_pad + b = x[b, c*chunk+t, :]
    wih_ref : (I, H_pad)     W_ih^T          whh_ref : (H_pad, H_pad)  W_hh^T
    b_ref   : (1, H_pad)     b_ih + b_hh     wfc_ref : (H_pad, O_pad)  W_fc^T
    bfc_ref : (1, O_pad)     b_fc
    out_ref : (B_pad, O_pad) final logits (written on the last chunk only)
    h_ref   : (B_pad, H_pad) VMEM scratch carrying the hidden state across chunks
    """
    c = pl.program_id(0)
    b_pad = h_ref.shape[0]
    h_pad = h_ref.shape[1]
    cdt = whh_ref.dtype  # MXU operand dtype (f32, or bf16 if requested)

    @pl.when(c == 0)
    def _():
        h_ref[...] = jnp.zeros_like(h_ref)

    # Hoisted input projection for the whole chunk: ONE lane-dense MXU matmul
    # with M = chunk*b_pad rows (>=256 at the default chunk) instead of
    # `chunk` tiny per-step matmuls; the fused RNN bias rides along.
    xp = (
        jnp.dot(x_ref[...].astype(cdt), wih_ref[...],
                preferred_element_type=jnp.float32)
        + b_ref[...]
    )  # (chunk*b_pad, h_pad) f32

    # Keep W_hh^T live in vregs only when it fits comfortably (<=16 vregs);
    # otherwise let it stream from VMEM each step so the unrolled recurrence
    # does not spill the 64-vreg register file.
    hoist_whh = (h_pad * h_pad * jnp.dtype(cdt).itemsize) <= 16 * 4096
    whh = whh_ref[...] if hoist_whh else None

    # TODO(synk): per-step M is only b_pad, so the recurrence matmul cost is
    # dominated by re-streaming the (h_pad, h_pad) RHS; staging it once per
    # chunk via pltpu.matmul_push_rhs / matmul_acc_lhs / matmul_pop would take
    # that re-push off the serial critical path.  Kept as jnp.dot for
    # robustness/portability.
    not_last = c != (n_chunks - 1)
    h = h_ref[...]
    for t in range(chunk):
        rhs = whh if hoist_whh else whh_ref[...]
        pre = xp[t * b_pad:(t + 1) * b_pad, :] + jnp.dot(
            h.astype(cdt), rhs, preferred_element_type=jnp.float32)
        h_new = jnp.tanh(pre)
        if t >= tail_len:
            # Statically, only the last chunk can contain padded timesteps
            # (t >= tail_len); every other chunk takes h_new unconditionally,
            # so the broadcast+select stays off the steady-state chain.
            h = jnp.where(not_last, h_new, h)
        else:
            h = h_new
    h_ref[...] = h

    @pl.when(c == n_chunks - 1)
    def _():
        # Final Linear on the last valid hidden state.  (For very large H*O
        # this should move to a separate matmul after the recurrence so W_fc^T
        # does not sit in VMEM for every chunk; negligible at these sizes.)
        out_ref[...] = (
            jnp.dot(h.astype(cdt), wfc_ref[...],
                    preferred_element_type=jnp.float32)
            + bfc_ref[...]
        ).astype(out_ref.dtype)


def rnn_model_forward(x, w_ih, w_hh, b_ih, b_hh, w_fc, b_fc, *,
                      time_chunk=32, weights_dtype=jnp.float32):
    """x: (B, T, I) float32.  Returns (B, O) float32 == RNNModel.forward(x)."""
    B, T, I = x.shape
    H = w_ih.shape[0]
    O = w_fc.shape[0]

    # Hardware-tile padding: sublanes (8) on batch, lanes (128) on H / O.
    # The input feature dim I is deliberately NOT lane-padded: its BlockSpec
    # uses the full-dim exception, so x pays no 128/I HBM blow-up.
    b_pad = _round_up(B, 8)
    h_pad = _round_up(H, 128)
    o_pad = _round_up(O, 128)

    # Chunk size: tc*b_pad >= 256 MXU rows at the default (tc=32, b_pad=8).
    tc = max(1, min(time_chunk, T))
    n_chunks = -(-T // tc)
    t_pad = n_chunks * tc
    tail_len = T - (n_chunks - 1) * tc  # valid timesteps in the last chunk

    f32 = jnp.float32
    wdt = weights_dtype

    # Time-major x, padded only on batch (-> b_pad) and time (-> t_pad), then
    # flattened so row (t*b_pad + b) holds x[b, t, :].  No lane padding on I.
    xt = jnp.zeros((t_pad, b_pad, I), f32)
    xt = xt.at[:T, :B, :].set(jnp.transpose(x, (1, 0, 2)).astype(f32))
    x2d = xt.reshape(t_pad * b_pad, I)

    # Pre-transposed weights (cast to the compute dtype); fused RNN bias in f32.
    wih_t = jnp.zeros((I, h_pad), wdt).at[:, :H].set(w_ih.T.astype(wdt))
    whh_t = jnp.zeros((h_pad, h_pad), wdt).at[:H, :H].set(w_hh.T.astype(wdt))
    b = jnp.zeros((1, h_pad), f32).at[0, :H].set((b_ih + b_hh).astype(f32))
    wfc_t = jnp.zeros((h_pad, o_pad), wdt).at[:H, :O].set(w_fc.T.astype(wdt))
    bfc = jnp.zeros((1, o_pad), f32).at[0, :O].set(b_fc.astype(f32))

    # Explicit VMEM budget: double-buffered x chunk + (double-buffered)
    # weights/biases + output + hidden-state scratch, with 2x headroom,
    # clamped to 64 MiB so the same budget fits v7x's physical VMEM.
    wbytes = jnp.dtype(wdt).itemsize
    needed = (2 * tc * b_pad * I * 4
              + 2 * (I * h_pad + h_pad * h_pad + h_pad * o_pad) * wbytes
              + 2 * (h_pad + o_pad) * 4
              + 2 * b_pad * o_pad * 4
              + b_pad * h_pad * 4)
    vmem_limit = int(min(max(2 * needed, 32 * 2**20), 64 * 2**20))

    kernel = functools.partial(rnn_chunk_kernel, chunk=tc, tail_len=tail_len,
                               n_chunks=n_chunks)

    out_padded = pl.pallas_call(
        kernel,
        out_shape=jax.ShapeDtypeStruct((b_pad, o_pad), f32),
        grid_spec=pltpu.PrefetchScalarGridSpec(
            num_scalar_prefetch=0,
            grid=(n_chunks,),
            in_specs=[
                # x chunk: the only streaming operand (last dim = true I).
                pl.BlockSpec((tc * b_pad, I), lambda c: (c, 0)),
                # Constant-index weights/biases: DMA'd once, VMEM-resident.
                # TODO(synk): for large H on v7x add pipeline_mode=pl.Buffered(1)
                # to drop the redundant second buffer of these constants.
                pl.BlockSpec((I, h_pad), lambda c: (0, 0)),       # W_ih^T
                pl.BlockSpec((h_pad, h_pad), lambda c: (0, 0)),   # W_hh^T
                pl.BlockSpec((1, h_pad), lambda c: (0, 0)),       # b_ih + b_hh
                pl.BlockSpec((h_pad, o_pad), lambda c: (0, 0)),   # W_fc^T
                pl.BlockSpec((1, o_pad), lambda c: (0, 0)),       # b_fc
            ],
            out_specs=pl.BlockSpec((b_pad, o_pad), lambda c: (0, 0)),
            scratch_shapes=[pltpu.VMEM((b_pad, h_pad), f32)],     # hidden state
        ),
        compiler_params=pltpu.CompilerParams(
            # The time-chunk axis is a true recurrence (scratch-carried h).
            # TODO(synk): on v7x (2 TensorCores) add a leading "parallel"
            # batch-tile grid axis when b_pad >= 16 to use the second core.
            dimension_semantics=("arbitrary",),
            vmem_limit_bytes=vmem_limit,
        ),
    )(x2d, wih_t, whh_t, b, wfc_t, bfc)

    return out_padded[:B, :O]


def rnn_model_reference(x, w_ih, w_hh, b_ih, b_hh, w_fc, b_fc):
    """Pure-JAX reference matching torch.nn.RNN(batch_first=True) + Linear."""
    B, T, I = x.shape
    H = w_ih.shape[0]
    hp = jax.lax.Precision.HIGHEST
    h = jnp.zeros((B, H), jnp.float32)
    for t in range(T):
        h = jnp.tanh(jnp.dot(x[:, t, :], w_ih.T, precision=hp) + b_ih
                     + jnp.dot(h, w_hh.T, precision=hp) + b_hh)
    return jnp.dot(h, w_fc.T, precision=hp) + b_fc


if __name__ == "__main__":
    # Small shapes consistent with the module (hidden_size = 64 as in the spec).
    # T=40 with the default time_chunk=32 exercises both the scratch-carried
    # hidden state across grid steps and the masked partial last chunk.
    B, T, I, H, O = 2, 40, 16, 64, 8

    key = jax.random.PRNGKey(0)
    ks = jax.random.split(key, 7)
    bound = 1.0 / jnp.sqrt(H)  # mimic PyTorch's uniform(-1/sqrt(H), 1/sqrt(H)) init

    x = jax.random.normal(ks[0], (B, T, I), jnp.float32)
    w_ih = jax.random.uniform(ks[1], (H, I), jnp.float32, -bound, bound)
    w_hh = jax.random.uniform(ks[2], (H, H), jnp.float32, -bound, bound)
    b_ih = jax.random.uniform(ks[3], (H,), jnp.float32, -bound, bound)
    b_hh = jax.random.uniform(ks[4], (H,), jnp.float32, -bound, bound)
    w_fc = jax.random.uniform(ks[5], (O, H), jnp.float32, -bound, bound)
    b_fc = jax.random.uniform(ks[6], (O,), jnp.float32, -bound, bound)

    out = rnn_model_forward(x, w_ih, w_hh, b_ih, b_hh, w_fc, b_fc)
    out = jax.block_until_ready(out)

    ref = rnn_model_reference(x, w_ih, w_hh, b_ih, b_hh, w_fc, b_fc)
    assert out.shape == (B, O)
    # Tolerance covers MXU default-precision matmuls compounding over T steps
    # of the recurrence vs the HIGHEST-precision XLA reference.
    assert jnp.allclose(out, ref, atol=2e-3, rtol=2e-3), "mismatch vs reference"

    print("KERNEL_OK")
</pallas_src>

<mosaic_0001>
module attributes {stable_mosaic.version = 11 : i64} {
  func.func @rnn_chunk_kernel(%arg0: i32, %arg1: memref<256x16xf32, #tpu.memory_space<vmem>>, %arg2: memref<16x128xf32, #tpu.memory_space<vmem>>, %arg3: memref<128x128xf32, #tpu.memory_space<vmem>>, %arg4: memref<1x128xf32, #tpu.memory_space<vmem>>, %arg5: memref<128x128xf32, #tpu.memory_space<vmem>>, %arg6: memref<1x128xf32, #tpu.memory_space<vmem>>, %arg7: memref<8x128xf32, #tpu.memory_space<vmem>>, %arg8: memref<8x128xf32, #tpu.memory_space<vmem>>) attributes {dimension_semantics = [#tpu.dimension_semantics<arbitrary>], iteration_bounds = array<i64: 2>, scalar_prefetch = 0 : i64, scratch_operands = 1 : i64, tpu.core_type = #tpu.core_type<tc>, window_params = [{transform_indices = @transform_0, window_bounds = array<i64: 256, 16>}, {pipeline_mode = #tpu.pipeline_mode<synchronous>, transform_indices = @transform_1, window_bounds = array<i64: 16, 128>}, {pipeline_mode = #tpu.pipeline_mode<synchronous>, transform_indices = @transform_2, window_bounds = array<i64: 128, 128>}, {pipeline_mode = #tpu.pipeline_mode<synchronous>, transform_indices = @transform_3, window_bounds = array<i64: 1, 128>}, {pipeline_mode = #tpu.pipeline_mode<synchronous>, transform_indices = @transform_4, window_bounds = array<i64: 128, 128>}, {pipeline_mode = #tpu.pipeline_mode<synchronous>, transform_indices = @transform_5, window_bounds = array<i64: 1, 128>}, {pipeline_mode = #tpu.pipeline_mode<synchronous>, transform_indices = @transform_6, window_bounds = array<i64: 8, 128>}]} {
    %c0_i32 = arith.constant 0 : i32
    %0 = arith.cmpi eq, %arg0, %c0_i32 : i32
    %1 = arith.extui %0 : i1 to i32
    %c0_i32_0 = arith.constant 0 : i32
    %2 = arith.cmpi ne, %1, %c0_i32_0 : i32
    scf.if %2 {
      %cst_46 = arith.constant 0.000000e+00 : f32
      %168 = vector.broadcast %cst_46 : f32 to vector<8x128xf32>
      %c0_47 = arith.constant 0 : index
      %c0_48 = arith.constant 0 : index
      %169 = vector.load %arg8[%c0_47, %c0_48] : memref<8x128xf32, #tpu.memory_space<vmem>>, vector<8x128xf32>
      tpu.vector_store %arg8[%c0_47, %c0_48], %168 {strides = array<i32>} : memref<8x128xf32, #tpu.memory_space<vmem>>, vector<8x128xf32>,
    } else {
    }
    %c0 = arith.constant 0 : index
    %c0_1 = arith.constant 0 : index
    %3 = vector.load %arg1[%c0, %c0_1] : memref<256x16xf32, #tpu.memory_space<vmem>>, vector<256x16xf32>
    %c0_2 = arith.constant 0 : index
    %c0_3 = arith.constant 0 : index
    %4 = vector.load %arg2[%c0_2, %c0_3] : memref<16x128xf32, #tpu.memory_space<vmem>>, vector<16x128xf32>
    %cst = arith.constant dense<0.000000e+00> : vector<256x128xf32>
    %5 = tpu.matmul %3, %4, %cst {dimension_numbers = #tpu.dot_dimension_numbers<[1], [0], [0], [1], [0, 0, 1, 1], [], []>} : vector<256x16xf32>, vector<16x128xf32>, vector<256x128xf32> -> vector<256x128xf32>
    %c0_4 = arith.constant 0 : index
    %c0_5 = arith.constant 0 : index
    %6 = vector.load %arg4[%c0_4, %c0_5] : memref<1x128xf32, #tpu.memory_space<vmem>>, vector<1x128xf32>
    %7 = vector.broadcast %6 : vector<1x128xf32> to vector<256x128xf32>
    %8 = arith.addf %5, %7 : vector<256x128xf32>
    %c0_6 = arith.constant 0 : index
    %c0_7 = arith.constant 0 : index
    %9 = vector.load %arg3[%c0_6, %c0_7] : memref<128x128xf32, #tpu.memory_space<vmem>>, vector<128x128xf32>
    %c1_i32 = arith.constant 1 : i32
    %10 = arith.cmpi ne, %arg0, %c1_i32 : i32
    %c0_8 = arith.constant 0 : index
    %c0_9 = arith.constant 0 : index
    %11 = vector.load %arg8[%c0_8, %c0_9] : memref<8x128xf32, #tpu.memory_space<vmem>>, vector<8x128xf32>
    %12 = vector.extract_strided_slice %8 {offsets = [0, 0], sizes = [8, 128], strides = [1, 1]} : vector<256x128xf32> to vector<8x128xf32>
    %cst_10 = arith.constant dense<0.000000e+00> : vector<8x128xf32>
    %13 = tpu.matmul %11, %9, %cst_10 {dimension_numbers = #tpu.dot_dimension_numbers<[1], [0], [0], [1], [0, 0, 1, 1], [], []>} : vector<8x128xf32>, vector<128x128xf32>, vector<8x128xf32> -> vector<8x128xf32>
    %14 = arith.addf %12, %13 : vector<8x128xf32>
    %15 = math.tanh %14 : vector<8x128xf32>
    %16 = vector.extract_strided_slice %8 {offsets = [8, 0], sizes = [8, 128], strides = [1, 1]} : vector<256x128xf32> to vector<8x128xf32>
    %cst_11 = arith.constant dense<0.000000e+00> : vector<8x128xf32>
    %17 = tpu.matmul %15, %9, %cst_11 {dimension_numbers = #tpu.dot_dimension_numbers<[1], [0], [0], [1], [0, 0, 1, 1], [], []>} : vector<8x128xf32>, vector<128x128xf32>, vector<8x128xf32> -> vector<8x128xf32>
    %18 = arith.addf %16, %17 : vector<8x128xf32>
    %19 = math.tanh %18 : vector<8x128xf32>
    %20 = vector.extract_strided_slice %8 {offsets = [16, 0], sizes = [8, 128], strides = [1, 1]} : vector<256x128xf32> to vector<8x128xf32>
    %cst_12 = arith.constant dense<0.000000e+00> : vector<8x128xf32>
    %21 = tpu.matmul %19, %9, %cst_12 {dimension_numbers = #tpu.dot_dimension_numbers<[1], [0], [0], [1], [0, 0, 1, 1], [], []>} : vector<8x128xf32>, vector<128x128xf32>, vector<8x128xf32> -> vector<8x128xf32>
    %22 = arith.addf %20, %21 : vector<8x128xf32>
    %23 = math.tanh %22 : vector<8x128xf32>
    %24 = vector.extract_strided_slice %8 {offsets = [24, 0], sizes = [8, 128], strides = [1, 1]} : vector<256x128xf32> to vector<8x128xf32>
    %cst_13 = arith.constant dense<0.000000e+00> : vector<8x128xf32>
    %25 = tpu.matmul %23, %9, %cst_13 {dimension_numbers = #tpu.dot_dimension_numbers<[1], [0], [0], [1], [0, 0, 1, 1], [], []>} : vector<8x128xf32>, vector<128x128xf32>, vector<8x128xf32> -> vector<8x128xf32>
    %26 = arith.addf %24, %25 : vector<8x128xf32>
    %27 = math.tanh %26 : vector<8x128xf32>
    %28 = vector.extract_strided_slice %8 {offsets = [32, 0], sizes = [8, 128], strides = [1, 1]} : vector<256x128xf32> to vector<8x128xf32>
    %cst_14 = arith.constant dense<0.000000e+00> : vector<8x128xf32>
    %29 = tpu.matmul %27, %9, %cst_14 {dimension_numbers = #tpu.dot_dimension_numbers<[1], [0], [0], [1], [0, 0, 1, 1], [], []>} : vector<8x128xf32>, vector<128x128xf32>, vector<8x128xf32> -> vector<8x128xf32>
    %30 = arith.addf %28, %29 : vector<8x128xf32>
    %31 = math.tanh %30 : vector<8x128xf32>
    %32 = vector.extract_strided_slice %8 {offsets = [40, 0], sizes = [8, 128], strides = [1, 1]} : vector<256x128xf32> to vector<8x128xf32>
    %cst_15 = arith.constant dense<0.000000e+00> : vector<8x128xf32>
    %33 = tpu.matmul %31, %9, %cst_15 {dimension_numbers = #tpu.dot_dimension_numbers<[1], [0], [0], [1], [0, 0, 1, 1], [], []>} : vector<8x128xf32>, vector<128x128xf32>, vector<8x128xf32> -> vector<8x128xf32>
    %34 = arith.addf %32, %33 : vector<8x128xf32>
    %35 = math.tanh %34 : vector<8x128xf32>
    %36 = vector.extract_strided_slice %8 {offsets = [48, 0], sizes = [8, 128], strides = [1, 1]} : vector<256x128xf32> to vector<8x128xf32>
    %cst_16 = arith.constant dense<0.000000e+00> : vector<8x128xf32>
    %37 = tpu.matmul %35, %9, %cst_16 {dimension_numbers = #tpu.dot_dimension_numbers<[1], [0], [0], [1], [0, 0, 1, 1], [], []>} : vector<8x128xf32>, vector<128x128xf32>, vector<8x128xf32> -> vector<8x128xf32>
    %38 = arith.addf %36, %37 : vector<8x128xf32>
    %39 = math.tanh %38 : vector<8x128xf32>
    %40 = vector.extract_strided_slice %8 {offsets = [56, 0], sizes = [8, 128], strides = [1, 1]} : vector<256x128xf32> to vector<8x128xf32>
    %cst_17 = arith.constant dense<0.000000e+00> : vector<8x128xf32>
    %41 = tpu.matmul %39, %9, %cst_17 {dimension_numbers = #tpu.dot_dimension_numbers<[1], [0], [0], [1], [0, 0, 1, 1], [], []>} : vector<8x128xf32>, vector<128x128xf32>, vector<8x128xf32> -> vector<8x128xf32>
    %42 = arith.addf %40, %41 : vector<8x128xf32>
    %43 = math.tanh %42 : vector<8x128xf32>
    %44 = vector.extract_strided_slice %8 {offsets = [64, 0], sizes = [8, 128], strides = [1, 1]} : vector<256x128xf32> to vector<8x128xf32>
    %cst_18 = arith.constant dense<0.000000e+00> : vector<8x128xf32>
    %45 = tpu.matmul %43, %9, %cst_18 {dimension_numbers = #tpu.dot_dimension_numbers<[1], [0], [0], [1], [0, 0, 1, 1], [], []>} : vector<8x128xf32>, vector<128x128xf32>, vector<8x128xf32> -> vector<8x128xf32>
    %46 = arith.addf %44, %45 : vector<8x128xf32>
    %47 = math.tanh %46 : vector<8x128xf32>
    %48 = arith.select %10, %47, %43 : vector<8x128xf32>
    %49 = vector.extract_strided_slice %8 {offsets = [72, 0], sizes = [8, 128], strides = [1, 1]} : vector<256x128xf32> to vector<8x128xf32>
    %cst_19 = arith.constant dense<0.000000e+00> : vector<8x128xf32>
    %50 = tpu.matmul %48, %9, %cst_19 {dimension_numbers = #tpu.dot_dimension_numbers<[1], [0], [0], [1], [0, 0, 1, 1], [], []>} : vector<8x128xf32>, vector<128x128xf32>, vector<8x128xf32> -> vector<8x128xf32>
    %51 = arith.addf %49, %50 : vector<8x128xf32>
    %52 = math.tanh %51 : vector<8x128xf32>
    %53 = arith.select %10, %52, %48 : vector<8x128xf32>
    %54 = vector.extract_strided_slice %8 {offsets = [80, 0], sizes = [8, 128], strides = [1, 1]} : vector<256x128xf32> to vector<8x128xf32>
    %cst_20 = arith.constant dense<0.000000e+00> : vector<8x128xf32>
    %55 = tpu.matmul %53, %9, %cst_20 {dimension_numbers = #tpu.dot_dimension_numbers<[1], [0], [0], [1], [0, 0, 1, 1], [], []>} : vector<8x128xf32>, vector<128x128xf32>, vector<8x128xf32> -> vector<8x128xf32>
    %56 = arith.addf %54, %55 : vector<8x128xf32>
    %57 = math.tanh %56 : vector<8x128xf32>
    %58 = arith.select %10, %57, %53 : vector<8x128xf32>
    %59 = vector.extract_strided_slice %8 {offsets = [88, 0], sizes = [8, 128], strides = [1, 1]} : vector<256x128xf32> to vector<8x128xf32>
    %cst_21 = arith.constant dense<0.000000e+00> : vector<8x128xf32>
    %60 = tpu.matmul %58, %9, %cst_21 {dimension_numbers = #tpu.dot_dimension_numbers<[1], [0], [0], [1], [0, 0, 1, 1], [], []>} : vector<8x128xf32>, vector<128x128xf32>, vector<8x128xf32> -> vector<8x128xf32>
    %61 = arith.addf %59, %60 : vector<8x128xf32>
    %62 = math.tanh %61 : vector<8x128xf32>
    %63 = arith.select %10, %62, %58 : vector<8x128xf32>
    %64 = vector.extract_strided_slice %8 {offsets = [96, 0], sizes = [8, 128], strides = [1, 1]} : vector<256x128xf32> to vector<8x128xf32>
    %cst_22 = arith.constant dense<0.000000e+00> : vector<8x128xf32>
    %65 = tpu.matmul %63, %9, %cst_22 {dimension_numbers = #tpu.dot_dimension_numbers<[1], [0], [0], [1], [0, 0, 1, 1], [], []>} : vector<8x128xf32>, vector<128x128xf32>, vector<8x128xf32> -> vector<8x128xf32>
    %66 = arith.addf %64, %65 : vector<8x128xf32>
    %67 = math.tanh %66 : vector<8x128xf32>
    %68 = arith.select %10, %67, %63 : vector<8x128xf32>
    %69 = vector.extract_strided_slice %8 {offsets = [104, 0], sizes = [8, 128], strides = [1, 1]} : vector<256x128xf32> to vector<8x128xf32>
    %cst_23 = arith.constant dense<0.000000e+00> : vector<8x128xf32>
    %70 = tpu.matmul %68, %9, %cst_23 {dimension_numbers = #tpu.dot_dimension_numbers<[1], [0], [0], [1], [0, 0, 1, 1], [], []>} : vector<8x128xf32>, vector<128x128xf32>, vector<8x128xf32> -> vector<8x128xf32>
    %71 = arith.addf %69, %70 : vector<8x128xf32>
    %72 = math.tanh %71 : vector<8x128xf32>
    %73 = arith.select %10, %72, %68 : vector<8x128xf32>
    %74 = vector.extract_strided_slice %8 {offsets = [112, 0], sizes = [8, 128], strides = [1, 1]} : vector<256x128xf32> to vector<8x128xf32>
    %cst_24 = arith.constant dense<0.000000e+00> : vector<8x128xf32>
    %75 = tpu.matmul %73, %9, %cst_24 {dimension_numbers = #tpu.dot_dimension_numbers<[1], [0], [0], [1], [0, 0, 1, 1], [], []>} : vector<8x128xf32>, vector<128x128xf32>, vector<8x128xf32> -> vector<8x128xf32>
    %76 = arith.addf %74, %75 : vector<8x128xf32>
    %77 = math.tanh %76 : vector<8x128xf32>
    %78 = arith.select %10, %77, %73 : vector<8x128xf32>
    %79 = vector.extract_strided_slice %8 {offsets = [120, 0], sizes = [8, 128], strides = [1, 1]} : vector<256x128xf32> to vector<8x128xf32>
    %cst_25 = arith.constant dense<0.000000e+00> : vector<8x128xf32>
    %80 = tpu.matmul %78, %9, %cst_25 {dimension_numbers = #tpu.dot_dimension_numbers<[1], [0], [0], [1], [0, 0, 1, 1], [], []>} : vector<8x128xf32>, vector<128x128xf32>, vector<8x128xf32> -> vector<8x128xf32>
    %81 = arith.addf %79, %80 : vector<8x128xf32>
    %82 = math.tanh %81 : vector<8x128xf32>
    %83 = arith.select %10, %82, %78 : vector<8x128xf32>
    %84 = vector.extract_strided_slice %8 {offsets = [128, 0], sizes = [8, 128], strides = [1, 1]} : vector<256x128xf32> to vector<8x128xf32>
    %cst_26 = arith.constant dense<0.000000e+00> : vector<8x128xf32>
    %85 = tpu.matmul %83, %9, %cst_26 {dimension_numbers = #tpu.dot_dimension_numbers<[1], [0], [0], [1], [0, 0, 1, 1], [], []>} : vector<8x128xf32>, vector<128x128xf32>, vector<8x128xf32> -> vector<8x128xf32>
    %86 = arith.addf %84, %85 : vector<8x128xf32>
    %87 = math.tanh %86 : vector<8x128xf32>
    %88 = arith.select %10, %87, %83 : vector<8x128xf32>
    %89 = vector.extract_strided_slice %8 {offsets = [136, 0], sizes = [8, 128], strides = [1, 1]} : vector<256x128xf32> to vector<8x128xf32>
    %cst_27 = arith.constant dense<0.000000e+00> : vector<8x128xf32>
    %90 = tpu.matmul %88, %9, %cst_27 {dimension_numbers = #tpu.dot_dimension_numbers<[1], [0], [0], [1], [0, 0, 1, 1], [], []>} : vector<8x128xf32>, vector<128x128xf32>, vector<8x128xf32> -> vector<8x128xf32>
    %91 = arith.addf %89, %90 : vector<8x128xf32>
    %92 = math.tanh %91 : vector<8x128xf32>
    %93 = arith.select %10, %92, %88 : vector<8x128xf32>
    %94 = vector.extract_strided_slice %8 {offsets = [144, 0], sizes = [8, 128], strides = [1, 1]} : vector<256x128xf32> to vector<8x128xf32>
    %cst_28 = arith.constant dense<0.000000e+00> : vector<8x128xf32>
    %95 = tpu.matmul %93, %9, %cst_28 {dimension_numbers = #tpu.dot_dimension_numbers<[1], [0], [0], [1], [0, 0, 1, 1], [], []>} : vector<8x128xf32>, vector<128x128xf32>, vector<8x128xf32> -> vector<8x128xf32>
    %96 = arith.addf %94, %95 : vector<8x128xf32>
    %97 = math.tanh %96 : vector<8x128xf32>
    %98 = arith.select %10, %97, %93 : vector<8x128xf32>
    %99 = vector.extract_strided_slice %8 {offsets = [152, 0], sizes = [8, 128], strides = [1, 1]} : vector<256x128xf32> to vector<8x128xf32>
    %cst_29 = arith.constant dense<0.000000e+00> : vector<8x128xf32>
    %100 = tpu.matmul %98, %9, %cst_29 {dimension_numbers = #tpu.dot_dimension_numbers<[1], [0], [0], [1], [0, 0, 1, 1], [], []>} : vector<8x128xf32>, vector<128x128xf32>, vector<8x128xf32> -> vector<8x128xf32>
    %101 = arith.addf %99, %100 : vector<8x128xf32>
    %102 = math.tanh %101 : vector<8x128xf32>
    %103 = arith.select %10, %102, %98 : vector<8x128xf32>
    %104 = vector.extract_strided_slice %8 {offsets = [160, 0], sizes = [8, 128], strides = [1, 1]} : vector<256x128xf32> to vector<8x128xf32>
    %cst_30 = arith.constant dense<0.000000e+00> : vector<8x128xf32>
    %105 = tpu.matmul %103, %9, %cst_30 {dimension_numbers = #tpu.dot_dimension_numbers<[1], [0], [0], [1], [0, 0, 1, 1], [], []>} : vector<8x128xf32>, vector<128x128xf32>, vector<8x128xf32> -> vector<8x128xf32>
    %106 = arith.addf %104, %105 : vector<8x128xf32>
    %107 = math.tanh %106 : vector<8x128xf32>
    %108 = arith.select %10, %107, %103 : vector<8x128xf32>
    %109 = vector.extract_strided_slice %8 {offsets = [168, 0], sizes = [8, 128], strides = [1, 1]} : vector<256x128xf32> to vector<8x128xf32>
    %cst_31 = arith.constant dense<0.000000e+00> : vector<8x128xf32>
    %110 = tpu.matmul %108, %9, %cst_31 {dimension_numbers = #tpu.dot_dimension_numbers<[1], [0], [0], [1], [0, 0, 1, 1], [], []>} : vector<8x128xf32>, vector<128x128xf32>, vector<8x128xf32> -> vector<8x128xf32>
    %111 = arith.addf %109, %110 : vector<8x128xf32>
    %112 = math.tanh %111 : vector<8x128xf32>
    %113 = arith.select %10, %112, %108 : vector<8x128xf32>
    %114 = vector.extract_strided_slice %8 {offsets = [176, 0], sizes = [8, 128], strides = [1, 1]} : vector<256x128xf32> to vector<8x128xf32>
    %cst_32 = arith.constant dense<0.000000e+00> : vector<8x128xf32>
    %115 = tpu.matmul %113, %9, %cst_32 {dimension_numbers = #tpu.dot_dimension_numbers<[1], [0], [0], [1], [0, 0, 1, 1], [], []>} : vector<8x128xf32>, vector<128x128xf32>, vector<8x128xf32> -> vector<8x128xf32>
    %116 = arith.addf %114, %115 : vector<8x128xf32>
    %117 = math.tanh %116 : vector<8x128xf32>
    %118 = arith.select %10, %117, %113 : vector<8x128xf32>
    %119 = vector.extract_strided_slice %8 {offsets = [184, 0], sizes = [8, 128], strides = [1, 1]} : vector<256x128xf32> to vector<8x128xf32>
    %cst_33 = arith.constant dense<0.000000e+00> : vector<8x128xf32>
    %120 = tpu.matmul %118, %9, %cst_33 {dimension_numbers = #tpu.dot_dimension_numbers<[1], [0], [0], [1], [0, 0, 1, 1], [], []>} : vector<8x128xf32>, vector<128x128xf32>, vector<8x128xf32> -> vector<8x128xf32>
    %121 = arith.addf %119, %120 : vector<8x128xf32>
    %122 = math.tanh %121 : vector<8x128xf32>
    %123 = arith.select %10, %122, %118 : vector<8x128xf32>
    %124 = vector.extract_strided_slice %8 {offsets = [192, 0], sizes = [8, 128], strides = [1, 1]} : vector<256x128xf32> to vector<8x128xf32>
    %cst_34 = arith.constant dense<0.000000e+00> : vector<8x128xf32>
    %125 = tpu.matmul %123, %9, %cst_34 {dimension_numbers = #tpu.dot_dimension_numbers<[1], [0], [0], [1], [0, 0, 1, 1], [], []>} : vector<8x128xf32>, vector<128x128xf32>, vector<8x128xf32> -> vector<8x128xf32>
    %126 = arith.addf %124, %125 : vector<8x128xf32>
    %127 = math.tanh %126 : vector<8x128xf32>
    %128 = arith.select %10, %127, %123 : vector<8x128xf32>
    %129 = vector.extract_strided_slice %8 {offsets = [200, 0], sizes = [8, 128], strides = [1, 1]} : vector<256x128xf32> to vector<8x128xf32>
    %cst_35 = arith.constant dense<0.000000e+00> : vector<8x128xf32>
    %130 = tpu.matmul %128, %9, %cst_35 {dimension_numbers = #tpu.dot_dimension_numbers<[1], [0], [0], [1], [0, 0, 1, 1], [], []>} : vector<8x128xf32>, vector<128x128xf32>, vector<8x128xf32> -> vector<8x128xf32>
    %131 = arith.addf %129, %130 : vector<8x128xf32>
    %132 = math.tanh %131 : vector<8x128xf32>
    %133 = arith.select %10, %132, %128 : vector<8x128xf32>
    %134 = vector.extract_strided_slice %8 {offsets = [208, 0], sizes = [8, 128], strides = [1, 1]} : vector<256x128xf32> to vector<8x128xf32>
    %cst_36 = arith.constant dense<0.000000e+00> : vector<8x128xf32>
    %135 = tpu.matmul %133, %9, %cst_36 {dimension_numbers = #tpu.dot_dimension_numbers<[1], [0], [0], [1], [0, 0, 1, 1], [], []>} : vector<8x128xf32>, vector<128x128xf32>, vector<8x128xf32> -> vector<8x128xf32>
    %136 = arith.addf %134, %135 : vector<8x128xf32>
    %137 = math.tanh %136 : vector<8x128xf32>
    %138 = arith.select %10, %137, %133 : vector<8x128xf32>
    %139 = vector.extract_strided_slice %8 {offsets = [216, 0], sizes = [8, 128], strides = [1, 1]} : vector<256x128xf32> to vector<8x128xf32>
    %cst_37 = arith.constant dense<0.000000e+00> : vector<8x128xf32>
    %140 = tpu.matmul %138, %9, %cst_37 {dimension_numbers = #tpu.dot_dimension_numbers<[1], [0], [0], [1], [0, 0, 1, 1], [], []>} : vector<8x128xf32>, vector<128x128xf32>, vector<8x128xf32> -> vector<8x128xf32>
    %141 = arith.addf %139, %140 : vector<8x128xf32>
    %142 = math.tanh %141 : vector<8x128xf32>
    %143 = arith.select %10, %142, %138 : vector<8x128xf32>
    %144 = vector.extract_strided_slice %8 {offsets = [224, 0], sizes = [8, 128], strides = [1, 1]} : vector<256x128xf32> to vector<8x128xf32>
    %cst_38 = arith.constant dense<0.000000e+00> : vector<8x128xf32>
    %145 = tpu.matmul %143, %9, %cst_38 {dimension_numbers = #tpu.dot_dimension_numbers<[1], [0], [0], [1], [0, 0, 1, 1], [], []>} : vector<8x128xf32>, vector<128x128xf32>, vector<8x128xf32> -> vector<8x128xf32>
    %146 = arith.addf %144, %145 : vector<8x128xf32>
    %147 = math.tanh %146 : vector<8x128xf32>
    %148 = arith.select %10, %147, %143 : vector<8x128xf32>
    %149 = vector.extract_strided_slice %8 {offsets = [232, 0], sizes = [8, 128], strides = [1, 1]} : vector<256x128xf32> to vector<8x128xf32>
    %cst_39 = arith.constant dense<0.000000e+00> : vector<8x128xf32>
    %150 = tpu.matmul %148, %9, %cst_39 {dimension_numbers = #tpu.dot_dimension_numbers<[1], [0], [0], [1], [0, 0, 1, 1], [], []>} : vector<8x128xf32>, vector<128x128xf32>, vector<8x128xf32> -> vector<8x128xf32>
    %151 = arith.addf %149, %150 : vector<8x128xf32>
    %152 = math.tanh %151 : vector<8x128xf32>
    %153 = arith.select %10, %152, %148 : vector<8x128xf32>
    %154 = vector.extract_strided_slice %8 {offsets = [240, 0], sizes = [8, 128], strides = [1, 1]} : vector<256x128xf32> to vector<8x128xf32>
    %cst_40 = arith.constant dense<0.000000e+00> : vector<8x128xf32>
    %155 = tpu.matmul %153, %9, %cst_40 {dimension_numbers = #tpu.dot_dimension_numbers<[1], [0], [0], [1], [0, 0, 1, 1], [], []>} : vector<8x128xf32>, vector<128x128xf32>, vector<8x128xf32> -> vector<8x128xf32>
    %156 = arith.addf %154, %155 : vector<8x128xf32>
    %157 = math.tanh %156 : vector<8x128xf32>
    %158 = arith.select %10, %157, %153 : vector<8x128xf32>
    %159 = vector.extract_strided_slice %8 {offsets = [248, 0], sizes = [8, 128], strides = [1, 1]} : vector<256x128xf32> to vector<8x128xf32>
    %cst_41 = arith.constant dense<0.000000e+00> : vector<8x128xf32>
    %160 = tpu.matmul %158, %9, %cst_41 {dimension_numbers = #tpu.dot_dimension_numbers<[1], [0], [0], [1], [0, 0, 1, 1], [], []>} : vector<8x128xf32>, vector<128x128xf32>, vector<8x128xf32> -> vector<8x128xf32>
    %161 = arith.addf %159, %160 : vector<8x128xf32>
    %162 = math.tanh %161 : vector<8x128xf32>
    %163 = arith.select %10, %162, %158 : vector<8x128xf32>
    %c0_42 = arith.constant 0 : index
    %c0_43 = arith.constant 0 : index
    %164 = vector.load %arg8[%c0_42, %c0_43] : memref<8x128xf32, #tpu.memory_space<vmem>>, vector<8x128xf32>
    tpu.vector_store %arg8[%c0_42, %c0_43], %163 {strides = array<i32>} : memref<8x128xf32, #tpu.memory_space<vmem>>, vector<8x128xf32>,
    %c1_i32_44 = arith.constant 1 : i32
    %165 = arith.cmpi eq, %arg0, %c1_i32_44 : i32
    %166 = arith.extui %165 : i1 to i32
    %c0_i32_45 = arith.constant 0 : i32
    %167 = arith.cmpi ne, %166, %c0_i32_45 : i32
    scf.if %167 {
      %c0_46 = arith.constant 0 : index
      %c0_47 = arith.constant 0 : index
      %168 = vector.load %arg5[%c0_46, %c0_47] : memref<128x128xf32, #tpu.memory_space<vmem>>, vector<128x128xf32>
      %cst_48 = arith.constant dense<0.000000e+00> : vector<8x128xf32>
      %169 = tpu.matmul %163, %168, %cst_48 {dimension_numbers = #tpu.dot_dimension_numbers<[1], [0], [0], [1], [0, 0, 1, 1], [], []>} : vector<8x128xf32>, vector<128x128xf32>, vector<8x128xf32> -> vector<8x128xf32>
      %c0_49 = arith.constant 0 : index
      %c0_50 = arith.constant 0 : index
      %170 = vector.load %arg6[%c0_49, %c0_50] : memref<1x128xf32, #tpu.memory_space<vmem>>, vector<1x128xf32>
      %171 = vector.broadcast %170 : vector<1x128xf32> to vector<8x128xf32>
      %172 = arith.addf %169, %171 : vector<8x128xf32>
      %c0_51 = arith.constant 0 : index
      %c0_52 = arith.constant 0 : index
      %173 = vector.load %arg7[%c0_51, %c0_52] : memref<8x128xf32, #tpu.memory_space<vmem>>, vector<8x128xf32>
      tpu.vector_store %arg7[%c0_51, %c0_52], %172 {strides = array<i32>} : memref<8x128xf32, #tpu.memory_space<vmem>>, vector<8x128xf32>,
    } else {
    }
    return
  }
  func.func @transform_0(%arg0: i32) -> (i32, i32) {
    %c0_i32 = arith.constant 0 : i32
    %c0_i32_0 = arith.constant 0 : i32
    return %arg0, %c0_i32 : i32, i32
  }
  func.func @transform_1(%arg0: i32) -> (i32, i32) {
    %c0_i32 = arith.constant 0 : i32
    %c0_i32_0 = arith.constant 0 : i32
    %c0_i32_1 = arith.constant 0 : i32
    return %c0_i32, %c0_i32_0 : i32, i32
  }
  func.func @transform_2(%arg0: i32) -> (i32, i32) {
    %c0_i32 = arith.constant 0 : i32
    %c0_i32_0 = arith.constant 0 : i32
    %c0_i32_1 = arith.constant 0 : i32
    return %c0_i32, %c0_i32_0 : i32, i32
  }
  func.func @transform_3(%arg0: i32) -> (i32, i32) {
    %c0_i32 = arith.constant 0 : i32
    %c0_i32_0 = arith.constant 0 : i32
    %c0_i32_1 = arith.constant 0 : i32
    return %c0_i32, %c0_i32_0 : i32, i32
  }
  func.func @transform_4(%arg0: i32) -> (i32, i32) {
    %c0_i32 = arith.constant 0 : i32
    %c0_i32_0 = arith.constant 0 : i32
    %c0_i32_1 = arith.constant 0 : i32
    return %c0_i32, %c0_i32_0 : i32, i32
  }
  func.func @transform_5(%arg0: i32) -> (i32, i32) {
    %c0_i32 = arith.constant 0 : i32
    %c0_i32_0 = arith.constant 0 : i32
    %c0_i32_1 = arith.constant 0 : i32
    return %c0_i32, %c0_i32_0 : i32, i32
  }
  func.func @transform_6(%arg0: i32) -> (i32, i32) {
    %c0_i32 = arith.constant 0 : i32
    %c0_i32_0 = arith.constant 0 : i32
    %c0_i32_1 = arith.constant 0 : i32
    return %c0_i32, %c0_i32_0 : i32, i32
  }
}

</mosaic_0001>

<llo_original>
// kernel: tpu_custom_call.1
$region0: #{tpu_custom_call.1}
  #allocation0 [shape = 'u32[]', space=smem, size = 0x4, offset = 0x4, fixed_abs, tag = 'smem constant byte address 0x4 - core index']
  #allocation1 [shape = 'u32[144,128]{1,0:T(1,128)}', space=vmem, size = 0x12000, scoped, tag = 'internal scratch']
  #allocation2 [shape = 'f32[8,128]{1,0:T(8,128)}', space=vmem, size = 0x1000, scoped, tag = 'scratch operand']
  %s0 = inlined_call_operand.vmem [shape: f32[512,16], index: 0, kind: input, shape index: {}]
  %s1 = inlined_call_operand.vmem [shape: f32[16,128], index: 1, kind: input, shape index: {}]
  %s2 = inlined_call_operand.vmem [shape: f32[128,128], index: 2, kind: input, shape index: {}]
  %s3 = inlined_call_operand.vmem [shape: f32[1,128], index: 3, kind: input, shape index: {}]
  %s4 = inlined_call_operand.vmem [shape: f32[128,128], index: 4, kind: input, shape index: {}]
  %s5 = inlined_call_operand.vmem [shape: f32[1,128], index: 5, kind: input, shape index: {}]
  %s6 = inlined_call_operand.hbm [shape: f32[8,128], index: 6, kind: output, shape index: {}]
  %s7 = sld [smem:[#allocation0]]
  $region65: #{tpu_custom_call.1} parent=0
    _
  %s9 = ssub.s32 1, %s7
  %s10 = scalar_select 0, %s9, %s7
  $region1: #{tpu_custom_call.1} parent=0
    #allocation3 [shape = 'u8[4096]{0}', space=vmem, size = 0x1000, scoped, tag = 'output window, operand 0, single buffered']
    #allocation4 [shape = 's32[2]{0}', space=sflag, size = 0x8, scoped, tag = 'scoped memory for tpu_custom_call.1']
    %11 = vsyncpa [#allocation4], 0
    loop: start=0, step=1, limit=4
    $region2: #{tpu_custom_call.1} parent=1 // loop_pre_header
      _
    $region3: #{tpu_custom_call.1} parent=1 // loop_header
      %s13 = sphi 0, %s17
      %p14 = scmp.ge.s32.totalorder %s13, 4
      %s23 = sphi 0, %s25
      %s26 = sphi 0, %s23
      %s27 = sphi 0, %s26
      %s43 = sphi 0, %s27
      %s47 = sphi 0, %s47
      %s49 = sphi 0, %s47
      %s50 = sphi 0, %s49
      %s64 = sphi 0, %s50
      %s68 = sphi 0, %s68
      %s70 = sphi 0, %s68
      %s71 = sphi 0, %s70
      %s85 = sphi 0, %s71
      %s89 = sphi 0, %s89
      %s91 = sphi 0, %s89
      %s92 = sphi 0, %s91
      %s106 = sphi 0, %s92
      %s110 = sphi 0, %s110
      %s112 = sphi 0, %s110
      %s113 = sphi 0, %s112
      %s127 = sphi 0, %s113
      %s131 = sphi 0, %s131
      %s133 = sphi 0, %s131
      %s134 = sphi 0, %s133
      %s148 = sphi 0, %s134
      %s152 = sphi 0, %s152
      %s154 = sphi 0, %s152
      %s155 = sphi 0, %s154
      %s169 = sphi 0, %s155
    $region4: #{tpu_custom_call.1} parent=1 // loop_header_branch
      %16 = sbr.rel (%p14) target = $region8
    $region5: #{tpu_custom_call.1} parent=1 // loop_body
      %s18 = ssub.s32 %s13, 1
      %s19 = ssub.s32 %s13, 2
      %s20 = sadd.s32 %s13, 1
      %s21 = ssub.s32 %s13, %s20
      %p22 = scmp.eq.s32.totalorder %s21, 0
      %s24 = sadd.s32 %s23, 1
      %s25 = scalar_select %p22, %s23, %s24
      %p28 = pneg %p22
      %p29 = scmp.eq.s32.totalorder %s13, 1
      %p30 = por %p28, %p29
      %p31 = scmp.ne.s32.totalorder %s23, %s26
      %p32 = scmp.eq.s32.totalorder %s13, 0
      %p33 = por %p31, %p32
      %p34 = scmp.ne.s32.totalorder %s23, %s26
      %p35 = scmp.eq.s32.totalorder %s18, 1
      %p36 = por %p34, %p35
      %p37 = scmp.ne.s32.totalorder %s26, %s27
      %p38 = scmp.eq.s32.totalorder %s18, 0
      %p39 = por %p37, %p38
      %p40 = scmp.ne.s32.totalorder %s26, %s27
      %p41 = scmp.eq.s32.totalorder %s19, 1
      %p42 = por %p40, %p41
      %p44 = scmp.ne.s32.totalorder %s27, %s43
      %p45 = scmp.eq.s32.totalorder %s19, 0
      %p46 = por %p44, %p45
      %s48 = sadd.s32 %s47, 1
      %p51 = scmp.eq.s32.totalorder %s13, 1
      %p52 = scmp.ne.s32.totalorder %s47, %s49
      %p53 = scmp.eq.s32.totalorder %s13, 0
      %p54 = por %p52, %p53
      %p55 = scmp.ne.s32.totalorder %s47, %s49
      %p56 = scmp.eq.s32.totalorder %s18, 1
      %p57 = por %p55, %p56
      %p58 = scmp.ne.s32.totalorder %s49, %s50
      %p59 = scmp.eq.s32.totalorder %s18, 0
      %p60 = por %p58, %p59
      %p61 = scmp.ne.s32.totalorder %s49, %s50
      %p62 = scmp.eq.s32.totalorder %s19, 1
      %p63 = por %p61, %p62
      %p65 = scmp.ne.s32.totalorder %s50, %s64
      %p66 = scmp.eq.s32.totalorder %s19, 0
      %p67 = por %p65, %p66
      %s69 = sadd.s32 %s68, 1
      %p72 = scmp.eq.s32.totalorder %s13, 1
      %p73 = scmp.ne.s32.totalorder %s68, %s70
      %p74 = scmp.eq.s32.totalorder %s13, 0
      %p75 = por %p73, %p74
      %p76 = scmp.ne.s32.totalorder %s68, %s70
      %p77 = scmp.eq.s32.totalorder %s18, 1
      %p78 = por %p76, %p77
      %p79 = scmp.ne.s32.totalorder %s70, %s71
      %p80 = scmp.eq.s32.totalorder %s18, 0
      %p81 = por %p79, %p80
      %p82 = scmp.ne.s32.totalorder %s70, %s71
      %p83 = scmp.eq.s32.totalorder %s19, 1
      %p84 = por %p82, %p83
      %p86 = scmp.ne.s32.totalorder %s71, %s85
      %p87 = scmp.eq.s32.totalorder %s19, 0
      %p88 = por %p86, %p87
      %s90 = sadd.s32 %s89, 1
      %p93 = scmp.eq.s32.totalorder %s13, 1
      %p94 = scmp.ne.s32.totalorder %s89, %s91
      %p95 = scmp.eq.s32.totalorder %s13, 0
      %p96 = por %p94, %p95
      %p97 = scmp.ne.s32.totalorder %s89, %s91
      %p98 = scmp.eq.s32.totalorder %s18, 1
      %p99 = por %p97, %p98
      %p100 = scmp.ne.s32.totalorder %s91, %s92
      %p101 = scmp.eq.s32.totalorder %s18, 0
      %p102 = por %p100, %p101
      %p103 = scmp.ne.s32.totalorder %s91, %s92
      %p104 = scmp.eq.s32.totalorder %s19, 1
      %p105 = por %p103, %p104
      %p107 = scmp.ne.s32.totalorder %s92, %s106
      %p108 = scmp.eq.s32.totalorder %s19, 0
      %p109 = por %p107, %p108
      %s111 = sadd.s32 %s110, 1
      %p114 = scmp.eq.s32.totalorder %s13, 1
      %p115 = scmp.ne.s32.totalorder %s110, %s112
      %p116 = scmp.eq.s32.totalorder %s13, 0
      %p117 = por %p115, %p116
      %p118 = scmp.ne.s32.totalorder %s110, %s112
      %p119 = scmp.eq.s32.totalorder %s18, 1
      %p120 = por %p118, %p119
      %p121 = scmp.ne.s32.totalorder %s112, %s113
      %p122 = scmp.eq.s32.totalorder %s18, 0
      %p123 = por %p121, %p122
      %p124 = scmp.ne.s32.totalorder %s112, %s113
      %p125 = scmp.eq.s32.totalorder %s19, 1
      %p126 = por %p124, %p125
      %p128 = scmp.ne.s32.totalorder %s113, %s127
      %p129 = scmp.eq.s32.totalorder %s19, 0
      %p130 = por %p128, %p129
      %s132 = sadd.s32 %s131, 1
      %p135 = scmp.eq.s32.totalorder %s13, 1
      %p136 = scmp.ne.s32.totalorder %s131, %s133
      %p137 = scmp.eq.s32.totalorder %s13, 0
      %p138 = por %p136, %p137
      %p139 = scmp.ne.s32.totalorder %s131, %s133
      %p140 = scmp.eq.s32.totalorder %s18, 1
      %p141 = por %p139, %p140
      %p142 = scmp.ne.s32.totalorder %s133, %s134
      %p143 = scmp.eq.s32.totalorder %s18, 0
      %p144 = por %p142, %p143
      %p145 = scmp.ne.s32.totalorder %s133, %s134
      %p146 = scmp.eq.s32.totalorder %s19, 1
      %p147 = por %p145, %p146
      %p149 = scmp.ne.s32.totalorder %s134, %s148
      %p150 = scmp.eq.s32.totalorder %s19, 0
      %p151 = por %p149, %p150
      %s153 = sadd.s32 %s152, 1
      %p156 = scmp.eq.s32.totalorder %s13, 1
      %p157 = scmp.ne.s32.totalorder %s152, %s154
      %p158 = scmp.eq.s32.totalorder %s13, 0
      %p159 = por %p157, %p158
      %p160 = scmp.ne.s32.totalorder %s152, %s154
      %p161 = scmp.eq.s32.totalorder %s18, 1
      %p162 = por %p160, %p161
      %p163 = scmp.ne.s32.totalorder %s154, %s155
      %p164 = scmp.eq.s32.totalorder %s18, 0
      %p165 = por %p163, %p164
      %p166 = scmp.ne.s32.totalorder %s154, %s155
      %p167 = scmp.eq.s32.totalorder %s19, 1
      %p168 = por %p166, %p167
      %p170 = scmp.ne.s32.totalorder %s155, %s169
      %p171 = scmp.eq.s32.totalorder %s19, 0
      %p172 = por %p170, %p171
      %p173 = scmp.le.s32.totalorder 1, %s13
      %p174 = scmp.lt.s32.totalorder %s13, 3
      %p175 = pnand %p173, %p174
      %p176 = pneg %p175
      // Predicated region
      $region9: #{tpu_custom_call.1} parent=5 // pred_check
        _
      $region10: #{tpu_custom_call.1} parent=5 // pred_check_branch
        %178 = sbr.rel (%p175) target = $region12
      $region11: #{tpu_custom_call.1} parent=5 // pred_region
        %s179 = ssub.s32 %s13, 1
        // Predicated region
        $region13: #{tpu_custom_call.1} parent=11 // pred_check
          %p180 = pneg %p60
        $region14: #{tpu_custom_call.1} parent=11 // pred_check_branch
          %182 = sbr.rel (%p180) target = $region16
        $region15: #{tpu_custom_call.1} parent=11 // pred_region
          _
        $region16: #{tpu_custom_call.1} parent=11 // pred_fallthru
          _
        // Predicated region
        $region17: #{tpu_custom_call.1} parent=11 // pred_check
          %p183 = pneg %p81
        $region18: #{tpu_custom_call.1} parent=11 // pred_check_branch
          %185 = sbr.rel (%p183) target = $region20
        $region19: #{tpu_custom_call.1} parent=11 // pred_region
          _
        $region20: #{tpu_custom_call.1} parent=11 // pred_fallthru
          _
        // Predicated region
        $region21: #{tpu_custom_call.1} parent=11 // pred_check
          %p186 = pneg %p102
        $region22: #{tpu_custom_call.1} parent=11 // pred_check_branch
          %188 = sbr.rel (%p186) target = $region24
        $region23: #{tpu_custom_call.1} parent=11 // pred_region
          _
        $region24: #{tpu_custom_call.1} parent=11 // pred_fallthru
          _
        // Predicated region
        $region25: #{tpu_custom_call.1} parent=11 // pred_check
          %p189 = pneg %p123
        $region26: #{tpu_custom_call.1} parent=11 // pred_check_branch
          %191 = sbr.rel (%p189) target = $region28
        $region27: #{tpu_custom_call.1} parent=11 // pred_region
          _
        $region28: #{tpu_custom_call.1} parent=11 // pred_fallthru
          _
        // Predicated region
        $region29: #{tpu_custom_call.1} parent=11 // pred_check
          %p192 = pneg %p144
        $region30: #{tpu_custom_call.1} parent=11 // pred_check_branch
          %194 = sbr.rel (%p192) target = $region32
        $region31: #{tpu_custom_call.1} parent=11 // pred_region
          _
        $region32: #{tpu_custom_call.1} parent=11 // pred_fallthru
          _
      $region12: #{tpu_custom_call.1} parent=5 // pred_fallthru
        _
      %p195 = scmp.lt.s32.totalorder %s13, 2
      // Predicated region
      $region33: #{tpu_custom_call.1} parent=5 // pred_check
        %p196 = pneg %p195
      $region34: #{tpu_custom_call.1} parent=5 // pred_check_branch
        %198 = sbr.rel (%p196) target = $region36
      $region35: #{tpu_custom_call.1} parent=5 // pred_region
        // Predicated region
        $region37: #{tpu_custom_call.1} parent=35 // pred_check
          %p199 = pneg %p33
        $region38: #{tpu_custom_call.1} parent=35 // pred_check_branch
          %201 = sbr.rel (%p199) target = $region40
        $region39: #{tpu_custom_call.1} parent=35 // pred_region
          %s202 = smul.u32 32, %s13
          %p203 = scmp.lt.s32.totalorder %s202, 63
          %s204 = scalar_select %p203, %s202, 63
          %s205 = smul.addr %s204, 8
          %s206 = scalar_lea.vmem %s0, %s205
          %s207 = smul.u32 32, %s13
        $region40: #{tpu_custom_call.1} parent=35 // pred_fallthru
          _
      $region36: #{tpu_custom_call.1} parent=5 // pred_fallthru
        _
      %p208 = scmp.le.s32.totalorder 1, %s13
      %p209 = scmp.lt.s32.totalorder %s13, 3
      %p210 = pnand %p208, %p209
      %p211 = pneg %p210
      // Predicated region
      $region41: #{tpu_custom_call.1} parent=5 // pred_check
        _
      $region42: #{tpu_custom_call.1} parent=5 // pred_check_branch
        %213 = sbr.rel (%p210) target = $region44
      $region43: #{tpu_custom_call.1} parent=5 // pred_region
        %s214 = ssub.s32 %s13, 1
        %s215 = smul.u32 32, %s18
        %p216 = scmp.lt.s32.totalorder %s215, 63
        %s217 = scalar_select %p216, %s215, 63
        %s218 = smul.addr %s217, 8
        %s219 = scalar_lea.vmem %s0, %s218
        %p220 = pneg %p39
        %p221 = pneg %p36
        %p222 = pneg %p60
        %p223 = pneg %p57
        %p224 = pneg %p81
        %p225 = pneg %p78
        %p226 = pneg %p102
        %p227 = pneg %p99
        %p228 = pneg %p123
        %p229 = pneg %p120
        %p230 = pneg %p144
        %p231 = pneg %p141
        %p232 = pneg %p165
        %p233 = pneg %p162
        %s234 = smul.u32 32, %s18
        %p235 = scmp.lt.s32.totalorder %s234, 63
        %s236 = scalar_select %p235, %s234, 63
        %s237 = smul.addr %s236, 8
        %s238 = scalar_lea.vmem %s0, %s237
        %s239 = smul.u32 32, %s18
        %p240 = scmp.eq.s32.totalorder %s18, 0
        // Predicated region
        $region45: #{tpu_custom_call.1} parent=43 // pred_check
          %p241 = pneg %p240
        $region46: #{tpu_custom_call.1} parent=43 // pred_check_branch
          %243 = sbr.rel (%p241) target = $region48
        $region47: #{tpu_custom_call.1} parent=43 // pred_region
          %244 = vst [vmem:[#allocation2] sm:$0xff] 0.0
        $region48: #{tpu_custom_call.1} parent=43 // pred_fallthru
          _
        %v245 = vld [vmem:[%s238] sm:$0xff]
        %v246 = vld [vmem:[%s238 + $0x8] sm:$0xff]
        %v247 = vld [vmem:[%s238 + $0x10] sm:$0xff]
        %v248 = vld [vmem:[%s238 + $0x18] sm:$0xff]
        %v249 = vld [vmem:[%s238 + $0x20] sm:$0xff]
        %v250 = vld [vmem:[%s238 + $0x28] sm:$0xff]
        %v251 = vld [vmem:[%s238 + $0x30] sm:$0xff]
        %v252 = vld [vmem:[%s238 + $0x38] sm:$0xff]
        %v253 = vld [vmem:[%s238 + $0x40] sm:$0xff]
        %v254 = vld [vmem:[%s238 + $0x48] sm:$0xff]
        %v255 = vld [vmem:[%s238 + $0x50] sm:$0xff]
        %v256 = vld [vmem:[%s238 + $0x58] sm:$0xff]
        %v257 = vld [vmem:[%s238 + $0x60] sm:$0xff]
        %v258 = vld [vmem:[%s238 + $0x68] sm:$0xff]
        %v259 = vld [vmem:[%s238 + $0x70] sm:$0xff]
        %v260 = vld [vmem:[%s238 + $0x78] sm:$0xff]
        %v261 = vld [vmem:[%s238 + $0x80] sm:$0xff]
        %v262 = vld [vmem:[%s238 + $0x88] sm:$0xff]
        %v263 = vld [vmem:[%s238 + $0x90] sm:$0xff]
        %v264 = vld [vmem:[%s238 + $0x98] sm:$0xff]
        %v265 = vld [vmem:[%s238 + $0xa0] sm:$0xff]
        %v266 = vld [vmem:[%s238 + $0xa8] sm:$0xff]
        %v267 = vld [vmem:[%s238 + $0xb0] sm:$0xff]
        %v268 = vld [vmem:[%s238 + $0xb8] sm:$0xff]
        %v269 = vld [vmem:[%s238 + $0xc0] sm:$0xff]
        %v270 = vld [vmem:[%s238 + $0xc8] sm:$0xff]
        %v271 = vld [vmem:[%s238 + $0xd0] sm:$0xff]
        %v272 = vld [vmem:[%s238 + $0xd8] sm:$0xff]
        %v273 = vld [vmem:[%s238 + $0xe0] sm:$0xff]
        %v274 = vld [vmem:[%s238 + $0xe8] sm:$0xff]
        %v275 = vld [vmem:[%s238 + $0xf0] sm:$0xff]
        %v276 = vld [vmem:[%s238 + $0xf8] sm:$0xff]
        %v277 = vld [vmem:[%s1] sm:$0xff]
        %v278 = vld [vmem:[%s1 + $0x8] sm:$0xff]
        %v279 = vld [vmem:[%s3] sm:$0x1]
        %v281 = vlaneseq
        %v282 = vshrl.u32 %v281, 7
        %v283 = vsub.s32 0, %v282
        %v284 = vrot.slane %v279, %v283
        %vm286 = vcmask 130048
        %v288 = vsel %vm286, %v245, 0
        %v291 = vsel %vm286, %v246, 0
        %v294 = vsel %vm286, %v247, 0
        %v297 = vsel %vm286, %v248, 0
        %v300 = vsel %vm286, %v249, 0
        %v303 = vsel %vm286, %v250, 0
        %v306 = vsel %vm286, %v251, 0
        %v309 = vsel %vm286, %v252, 0
        %v312 = vsel %vm286, %v253, 0
        %v315 = vsel %vm286, %v254, 0
        %v318 = vsel %vm286, %v255, 0
        %v321 = vsel %vm286, %v256, 0
        %v324 = vsel %vm286, %v257, 0
        %v327 = vsel %vm286, %v258, 0
        %v330 = vsel %vm286, %v259, 0
        %v333 = vsel %vm286, %v260, 0
        %v336 = vsel %vm286, %v261, 0
        %v339 = vsel %vm286, %v262, 0
        %v342 = vsel %vm286, %v263, 0
        %v345 = vsel %vm286, %v264, 0
        %v348 = vsel %vm286, %v265, 0
        %v351 = vsel %vm286, %v266, 0
        %v354 = vsel %vm286, %v267, 0
        %v357 = vsel %vm286, %v268, 0
        %v360 = vsel %vm286, %v269, 0
        %v363 = vsel %vm286, %v270, 0
        %v366 = vsel %vm286, %v271, 0
        %v369 = vsel %vm286, %v272, 0
        %v372 = vsel %vm286, %v273, 0
        %v375 = vsel %vm286, %v274, 0
        %v378 = vsel %vm286, %v275, 0
        %v381 = vsel %vm286, %v276, 0
        %383 = vmatprep.subr.mxu0 0.0
        %384 = vmatpush1.msra.mxu0 %v277
        %385 = vmatprep.subr.mxu0 0.0
        %386 = vmatpush1.msra.mxu0 %v278
        %387 = vmatprep.subr.mxu0 0.0
        %388 = vmatpush1.msra.mxu0 0.0
        %389 = vmatprep.subr.mxu0 0.0
        %390 = vmatpush1.msra.mxu0 0.0
        %391 = vmatprep.subr.mxu0 0.0
        %392 = vmatpush1.msra.mxu0 0.0
        %393 = vmatprep.subr.mxu0 0.0
        %394 = vmatpush1.msra.mxu0 0.0
        %395 = vmatprep.subr.mxu0 0.0
        %396 = vmatpush1.msra.mxu0 0.0
        %397 = vmatprep.subr.mxu0 0.0
        %398 = vmatpush1.msra.mxu0 0.0
        %399 = vmatprep.subr.mxu0 0.0
        %400 = vmatpush1.msra.mxu0 0.0
        %401 = vmatprep.subr.mxu0 0.0
        %402 = vmatpush1.msra.mxu0 0.0
        %403 = vmatprep.subr.mxu0 0.0
        %404 = vmatpush1.msra.mxu0 0.0
        %405 = vmatprep.subr.mxu0 0.0
        %406 = vmatpush1.msra.mxu0 0.0
        %407 = vmatprep.subr.mxu0 0.0
        %408 = vmatpush1.msra.mxu0 0.0
        %409 = vmatprep.subr.mxu0 0.0
        %410 = vmatpush1.msra.mxu0 0.0
        %411 = vmatprep.subr.mxu0 0.0
        %412 = vmatpush1.msra.mxu0 0.0
        %413 = vmatprep.subr.mxu0 0.0
        %414 = vmatpush1.msra.mxu0 0.0
        %415 = vmatprep.subr.mxu0 0.0
        %416 = vmatpush1.msra.mxu0 0.0
        %417 = vmatprep.subr.mxu0 0.0
        %418 = vmatpush1.msra.mxu0 0.0
        %419 = vmatprep.subr.mxu0 0.0
        %420 = vmatpush1.msra.mxu0 0.0
        %421 = vmatprep.subr.mxu0 0.0
        %422 = vmatpush1.msra.mxu0 0.0
        %423 = vmatprep.subr.mxu0 0.0
        %424 = vmatpush1.msra.mxu0 0.0
        %425 = vmatprep.subr.mxu0 0.0
        %426 = vmatpush1.msra.mxu0 0.0
        %427 = vmatprep.subr.mxu0 0.0
        %428 = vmatpush1.msra.mxu0 0.0
        %429 = vmatprep.subr.mxu0 0.0
        %430 = vmatpush1.msra.mxu0 0.0
        %431 = vmatprep.subr.mxu0 0.0
        %432 = vmatpush1.msra.mxu0 0.0
        %433 = vmatprep.subr.mxu0 0.0
        %434 = vmatpush1.msra.mxu0 0.0
        %435 = vmatprep.subr.mxu0 0.0
        %436 = vmatpush1.msra.mxu0 0.0
        %437 = vmatprep.subr.mxu0 0.0
        %438 = vmatpush1.msra.mxu0 0.0
        %439 = vmatprep.subr.mxu0 0.0
        %440 = vmatpush1.msra.mxu0 0.0
        %441 = vmatprep.subr.mxu0 0.0
        %442 = vmatpush1.msra.mxu0 0.0
        %443 = vmatprep.subr.mxu0 0.0
        %444 = vmatpush1.msra.mxu0 0.0
        %445 = vmatprep.subr.mxu0 0.0
        %446 = vmatpush1.msra.mxu0 0.0
        %447 = vmatprep.mubr.f32.mxu0 0.0
        %448 = vmatmul.mubr.f32.gmra.mrb[0].mxu0 %v288
        %v449 = vpop.f32.mrb[0].mxu0
        %v450 = vadd.f32 %v284, %v449
        %v451 = vpop.f32.mrb[0].mxu0
        %452 = vmatprep.mubr.f32.mxu0 0.0
        %453 = vmatmul.mubr.f32.gmra.mrb[0].mxu0 %v291
        %v454 = vpop.f32.mrb[0].mxu0
        %v455 = vadd.f32 %v284, %v454
        %v456 = vpop.f32.mrb[0].mxu0
        %457 = vmatprep.mubr.f32.mxu0 0.0
        %458 = vmatmul.mubr.f32.gmra.mrb[0].mxu0 %v294
        %v459 = vpop.f32.mrb[0].mxu0
        %v460 = vadd.f32 %v284, %v459
        %v461 = vpop.f32.mrb[0].mxu0
        %462 = vmatprep.mubr.f32.mxu0 0.0
        %463 = vmatmul.mubr.f32.gmra.mrb[0].mxu0 %v297
        %v464 = vpop.f32.mrb[0].mxu0
        %v465 = vadd.f32 %v284, %v464
        %v466 = vpop.f32.mrb[0].mxu0
        %467 = vmatprep.mubr.f32.mxu0 0.0
        %468 = vmatmul.mubr.f32.gmra.mrb[0].mxu0 %v300
        %v469 = vpop.f32.mrb[0].mxu0
        %v470 = vadd.f32 %v284, %v469
        %v471 = vpop.f32.mrb[0].mxu0
        %472 = vmatprep.mubr.f32.mxu0 0.0
        %473 = vmatmul.mubr.f32.gmra.mrb[0].mxu0 %v303
        %v474 = vpop.f32.mrb[0].mxu0
        %v475 = vadd.f32 %v284, %v474
        %v476 = vpop.f32.mrb[0].mxu0
        %477 = vmatprep.mubr.f32.mxu0 0.0
        %478 = vmatmul.mubr.f32.gmra.mrb[0].mxu0 %v306
        %v479 = vpop.f32.mrb[0].mxu0
        %v480 = vadd.f32 %v284, %v479
        %v481 = vpop.f32.mrb[0].mxu0
        %482 = vmatprep.mubr.f32.mxu0 0.0
        %483 = vmatmul.mubr.f32.gmra.mrb[0].mxu0 %v309
        %v484 = vpop.f32.mrb[0].mxu0
        %v485 = vadd.f32 %v284, %v484
        %v486 = vpop.f32.mrb[0].mxu0
        %487 = vmatprep.mubr.f32.mxu0 0.0
        %488 = vmatmul.mubr.f32.gmra.mrb[0].mxu0 %v312
        %v489 = vpop.f32.mrb[0].mxu0
        %v490 = vadd.f32 %v284, %v489
        %v491 = vpop.f32.mrb[0].mxu0
        %492 = vmatprep.mubr.f32.mxu0 0.0
        %493 = vmatmul.mubr.f32.gmra.mrb[0].mxu0 %v315
        %v494 = vpop.f32.mrb[0].mxu0
        %v495 = vadd.f32 %v284, %v494
        %v496 = vpop.f32.mrb[0].mxu0
        %497 = vmatprep.mubr.f32.mxu0 0.0
        %498 = vmatmul.mubr.f32.gmra.mrb[0].mxu0 %v318
        %v499 = vpop.f32.mrb[0].mxu0
        %v500 = vadd.f32 %v284, %v499
        %v501 = vpop.f32.mrb[0].mxu0
        %502 = vmatprep.mubr.f32.mxu0 0.0
        %503 = vmatmul.mubr.f32.gmra.mrb[0].mxu0 %v321
        %v504 = vpop.f32.mrb[0].mxu0
        %v505 = vadd.f32 %v284, %v504
        %v506 = vpop.f32.mrb[0].mxu0
        %507 = vmatprep.mubr.f32.mxu0 0.0
        %508 = vmatmul.mubr.f32.gmra.mrb[0].mxu0 %v324
        %v509 = vpop.f32.mrb[0].mxu0
        %v510 = vadd.f32 %v284, %v509
        %v511 = vpop.f32.mrb[0].mxu0
        %512 = vmatprep.mubr.f32.mxu0 0.0
        %513 = vmatmul.mubr.f32.gmra.mrb[0].mxu0 %v327
        %v514 = vpop.f32.mrb[0].mxu0
        %v515 = vadd.f32 %v284, %v514
        %v516 = vpop.f32.mrb[0].mxu0
        %517 = vmatprep.mubr.f32.mxu0 0.0
        %518 = vmatmul.mubr.f32.gmra.mrb[0].mxu0 %v330
        %v519 = vpop.f32.mrb[0].mxu0
        %v520 = vadd.f32 %v284, %v519
        %v521 = vpop.f32.mrb[0].mxu0
        %522 = vmatprep.mubr.f32.mxu0 0.0
        %523 = vmatmul.mubr.f32.gmra.mrb[0].mxu0 %v333
        %v524 = vpop.f32.mrb[0].mxu0
        %v525 = vadd.f32 %v284, %v524
        %v526 = vpop.f32.mrb[0].mxu0
        %527 = vmatprep.mubr.f32.mxu0 0.0
        %528 = vmatmul.mubr.f32.gmra.mrb[0].mxu0 %v336
        %v529 = vpop.f32.mrb[0].mxu0
        %v530 = vadd.f32 %v284, %v529
        %v531 = vpop.f32.mrb[0].mxu0
        %532 = vmatprep.mubr.f32.mxu0 0.0
        %533 = vmatmul.mubr.f32.gmra.mrb[0].mxu0 %v339
        %v534 = vpop.f32.mrb[0].mxu0
        %v535 = vadd.f32 %v284, %v534
        %v536 = vpop.f32.mrb[0].mxu0
        %537 = vmatprep.mubr.f32.mxu0 0.0
        %538 = vmatmul.mubr.f32.gmra.mrb[0].mxu0 %v342
        %v539 = vpop.f32.mrb[0].mxu0
        %v540 = vadd.f32 %v284, %v539
        %v541 = vpop.f32.mrb[0].mxu0
        %542 = vmatprep.mubr.f32.mxu0 0.0
        %543 = vmatmul.mubr.f32.gmra.mrb[0].mxu0 %v345
        %v544 = vpop.f32.mrb[0].mxu0
        %v545 = vadd.f32 %v284, %v544
        %v546 = vpop.f32.mrb[0].mxu0
        %547 = vmatprep.mubr.f32.mxu0 0.0
        %548 = vmatmul.mubr.f32.gmra.mrb[0].mxu0 %v348
        %v549 = vpop.f32.mrb[0].mxu0
        %v550 = vadd.f32 %v284, %v549
        %v551 = vpop.f32.mrb[0].mxu0
        %552 = vmatprep.mubr.f32.mxu0 0.0
        %553 = vmatmul.mubr.f32.gmra.mrb[0].mxu0 %v351
        %v554 = vpop.f32.mrb[0].mxu0
        %v555 = vadd.f32 %v284, %v554
        %v556 = vpop.f32.mrb[0].mxu0
        %557 = vmatprep.mubr.f32.mxu0 0.0
        %558 = vmatmul.mubr.f32.gmra.mrb[0].mxu0 %v354
        %v559 = vpop.f32.mrb[0].mxu0
        %v560 = vadd.f32 %v284, %v559
        %v561 = vpop.f32.mrb[0].mxu0
        %562 = vmatprep.mubr.f32.mxu0 0.0
        %563 = vmatmul.mubr.f32.gmra.mrb[0].mxu0 %v357
        %v564 = vpop.f32.mrb[0].mxu0
        %v565 = vadd.f32 %v284, %v564
        %v566 = vpop.f32.mrb[0].mxu0
        %567 = vmatprep.mubr.f32.mxu0 0.0
        %568 = vmatmul.mubr.f32.gmra.mrb[0].mxu0 %v360
        %v569 = vpop.f32.mrb[0].mxu0
        %v570 = vadd.f32 %v284, %v569
        %v571 = vpop.f32.mrb[0].mxu0
        %572 = vmatprep.mubr.f32.mxu0 0.0
        %573 = vmatmul.mubr.f32.gmra.mrb[0].mxu0 %v363
        %v574 = vpop.f32.mrb[0].mxu0
        %v575 = vadd.f32 %v284, %v574
        %v576 = vpop.f32.mrb[0].mxu0
        %577 = vmatprep.mubr.f32.mxu0 0.0
        %578 = vmatmul.mubr.f32.gmra.mrb[0].mxu0 %v366
        %v579 = vpop.f32.mrb[0].mxu0
        %v580 = vadd.f32 %v284, %v579
        %v581 = vpop.f32.mrb[0].mxu0
        %582 = vmatprep.mubr.f32.mxu0 0.0
        %583 = vmatmul.mubr.f32.gmra.mrb[0].mxu0 %v369
        %v584 = vpop.f32.mrb[0].mxu0
        %v585 = vadd.f32 %v284, %v584
        %v586 = vpop.f32.mrb[0].mxu0
        %587 = vmatprep.mubr.f32.mxu0 0.0
        %588 = vmatmul.mubr.f32.gmra.mrb[0].mxu0 %v372
        %v589 = vpop.f32.mrb[0].mxu0
        %v590 = vadd.f32 %v284, %v589
        %v591 = vpop.f32.mrb[0].mxu0
        %592 = vmatprep.mubr.f32.mxu0 0.0
        %593 = vmatmul.mubr.f32.gmra.mrb[0].mxu0 %v375
        %v594 = vpop.f32.mrb[0].mxu0
        %v595 = vadd.f32 %v284, %v594
        %v596 = vpop.f32.mrb[0].mxu0
        %597 = vmatprep.mubr.f32.mxu0 0.0
        %598 = vmatmul.mubr.f32.gmra.mrb[0].mxu0 %v378
        %v599 = vpop.f32.mrb[0].mxu0
        %v600 = vadd.f32 %v284, %v599
        %v601 = vpop.f32.mrb[0].mxu0
        %602 = vmatprep.mubr.f32.mxu0 0.0
        %603 = vmatmul.mubr.f32.gmra.mrb[0].mxu0 %v381
        %v604 = vpop.f32.mrb[0].mxu0
        %v605 = vadd.f32 %v284, %v604
        %v606 = vpop.f32.mrb[0].mxu0
        %607 = vdwg.mxu0
        %v608 = vld [vmem:[%s2] sm:$0xff]
        %v609 = vld [vmem:[%s2 + $0x8] sm:$0xff]
        %v610 = vld [vmem:[%s2 + $0x10] sm:$0xff]
        %v611 = vld [vmem:[%s2 + $0x18] sm:$0xff]
        %v612 = vld [vmem:[%s2 + $0x20] sm:$0xff]
        %v613 = vld [vmem:[%s2 + $0x28] sm:$0xff]
        %v614 = vld [vmem:[%s2 + $0x30] sm:$0xff]
        %v615 = vld [vmem:[%s2 + $0x38] sm:$0xff]
        %v616 = vld [vmem:[%s2 + $0x40] sm:$0xff]
        %v617 = vld [vmem:[%s2 + $0x48] sm:$0xff]
        %v618 = vld [vmem:[%s2 + $0x50] sm:$0xff]
        %v619 = vld [vmem:[%s2 + $0x58] sm:$0xff]
        %v620 = vld [vmem:[%s2 + $0x60] sm:$0xff]
        %v621 = vld [vmem:[%s2 + $0x68] sm:$0xff]
        %v622 = vld [vmem:[%s2 + $0x70] sm:$0xff]
        %v623 = vld [vmem:[%s2 + $0x78] sm:$0xff]
        %p624 = scmp.ne.s32.totalorder %s18, 1
        %v625 = vld [vmem:[#allocation2] sm:$0xff]
        %626 = vmatprep.subr.mxu0 0.0
        %627 = vmatpush1.msra.mxu0 %v608
        %628 = vmatprep.subr.mxu0 0.0
        %629 = vmatpush1.msra.mxu0 %v609
        %630 = vmatprep.subr.mxu0 0.0
        %631 = vmatpush1.msra.mxu0 %v610
        %632 = vmatprep.subr.mxu0 0.0
        %633 = vmatpush1.msra.mxu0 %v611
        %634 = vmatprep.subr.mxu0 0.0
        %635 = vmatpush1.msra.mxu0 %v612
        %636 = vmatprep.subr.mxu0 0.0
        %637 = vmatpush1.msra.mxu0 %v613
        %638 = vmatprep.subr.mxu0 0.0
        %639 = vmatpush1.msra.mxu0 %v614
        %640 = vmatprep.subr.mxu0 0.0
        %641 = vmatpush1.msra.mxu0 %v615
        %642 = vmatprep.subr.mxu0 0.0
        %643 = vmatpush1.msra.mxu0 %v616
        %644 = vmatprep.subr.mxu0 0.0
        %645 = vmatpush1.msra.mxu0 %v617
        %646 = vmatprep.subr.mxu0 0.0
        %647 = vmatpush1.msra.mxu0 %v618
        %648 = vmatprep.subr.mxu0 0.0
        %649 = vmatpush1.msra.mxu0 %v619
        %650 = vmatprep.subr.mxu0 0.0
        %651 = vmatpush1.msra.mxu0 %v620
        %652 = vmatprep.subr.mxu0 0.0
        %653 = vmatpush1.msra.mxu0 %v621
        %654 = vmatprep.subr.mxu0 0.0
        %655 = vmatpush1.msra.mxu0 %v622
        %656 = vmatprep.subr.mxu0 0.0
        %657 = vmatpush1.msra.mxu0 %v623
        %658 = vmatprep.subr.mxu0 0.0
        %659 = vmatpush1.msra.mxu0 0.0
        %660 = vmatprep.subr.mxu0 0.0
        %661 = vmatpush1.msra.mxu0 0.0
        %662 = vmatprep.subr.mxu0 0.0
        %663 = vmatpush1.msra.mxu0 0.0
        %664 = vmatprep.subr.mxu0 0.0
        %665 = vmatpush1.msra.mxu0 0.0
        %666 = vmatprep.subr.mxu0 0.0
        %667 = vmatpush1.msra.mxu0 0.0
        %668 = vmatprep.subr.mxu0 0.0
        %669 = vmatpush1.msra.mxu0 0.0
        %670 = vmatprep.subr.mxu0 0.0
        %671 = vmatpush1.msra.mxu0 0.0
        %672 = vmatprep.subr.mxu0 0.0
        %673 = vmatpush1.msra.mxu0 0.0
        %674 = vmatprep.subr.mxu0 0.0
        %675 = vmatpush1.msra.mxu0 0.0
        %676 = vmatprep.subr.mxu0 0.0
        %677 = vmatpush1.msra.mxu0 0.0
        %678 = vmatprep.subr.mxu0 0.0
        %679 = vmatpush1.msra.mxu0 0.0
        %680 = vmatprep.subr.mxu0 0.0
        %681 = vmatpush1.msra.mxu0 0.0
        %682 = vmatprep.subr.mxu0 0.0
        %683 = vmatpush1.msra.mxu0 0.0
        %684 = vmatprep.subr.mxu0 0.0
        %685 = vmatpush1.msra.mxu0 0.0
        %686 = vmatprep.subr.mxu0 0.0
        %687 = vmatpush1.msra.mxu0 0.0
        %688 = vmatprep.subr.mxu0 0.0
        %689 = vmatpush1.msra.mxu0 0.0
        %690 = vmatprep.mubr.f32.mxu0 0.0
        %691 = vmatmul.mubr.f32.gmra.mrb[0].mxu0 %v625
        %v692 = vpop.f32.mrb[0].mxu0
        %v693 = vadd.f32 0.0, %v692
        %v694 = vpop.f32.mrb[0].mxu0
        %695 = vdwg.mxu0
        %v696 = vadd.f32 %v450, %v693
        %v697 = vtanh.pop %v696
        %698 = vmatprep.subr.mxu0 0.0
        %699 = vmatpush1.msra.mxu0 %v608
        %700 = vmatprep.subr.mxu0 0.0
        %701 = vmatpush1.msra.mxu0 %v609
        %702 = vmatprep.subr.mxu0 0.0
        %703 = vmatpush1.msra.mxu0 %v610
        %704 = vmatprep.subr.mxu0 0.0
        %705 = vmatpush1.msra.mxu0 %v611
        %706 = vmatprep.subr.mxu0 0.0
        %707 = vmatpush1.msra.mxu0 %v612
        %708 = vmatprep.subr.mxu0 0.0
        %709 = vmatpush1.msra.mxu0 %v613
        %710 = vmatprep.subr.mxu0 0.0
        %711 = vmatpush1.msra.mxu0 %v614
        %712 = vmatprep.subr.mxu0 0.0
        %713 = vmatpush1.msra.mxu0 %v615
        %714 = vmatprep.subr.mxu0 0.0
        %715 = vmatpush1.msra.mxu0 %v616
        %716 = vmatprep.subr.mxu0 0.0
        %717 = vmatpush1.msra.mxu0 %v617
        %718 = vmatprep.subr.mxu0 0.0
        %719 = vmatpush1.msra.mxu0 %v618
        %720 = vmatprep.subr.mxu0 0.0
        %721 = vmatpush1.msra.mxu0 %v619
        %722 = vmatprep.subr.mxu0 0.0
        %723 = vmatpush1.msra.mxu0 %v620
        %724 = vmatprep.subr.mxu0 0.0
        %725 = vmatpush1.msra.mxu0 %v621
        %726 = vmatprep.subr.mxu0 0.0
        %727 = vmatpush1.msra.mxu0 %v622
        %728 = vmatprep.subr.mxu0 0.0
        %729 = vmatpush1.msra.mxu0 %v623
        %730 = vmatprep.subr.mxu0 0.0
        %731 = vmatpush1.msra.mxu0 0.0
        %732 = vmatprep.subr.mxu0 0.0
        %733 = vmatpush1.msra.mxu0 0.0
        %734 = vmatprep.subr.mxu0 0.0
        %735 = vmatpush1.msra.mxu0 0.0
        %736 = vmatprep.subr.mxu0 0.0
        %737 = vmatpush1.msra.mxu0 0.0
        %738 = vmatprep.subr.mxu0 0.0
        %739 = vmatpush1.msra.mxu0 0.0
        %740 = vmatprep.subr.mxu0 0.0
        %741 = vmatpush1.msra.mxu0 0.0
        %742 = vmatprep.subr.mxu0 0.0
        %743 = vmatpush1.msra.mxu0 0.0
        %744 = vmatprep.subr.mxu0 0.0
        %745 = vmatpush1.msra.mxu0 0.0
        %746 = vmatprep.subr.mxu0 0.0
        %747 = vmatpush1.msra.mxu0 0.0
        %748 = vmatprep.subr.mxu0 0.0
        %749 = vmatpush1.msra.mxu0 0.0
        %750 = vmatprep.subr.mxu0 0.0
        %751 = vmatpush1.msra.mxu0 0.0
        %752 = vmatprep.subr.mxu0 0.0
        %753 = vmatpush1.msra.mxu0 0.0
        %754 = vmatprep.subr.mxu0 0.0
        %755 = vmatpush1.msra.mxu0 0.0
        %756 = vmatprep.subr.mxu0 0.0
        %757 = vmatpush1.msra.mxu0 0.0
        %758 = vmatprep.subr.mxu0 0.0
        %759 = vmatpush1.msra.mxu0 0.0
        %760 = vmatprep.subr.mxu0 0.0
        %761 = vmatpush1.msra.mxu0 0.0
        %762 = vmatprep.mubr.f32.mxu0 0.0
        %763 = vmatmul.mubr.f32.gmra.mrb[0].mxu0 %v697
        %v764 = vpop.f32.mrb[0].mxu0
        %v765 = vadd.f32 0.0, %v764
        %v766 = vpop.f32.mrb[0].mxu0
        %767 = vdwg.mxu0
        %v768 = vadd.f32 %v455, %v765
        %v769 = vtanh.pop %v768
        %770 = vmatprep.subr.mxu0 0.0
        %771 = vmatpush1.msra.mxu0 %v608
        %772 = vmatprep.subr.mxu0 0.0
        %773 = vmatpush1.msra.mxu0 %v609
        %774 = vmatprep.subr.mxu0 0.0
        %775 = vmatpush1.msra.mxu0 %v610
        %776 = vmatprep.subr.mxu0 0.0
        %777 = vmatpush1.msra.mxu0 %v611
        %778 = vmatprep.subr.mxu0 0.0
        %779 = vmatpush1.msra.mxu0 %v612
        %780 = vmatprep.subr.mxu0 0.0
        %781 = vmatpush1.msra.mxu0 %v613
        %782 = vmatprep.subr.mxu0 0.0
        %783 = vmatpush1.msra.mxu0 %v614
        %784 = vmatprep.subr.mxu0 0.0
        %785 = vmatpush1.msra.mxu0 %v615
        %786 = vmatprep.subr.mxu0 0.0
        %787 = vmatpush1.msra.mxu0 %v616
        %788 = vmatprep.subr.mxu0 0.0
        %789 = vmatpush1.msra.mxu0 %v617
        %790 = vmatprep.subr.mxu0 0.0
        %791 = vmatpush1.msra.mxu0 %v618
        %792 = vmatprep.subr.mxu0 0.0
        %793 = vmatpush1.msra.mxu0 %v619
        %794 = vmatprep.subr.mxu0 0.0
        %795 = vmatpush1.msra.mxu0 %v620
        %796 = vmatprep.subr.mxu0 0.0
        %797 = vmatpush1.msra.mxu0 %v621
        %798 = vmatprep.subr.mxu0 0.0
        %799 = vmatpush1.msra.mxu0 %v622
        %800 = vmatprep.subr.mxu0 0.0
        %801 = vmatpush1.msra.mxu0 %v623
        %802 = vmatprep.subr.mxu0 0.0
        %803 = vmatpush1.msra.mxu0 0.0
        %804 = vmatprep.subr.mxu0 0.0
        %805 = vmatpush1.msra.mxu0 0.0
        %806 = vmatprep.subr.mxu0 0.0
        %807 = vmatpush1.msra.mxu0 0.0
        %808 = vmatprep.subr.mxu0 0.0
        %809 = vmatpush1.msra.mxu0 0.0
        %810 = vmatprep.subr.mxu0 0.0
        %811 = vmatpush1.msra.mxu0 0.0
        %812 = vmatprep.subr.mxu0 0.0
        %813 = vmatpush1.msra.mxu0 0.0
        %814 = vmatprep.subr.mxu0 0.0
        %815 = vmatpush1.msra.mxu0 0.0
        %816 = vmatprep.subr.mxu0 0.0
        %817 = vmatpush1.msra.mxu0 0.0
        %818 = vmatprep.subr.mxu0 0.0
        %819 = vmatpush1.msra.mxu0 0.0
        %820 = vmatprep.subr.mxu0 0.0
        %821 = vmatpush1.msra.mxu0 0.0
        %822 = vmatprep.subr.mxu0 0.0
        %823 = vmatpush1.msra.mxu0 0.0
        %824 = vmatprep.subr.mxu0 0.0
        %825 = vmatpush1.msra.mxu0 0.0
        %826 = vmatprep.subr.mxu0 0.0
        %827 = vmatpush1.msra.mxu0 0.0
        %828 = vmatprep.subr.mxu0 0.0
        %829 = vmatpush1.msra.mxu0 0.0
        %830 = vmatprep.subr.mxu0 0.0
        %831 = vmatpush1.msra.mxu0 0.0
        %832 = vmatprep.subr.mxu0 0.0
        %833 = vmatpush1.msra.mxu0 0.0
        %834 = vmatprep.mubr.f32.mxu0 0.0
        %835 = vmatmul.mubr.f32.gmra.mrb[0].mxu0 %v769
        %v836 = vpop.f32.mrb[0].mxu0
        %v837 = vadd.f32 0.0, %v836
        %v838 = vpop.f32.mrb[0].mxu0
        %839 = vdwg.mxu0
        %v840 = vadd.f32 %v460, %v837
        %v841 = vtanh.pop %v840
        %842 = vmatprep.subr.mxu0 0.0
        %843 = vmatpush1.msra.mxu0 %v608
        %844 = vmatprep.subr.mxu0 0.0
        %845 = vmatpush1.msra.mxu0 %v609
        %846 = vmatprep.subr.mxu0 0.0
        %847 = vmatpush1.msra.mxu0 %v610
        %848 = vmatprep.subr.mxu0 0.0
        %849 = vmatpush1.msra.mxu0 %v611
        %850 = vmatprep.subr.mxu0 0.0
        %851 = vmatpush1.msra.mxu0 %v612
        %852 = vmatprep.subr.mxu0 0.0
        %853 = vmatpush1.msra.mxu0 %v613
        %854 = vmatprep.subr.mxu0 0.0
        %855 = vmatpush1.msra.mxu0 %v614
        %856 = vmatprep.subr.mxu0 0.0
        %857 = vmatpush1.msra.mxu0 %v615
        %858 = vmatprep.subr.mxu0 0.0
        %859 = vmatpush1.msra.mxu0 %v616
        %860 = vmatprep.subr.mxu0 0.0
        %861 = vmatpush1.msra.mxu0 %v617
        %862 = vmatprep.subr.mxu0 0.0
        %863 = vmatpush1.msra.mxu0 %v618
        %864 = vmatprep.subr.mxu0 0.0
        %865 = vmatpush1.msra.mxu0 %v619
        %866 = vmatprep.subr.mxu0 0.0
        %867 = vmatpush1.msra.mxu0 %v620
        %868 = vmatprep.subr.mxu0 0.0
        %869 = vmatpush1.msra.mxu0 %v621
        %870 = vmatprep.subr.mxu0 0.0
        %871 = vmatpush1.msra.mxu0 %v622
        %872 = vmatprep.subr.mxu0 0.0
        %873 = vmatpush1.msra.mxu0 %v623
        %874 = vmatprep.subr.mxu0 0.0
        %875 = vmatpush1.msra.mxu0 0.0
        %876 = vmatprep.subr.mxu0 0.0
        %877 = vmatpush1.msra.mxu0 0.0
        %878 = vmatprep.subr.mxu0 0.0
        %879 = vmatpush1.msra.mxu0 0.0
        %880 = vmatprep.subr.mxu0 0.0
        %881 = vmatpush1.msra.mxu0 0.0
        %882 = vmatprep.subr.mxu0 0.0
        %883 = vmatpush1.msra.mxu0 0.0
        %884 = vmatprep.subr.mxu0 0.0
        %885 = vmatpush1.msra.mxu0 0.0
        %886 = vmatprep.subr.mxu0 0.0
        %887 = vmatpush1.msra.mxu0 0.0
        %888 = vmatprep.subr.mxu0 0.0
        %889 = vmatpush1.msra.mxu0 0.0
        %890 = vmatprep.subr.mxu0 0.0
        %891 = vmatpush1.msra.mxu0 0.0
        %892 = vmatprep.subr.mxu0 0.0
        %893 = vmatpush1.msra.mxu0 0.0
        %894 = vmatprep.subr.mxu0 0.0
        %895 = vmatpush1.msra.mxu0 0.0
        %896 = vmatprep.subr.mxu0 0.0
        %897 = vmatpush1.msra.mxu0 0.0
        %898 = vmatprep.subr.mxu0 0.0
        %899 = vmatpush1.msra.mxu0 0.0
        %900 = vmatprep.subr.mxu0 0.0
        %901 = vmatpush1.msra.mxu0 0.0
        %902 = vmatprep.subr.mxu0 0.0
        %903 = vmatpush1.msra.mxu0 0.0
        %904 = vmatprep.subr.mxu0 0.0
        %905 = vmatpush1.msra.mxu0 0.0
        %906 = vmatprep.mubr.f32.mxu0 0.0
        %907 = vmatmul.mubr.f32.gmra.mrb[0].mxu0 %v841
        %v908 = vpop.f32.mrb[0].mxu0
        %v909 = vadd.f32 0.0, %v908
        %v910 = vpop.f32.mrb[0].mxu0
        %911 = vdwg.mxu0
        %v912 = vadd.f32 %v465, %v909
        %v913 = vtanh.pop %v912
        %914 = vmatprep.subr.mxu0 0.0
        %915 = vmatpush1.msra.mxu0 %v608
        %916 = vmatprep.subr.mxu0 0.0
        %917 = vmatpush1.msra.mxu0 %v609
        %918 = vmatprep.subr.mxu0 0.0
        %919 = vmatpush1.msra.mxu0 %v610
        %920 = vmatprep.subr.mxu0 0.0
        %921 = vmatpush1.msra.mxu0 %v611
        %922 = vmatprep.subr.mxu0 0.0
        %923 = vmatpush1.msra.mxu0 %v612
        %924 = vmatprep.subr.mxu0 0.0
        %925 = vmatpush1.msra.mxu0 %v613
        %926 = vmatprep.subr.mxu0 0.0
        %927 = vmatpush1.msra.mxu0 %v614
        %928 = vmatprep.subr.mxu0 0.0
        %929 = vmatpush1.msra.mxu0 %v615
        %930 = vmatprep.subr.mxu0 0.0
        %931 = vmatpush1.msra.mxu0 %v616
        %932 = vmatprep.subr.mxu0 0.0
        %933 = vmatpush1.msra.mxu0 %v617
        %934 = vmatprep.subr.mxu0 0.0
        %935 = vmatpush1.msra.mxu0 %v618
        %936 = vmatprep.subr.mxu0 0.0
        %937 = vmatpush1.msra.mxu0 %v619
        %938 = vmatprep.subr.mxu0 0.0
        %939 = vmatpush1.msra.mxu0 %v620
        %940 = vmatprep.subr.mxu0 0.0
        %941 = vmatpush1.msra.mxu0 %v621
        %942 = vmatprep.subr.mxu0 0.0
        %943 = vmatpush1.msra.mxu0 %v622
        %944 = vmatprep.subr.mxu0 0.0
        %945 = vmatpush1.msra.mxu0 %v623
        %946 = vmatprep.subr.mxu0 0.0
        %947 = vmatpush1.msra.mxu0 0.0
        %948 = vmatprep.subr.mxu0 0.0
        %949 = vmatpush1.msra.mxu0 0.0
        %950 = vmatprep.subr.mxu0 0.0
        %951 = vmatpush1.msra.mxu0 0.0
        %952 = vmatprep.subr.mxu0 0.0
        %953 = vmatpush1.msra.mxu0 0.0
        %954 = vmatprep.subr.mxu0 0.0
        %955 = vmatpush1.msra.mxu0 0.0
        %956 = vmatprep.subr.mxu0 0.0
        %957 = vmatpush1.msra.mxu0 0.0
        %958 = vmatprep.subr.mxu0 0.0
        %959 = vmatpush1.msra.mxu0 0.0
        %960 = vmatprep.subr.mxu0 0.0
        %961 = vmatpush1.msra.mxu0 0.0
        %962 = vmatprep.subr.mxu0 0.0
        %963 = vmatpush1.msra.mxu0 0.0
        %964 = vmatprep.subr.mxu0 0.0
        %965 = vmatpush1.msra.mxu0 0.0
        %966 = vmatprep.subr.mxu0 0.0
        %967 = vmatpush1.msra.mxu0 0.0
        %968 = vmatprep.subr.mxu0 0.0
        %969 = vmatpush1.msra.mxu0 0.0
        %970 = vmatprep.subr.mxu0 0.0
        %971 = vmatpush1.msra.mxu0 0.0
        %972 = vmatprep.subr.mxu0 0.0
        %973 = vmatpush1.msra.mxu0 0.0
        %974 = vmatprep.subr.mxu0 0.0
        %975 = vmatpush1.msra.mxu0 0.0
        %976 = vmatprep.subr.mxu0 0.0
        %977 = vmatpush1.msra.mxu0 0.0
        %978 = vmatprep.mubr.f32.mxu0 0.0
        %979 = vmatmul.mubr.f32.gmra.mrb[0].mxu0 %v913
        %v980 = vpop.f32.mrb[0].mxu0
        %v981 = vadd.f32 0.0, %v980
        %v982 = vpop.f32.mrb[0].mxu0
        %983 = vdwg.mxu0
        %v984 = vadd.f32 %v470, %v981
        %v985 = vtanh.pop %v984
        %986 = vmatprep.subr.mxu0 0.0
        %987 = vmatpush1.msra.mxu0 %v608
        %988 = vmatprep.subr.mxu0 0.0
        %989 = vmatpush1.msra.mxu0 %v609
        %990 = vmatprep.subr.mxu0 0.0
        %991 = vmatpush1.msra.mxu0 %v610
        %992 = vmatprep.subr.mxu0 0.0
        %993 = vmatpush1.msra.mxu0 %v611
        %994 = vmatprep.subr.mxu0 0.0
        %995 = vmatpush1.msra.mxu0 %v612
        %996 = vmatprep.subr.mxu0 0.0
        %997 = vmatpush1.msra.mxu0 %v613
        %998 = vmatprep.subr.mxu0 0.0
        %999 = vmatpush1.msra.mxu0 %v614
        %1000 = vmatprep.subr.mxu0 0.0
        %1001 = vmatpush1.msra.mxu0 %v615
        %1002 = vmatprep.subr.mxu0 0.0
        %1003 = vmatpush1.msra.mxu0 %v616
        %1004 = vmatprep.subr.mxu0 0.0
        %1005 = vmatpush1.msra.mxu0 %v617
        %1006 = vmatprep.subr.mxu0 0.0
        %1007 = vmatpush1.msra.mxu0 %v618
        %1008 = vmatprep.subr.mxu0 0.0
        %1009 = vmatpush1.msra.mxu0 %v619
        %1010 = vmatprep.subr.mxu0 0.0
        %1011 = vmatpush1.msra.mxu0 %v620
        %1012 = vmatprep.subr.mxu0 0.0
        %1013 = vmatpush1.msra.mxu0 %v621
        %1014 = vmatprep.subr.mxu0 0.0
        %1015 = vmatpush1.msra.mxu0 %v622
        %1016 = vmatprep.subr.mxu0 0.0
        %1017 = vmatpush1.msra.mxu0 %v623
        %1018 = vmatprep.subr.mxu0 0.0
        %1019 = vmatpush1.msra.mxu0 0.0
        %1020 = vmatprep.subr.mxu0 0.0
        %1021 = vmatpush1.msra.mxu0 0.0
        %1022 = vmatprep.subr.mxu0 0.0
        %1023 = vmatpush1.msra.mxu0 0.0
        %1024 = vmatprep.subr.mxu0 0.0
        %1025 = vmatpush1.msra.mxu0 0.0
        %1026 = vmatprep.subr.mxu0 0.0
        %1027 = vmatpush1.msra.mxu0 0.0
        %1028 = vmatprep.subr.mxu0 0.0
        %1029 = vmatpush1.msra.mxu0 0.0
        %1030 = vmatprep.subr.mxu0 0.0
        %1031 = vmatpush1.msra.mxu0 0.0
        %1032 = vmatprep.subr.mxu0 0.0
        %1033 = vmatpush1.msra.mxu0 0.0
        %1034 = vmatprep.subr.mxu0 0.0
        %1035 = vmatpush1.msra.mxu0 0.0
        %1036 = vmatprep.subr.mxu0 0.0
        %1037 = vmatpush1.msra.mxu0 0.0
        %1038 = vmatprep.subr.mxu0 0.0
        %1039 = vmatpush1.msra.mxu0 0.0
        %1040 = vmatprep.subr.mxu0 0.0
        %1041 = vmatpush1.msra.mxu0 0.0
        %1042 = vmatprep.subr.mxu0 0.0
        %1043 = vmatpush1.msra.mxu0 0.0
        %1044 = vmatprep.subr.mxu0 0.0
        %1045 = vmatpush1.msra.mxu0 0.0
        %1046 = vmatprep.subr.mxu0 0.0
        %1047 = vmatpush1.msra.mxu0 0.0
        %1048 = vmatprep.subr.mxu0 0.0
        %1049 = vmatpush1.msra.mxu0 0.0
        %1050 = vmatprep.mubr.f32.mxu0 0.0
        %1051 = vmatmul.mubr.f32.gmra.mrb[0].mxu0 %v985
        %v1052 = vpop.f32.mrb[0].mxu0
        %v1053 = vadd.f32 0.0, %v1052
        %v1054 = vpop.f32.mrb[0].mxu0
        %1055 = vdwg.mxu0
        %v1056 = vadd.f32 %v475, %v1053
        %v1057 = vtanh.pop %v1056
        %1058 = vmatprep.subr.mxu0 0.0
        %1059 = vmatpush1.msra.mxu0 %v608
        %1060 = vmatprep.subr.mxu0 0.0
        %1061 = vmatpush1.msra.mxu0 %v609
        %1062 = vmatprep.subr.mxu0 0.0
        %1063 = vmatpush1.msra.mxu0 %v610
        %1064 = vmatprep.subr.mxu0 0.0
        %1065 = vmatpush1.msra.mxu0 %v611
        %1066 = vmatprep.subr.mxu0 0.0
        %1067 = vmatpush1.msra.mxu0 %v612
        %1068 = vmatprep.subr.mxu0 0.0
        %1069 = vmatpush1.msra.mxu0 %v613
        %1070 = vmatprep.subr.mxu0 0.0
        %1071 = vmatpush1.msra.mxu0 %v614
        %1072 = vmatprep.subr.mxu0 0.0
        %1073 = vmatpush1.msra.mxu0 %v615
        %1074 = vmatprep.subr.mxu0 0.0
        %1075 = vmatpush1.msra.mxu0 %v616
        %1076 = vmatprep.subr.mxu0 0.0
        %1077 = vmatpush1.msra.mxu0 %v617
        %1078 = vmatprep.subr.mxu0 0.0
        %1079 = vmatpush1.msra.mxu0 %v618
        %1080 = vmatprep.subr.mxu0 0.0
        %1081 = vmatpush1.msra.mxu0 %v619
        %1082 = vmatprep.subr.mxu0 0.0
        %1083 = vmatpush1.msra.mxu0 %v620
        %1084 = vmatprep.subr.mxu0 0.0
        %1085 = vmatpush1.msra.mxu0 %v621
        %1086 = vmatprep.subr.mxu0 0.0
        %1087 = vmatpush1.msra.mxu0 %v622
        %1088 = vmatprep.subr.mxu0 0.0
        %1089 = vmatpush1.msra.mxu0 %v623
        %1090 = vmatprep.subr.mxu0 0.0
        %1091 = vmatpush1.msra.mxu0 0.0
        %1092 = vmatprep.subr.mxu0 0.0
        %1093 = vmatpush1.msra.mxu0 0.0
        %1094 = vmatprep.subr.mxu0 0.0
        %1095 = vmatpush1.msra.mxu0 0.0
        %1096 = vmatprep.subr.mxu0 0.0
        %1097 = vmatpush1.msra.mxu0 0.0
        %1098 = vmatprep.subr.mxu0 0.0
        %1099 = vmatpush1.msra.mxu0 0.0
        %1100 = vmatprep.subr.mxu0 0.0
        %1101 = vmatpush1.msra.mxu0 0.0
        %1102 = vmatprep.subr.mxu0 0.0
        %1103 = vmatpush1.msra.mxu0 0.0
        %1104 = vmatprep.subr.mxu0 0.0
        %1105 = vmatpush1.msra.mxu0 0.0
        %1106 = vmatprep.subr.mxu0 0.0
        %1107 = vmatpush1.msra.mxu0 0.0
        %1108 = vmatprep.subr.mxu0 0.0
        %1109 = vmatpush1.msra.mxu0 0.0
        %1110 = vmatprep.subr.mxu0 0.0
        %1111 = vmatpush1.msra.mxu0 0.0
        %1112 = vmatprep.subr.mxu0 0.0
        %1113 = vmatpush1.msra.mxu0 0.0
        %1114 = vmatprep.subr.mxu0 0.0
        %1115 = vmatpush1.msra.mxu0 0.0
        %1116 = vmatprep.subr.mxu0 0.0
        %1117 = vmatpush1.msra.mxu0 0.0
        %1118 = vmatprep.subr.mxu0 0.0
        %1119 = vmatpush1.msra.mxu0 0.0
        %1120 = vmatprep.subr.mxu0 0.0
        %1121 = vmatpush1.msra.mxu0 0.0
        %1122 = vmatprep.mubr.f32.mxu0 0.0
        %1123 = vmatmul.mubr.f32.gmra.mrb[0].mxu0 %v1057
        %v1124 = vpop.f32.mrb[0].mxu0
        %v1125 = vadd.f32 0.0, %v1124
        %v1126 = vpop.f32.mrb[0].mxu0
        %1127 = vdwg.mxu0
        %v1128 = vadd.f32 %v480, %v1125
        %v1129 = vtanh.pop %v1128
        %1130 = vmatprep.subr.mxu0 0.0
        %1131 = vmatpush1.msra.mxu0 %v608
        %1132 = vmatprep.subr.mxu0 0.0
        %1133 = vmatpush1.msra.mxu0 %v609
        %1134 = vmatprep.subr.mxu0 0.0
        %1135 = vmatpush1.msra.mxu0 %v610
        %1136 = vmatprep.subr.mxu0 0.0
        %1137 = vmatpush1.msra.mxu0 %v611
        %1138 = vmatprep.subr.mxu0 0.0
        %1139 = vmatpush1.msra.mxu0 %v612
        %1140 = vmatprep.subr.mxu0 0.0
        %1141 = vmatpush1.msra.mxu0 %v613
        %1142 = vmatprep.subr.mxu0 0.0
        %1143 = vmatpush1.msra.mxu0 %v614
        %1144 = vmatprep.subr.mxu0 0.0
        %1145 = vmatpush1.msra.mxu0 %v615
        %1146 = vmatprep.subr.mxu0 0.0
        %1147 = vmatpush1.msra.mxu0 %v616
        %1148 = vmatprep.subr.mxu0 0.0
        %1149 = vmatpush1.msra.mxu0 %v617
        %1150 = vmatprep.subr.mxu0 0.0
        %1151 = vmatpush1.msra.mxu0 %v618
        %1152 = vmatprep.subr.mxu0 0.0
        %1153 = vmatpush1.msra.mxu0 %v619
        %1154 = vmatprep.subr.mxu0 0.0
        %1155 = vmatpush1.msra.mxu0 %v620
        %1156 = vmatprep.subr.mxu0 0.0
        %1157 = vmatpush1.msra.mxu0 %v621
        %1158 = vmatprep.subr.mxu0 0.0
        %1159 = vmatpush1.msra.mxu0 %v622
        %1160 = vmatprep.subr.mxu0 0.0
        %1161 = vmatpush1.msra.mxu0 %v623
        %1162 = vmatprep.subr.mxu0 0.0
        %1163 = vmatpush1.msra.mxu0 0.0
        %1164 = vmatprep.subr.mxu0 0.0
        %1165 = vmatpush1.msra.mxu0 0.0
        %1166 = vmatprep.subr.mxu0 0.0
        %1167 = vmatpush1.msra.mxu0 0.0
        %1168 = vmatprep.subr.mxu0 0.0
        %1169 = vmatpush1.msra.mxu0 0.0
        %1170 = vmatprep.subr.mxu0 0.0
        %1171 = vmatpush1.msra.mxu0 0.0
        %1172 = vmatprep.subr.mxu0 0.0
        %1173 = vmatpush1.msra.mxu0 0.0
        %1174 = vmatprep.subr.mxu0 0.0
        %1175 = vmatpush1.msra.mxu0 0.0
        %1176 = vmatprep.subr.mxu0 0.0
        %1177 = vmatpush1.msra.mxu0 0.0
        %1178 = vmatprep.subr.mxu0 0.0
        %1179 = vmatpush1.msra.mxu0 0.0
        %1180 = vmatprep.subr.mxu0 0.0
        %1181 = vmatpush1.msra.mxu0 0.0
        %1182 = vmatprep.subr.mxu0 0.0
        %1183 = vmatpush1.msra.mxu0 0.0
        %1184 = vmatprep.subr.mxu0 0.0
        %1185 = vmatpush1.msra.mxu0 0.0
        %1186 = vmatprep.subr.mxu0 0.0
        %1187 = vmatpush1.msra.mxu0 0.0
        %1188 = vmatprep.subr.mxu0 0.0
        %1189 = vmatpush1.msra.mxu0 0.0
        %1190 = vmatprep.subr.mxu0 0.0
        %1191 = vmatpush1.msra.mxu0 0.0
        %1192 = vmatprep.subr.mxu0 0.0
        %1193 = vmatpush1.msra.mxu0 0.0
        %1194 = vmatprep.mubr.f32.mxu0 0.0
        %1195 = vmatmul.mubr.f32.gmra.mrb[0].mxu0 %v1129
        %v1196 = vpop.f32.mrb[0].mxu0
        %v1197 = vadd.f32 0.0, %v1196
        %v1198 = vpop.f32.mrb[0].mxu0
        %1199 = vdwg.mxu0
        %v1200 = vadd.f32 %v485, %v1197
        %v1201 = vtanh.pop %v1200
        %1202 = vmatprep.subr.mxu0 0.0
        %1203 = vmatpush1.msra.mxu0 %v608
        %1204 = vmatprep.subr.mxu0 0.0
        %1205 = vmatpush1.msra.mxu0 %v609
        %1206 = vmatprep.subr.mxu0 0.0
        %1207 = vmatpush1.msra.mxu0 %v610
        %1208 = vmatprep.subr.mxu0 0.0
        %1209 = vmatpush1.msra.mxu0 %v611
        %1210 = vmatprep.subr.mxu0 0.0
        %1211 = vmatpush1.msra.mxu0 %v612
        %1212 = vmatprep.subr.mxu0 0.0
        %1213 = vmatpush1.msra.mxu0 %v613
        %1214 = vmatprep.subr.mxu0 0.0
        %1215 = vmatpush1.msra.mxu0 %v614
        %1216 = vmatprep.subr.mxu0 0.0
        %1217 = vmatpush1.msra.mxu0 %v615
        %1218 = vmatprep.subr.mxu0 0.0
        %1219 = vmatpush1.msra.mxu0 %v616
        %1220 = vmatprep.subr.mxu0 0.0
        %1221 = vmatpush1.msra.mxu0 %v617
        %1222 = vmatprep.subr.mxu0 0.0
        %1223 = vmatpush1.msra.mxu0 %v618
        %1224 = vmatprep.subr.mxu0 0.0
        %1225 = vmatpush1.msra.mxu0 %v619
        %1226 = vmatprep.subr.mxu0 0.0
        %1227 = vmatpush1.msra.mxu0 %v620
        %1228 = vmatprep.subr.mxu0 0.0
        %1229 = vmatpush1.msra.mxu0 %v621
        %1230 = vmatprep.subr.mxu0 0.0
        %1231 = vmatpush1.msra.mxu0 %v622
        %1232 = vmatprep.subr.mxu0 0.0
        %1233 = vmatpush1.msra.mxu0 %v623
        %1234 = vmatprep.subr.mxu0 0.0
        %1235 = vmatpush1.msra.mxu0 0.0
        %1236 = vmatprep.subr.mxu0 0.0
        %1237 = vmatpush1.msra.mxu0 0.0
        %1238 = vmatprep.subr.mxu0 0.0
        %1239 = vmatpush1.msra.mxu0 0.0
        %1240 = vmatprep.subr.mxu0 0.0
        %1241 = vmatpush1.msra.mxu0 0.0
        %1242 = vmatprep.subr.mxu0 0.0
        %1243 = vmatpush1.msra.mxu0 0.0
        %1244 = vmatprep.subr.mxu0 0.0
        %1245 = vmatpush1.msra.mxu0 0.0
        %1246 = vmatprep.subr.mxu0 0.0
        %1247 = vmatpush1.msra.mxu0 0.0
        %1248 = vmatprep.subr.mxu0 0.0
        %1249 = vmatpush1.msra.mxu0 0.0
        %1250 = vmatprep.subr.mxu0 0.0
        %1251 = vmatpush1.msra.mxu0 0.0
        %1252 = vmatprep.subr.mxu0 0.0
        %1253 = vmatpush1.msra.mxu0 0.0
        %1254 = vmatprep.subr.mxu0 0.0
        %1255 = vmatpush1.msra.mxu0 0.0
        %1256 = vmatprep.subr.mxu0 0.0
        %1257 = vmatpush1.msra.mxu0 0.0
        %1258 = vmatprep.subr.mxu0 0.0
        %1259 = vmatpush1.msra.mxu0 0.0
        %1260 = vmatprep.subr.mxu0 0.0
        %1261 = vmatpush1.msra.mxu0 0.0
        %1262 = vmatprep.subr.mxu0 0.0
        %1263 = vmatpush1.msra.mxu0 0.0
        %1264 = vmatprep.subr.mxu0 0.0
        %1265 = vmatpush1.msra.mxu0 0.0
        %1266 = vmatprep.mubr.f32.mxu0 0.0
        %1267 = vmatmul.mubr.f32.gmra.mrb[0].mxu0 %v1201
        %v1268 = vpop.f32.mrb[0].mxu0
        %v1269 = vadd.f32 0.0, %v1268
        %v1270 = vpop.f32.mrb[0].mxu0
        %1271 = vdwg.mxu0
        %v1272 = vadd.f32 %v490, %v1269
        %v1273 = vtanh.pop %v1272
        %s1274 = scalar_select %p624, 1, 0
        %v1275 = vstv %s1274
        %vm1276 = vcmp.eq.s32.totalorder %v1275, 1
        %v1277 = vsel %vm1276, %v1273, %v1201
        %1278 = vmatprep.subr.mxu0 0.0
        %1279 = vmatpush1.msra.mxu0 %v608
        %1280 = vmatprep.subr.mxu0 0.0
        %1281 = vmatpush1.msra.mxu0 %v609
        %1282 = vmatprep.subr.mxu0 0.0
        %1283 = vmatpush1.msra.mxu0 %v610
        %1284 = vmatprep.subr.mxu0 0.0
        %1285 = vmatpush1.msra.mxu0 %v611
        %1286 = vmatprep.subr.mxu0 0.0
        %1287 = vmatpush1.msra.mxu0 %v612
        %1288 = vmatprep.subr.mxu0 0.0
        %1289 = vmatpush1.msra.mxu0 %v613
        %1290 = vmatprep.subr.mxu0 0.0
        %1291 = vmatpush1.msra.mxu0 %v614
        %1292 = vmatprep.subr.mxu0 0.0
        %1293 = vmatpush1.msra.mxu0 %v615
        %1294 = vmatprep.subr.mxu0 0.0
        %1295 = vmatpush1.msra.mxu0 %v616
        %1296 = vmatprep.subr.mxu0 0.0
        %1297 = vmatpush1.msra.mxu0 %v617
        %1298 = vmatprep.subr.mxu0 0.0
        %1299 = vmatpush1.msra.mxu0 %v618
        %1300 = vmatprep.subr.mxu0 0.0
        %1301 = vmatpush1.msra.mxu0 %v619
        %1302 = vmatprep.subr.mxu0 0.0
        %1303 = vmatpush1.msra.mxu0 %v620
        %1304 = vmatprep.subr.mxu0 0.0
        %1305 = vmatpush1.msra.mxu0 %v621
        %1306 = vmatprep.subr.mxu0 0.0
        %1307 = vmatpush1.msra.mxu0 %v622
        %1308 = vmatprep.subr.mxu0 0.0
        %1309 = vmatpush1.msra.mxu0 %v623
        %1310 = vmatprep.subr.mxu0 0.0
        %1311 = vmatpush1.msra.mxu0 0.0
        %1312 = vmatprep.subr.mxu0 0.0
        %1313 = vmatpush1.msra.mxu0 0.0
        %1314 = vmatprep.subr.mxu0 0.0
        %1315 = vmatpush1.msra.mxu0 0.0
        %1316 = vmatprep.subr.mxu0 0.0
        %1317 = vmatpush1.msra.mxu0 0.0
        %1318 = vmatprep.subr.mxu0 0.0
        %1319 = vmatpush1.msra.mxu0 0.0
        %1320 = vmatprep.subr.mxu0 0.0
        %1321 = vmatpush1.msra.mxu0 0.0
        %1322 = vmatprep.subr.mxu0 0.0
        %1323 = vmatpush1.msra.mxu0 0.0
        %1324 = vmatprep.subr.mxu0 0.0
        %1325 = vmatpush1.msra.mxu0 0.0
        %1326 = vmatprep.subr.mxu0 0.0
        %1327 = vmatpush1.msra.mxu0 0.0
        %1328 = vmatprep.subr.mxu0 0.0
        %1329 = vmatpush1.msra.mxu0 0.0
        %1330 = vmatprep.subr.mxu0 0.0
        %1331 = vmatpush1.msra.mxu0 0.0
        %1332 = vmatprep.subr.mxu0 0.0
        %1333 = vmatpush1.msra.mxu0 0.0
        %1334 = vmatprep.subr.mxu0 0.0
        %1335 = vmatpush1.msra.mxu0 0.0
        %1336 = vmatprep.subr.mxu0 0.0
        %1337 = vmatpush1.msra.mxu0 0.0
        %1338 = vmatprep.subr.mxu0 0.0
        %1339 = vmatpush1.msra.mxu0 0.0
        %1340 = vmatprep.subr.mxu0 0.0
        %1341 = vmatpush1.msra.mxu0 0.0
        %1342 = vmatprep.mubr.f32.mxu0 0.0
        %1343 = vmatmul.mubr.f32.gmra.mrb[0].mxu0 %v1277
        %v1344 = vpop.f32.mrb[0].mxu0
        %v1345 = vadd.f32 0.0, %v1344
        %v1346 = vpop.f32.mrb[0].mxu0
        %1347 = vdwg.mxu0
        %v1348 = vadd.f32 %v495, %v1345
        %v1349 = vtanh.pop %v1348
        %v1350 = vsel %vm1276, %v1349, %v1201
        %1351 = vmatprep.subr.mxu0 0.0
        %1352 = vmatpush1.msra.mxu0 %v608
        %1353 = vmatprep.subr.mxu0 0.0
        %1354 = vmatpush1.msra.mxu0 %v609
        %1355 = vmatprep.subr.mxu0 0.0
        %1356 = vmatpush1.msra.mxu0 %v610
        %1357 = vmatprep.subr.mxu0 0.0
        %1358 = vmatpush1.msra.mxu0 %v611
        %1359 = vmatprep.subr.mxu0 0.0
        %1360 = vmatpush1.msra.mxu0 %v612
        %1361 = vmatprep.subr.mxu0 0.0
        %1362 = vmatpush1.msra.mxu0 %v613
        %1363 = vmatprep.subr.mxu0 0.0
        %1364 = vmatpush1.msra.mxu0 %v614
        %1365 = vmatprep.subr.mxu0 0.0
        %1366 = vmatpush1.msra.mxu0 %v615
        %1367 = vmatprep.subr.mxu0 0.0
        %1368 = vmatpush1.msra.mxu0 %v616
        %1369 = vmatprep.subr.mxu0 0.0
        %1370 = vmatpush1.msra.mxu0 %v617
        %1371 = vmatprep.subr.mxu0 0.0
        %1372 = vmatpush1.msra.mxu0 %v618
        %1373 = vmatprep.subr.mxu0 0.0
        %1374 = vmatpush1.msra.mxu0 %v619
        %1375 = vmatprep.subr.mxu0 0.0
        %1376 = vmatpush1.msra.mxu0 %v620
        %1377 = vmatprep.subr.mxu0 0.0
        %1378 = vmatpush1.msra.mxu0 %v621
        %1379 = vmatprep.subr.mxu0 0.0
        %1380 = vmatpush1.msra.mxu0 %v622
        %1381 = vmatprep.subr.mxu0 0.0
        %1382 = vmatpush1.msra.mxu0 %v623
        %1383 = vmatprep.subr.mxu0 0.0
        %1384 = vmatpush1.msra.mxu0 0.0
        %1385 = vmatprep.subr.mxu0 0.0
        %1386 = vmatpush1.msra.mxu0 0.0
        %1387 = vmatprep.subr.mxu0 0.0
        %1388 = vmatpush1.msra.mxu0 0.0
        %1389 = vmatprep.subr.mxu0 0.0
        %1390 = vmatpush1.msra.mxu0 0.0
        %1391 = vmatprep.subr.mxu0 0.0
        %1392 = vmatpush1.msra.mxu0 0.0
        %1393 = vmatprep.subr.mxu0 0.0
        %1394 = vmatpush1.msra.mxu0 0.0
        %1395 = vmatprep.subr.mxu0 0.0
        %1396 = vmatpush1.msra.mxu0 0.0
        %1397 = vmatprep.subr.mxu0 0.0
        %1398 = vmatpush1.msra.mxu0 0.0
        %1399 = vmatprep.subr.mxu0 0.0
        %1400 = vmatpush1.msra.mxu0 0.0
        %1401 = vmatprep.subr.mxu0 0.0
        %1402 = vmatpush1.msra.mxu0 0.0
        %1403 = vmatprep.subr.mxu0 0.0
        %1404 = vmatpush1.msra.mxu0 0.0
        %1405 = vmatprep.subr.mxu0 0.0
        %1406 = vmatpush1.msra.mxu0 0.0
        %1407 = vmatprep.subr.mxu0 0.0
        %1408 = vmatpush1.msra.mxu0 0.0
        %1409 = vmatprep.subr.mxu0 0.0
        %1410 = vmatpush1.msra.mxu0 0.0
        %1411 = vmatprep.subr.mxu0 0.0
        %1412 = vmatpush1.msra.mxu0 0.0
        %1413 = vmatprep.subr.mxu0 0.0
        %1414 = vmatpush1.msra.mxu0 0.0
        %1415 = vmatprep.mubr.f32.mxu0 0.0
        %1416 = vmatmul.mubr.f32.gmra.mrb[0].mxu0 %v1350
        %v1417 = vpop.f32.mrb[0].mxu0
        %v1418 = vadd.f32 0.0, %v1417
        %v1419 = vpop.f32.mrb[0].mxu0
        %1420 = vdwg.mxu0
        %v1421 = vadd.f32 %v500, %v1418
        %v1422 = vtanh.pop %v1421
        %v1423 = vsel %vm1276, %v1422, %v1201
        %1424 = vmatprep.subr.mxu0 0.0
        %1425 = vmatpush1.msra.mxu0 %v608
        %1426 = vmatprep.subr.mxu0 0.0
        %1427 = vmatpush1.msra.mxu0 %v609
        %1428 = vmatprep.subr.mxu0 0.0
        %1429 = vmatpush1.msra.mxu0 %v610
        %1430 = vmatprep.subr.mxu0 0.0
        %1431 = vmatpush1.msra.mxu0 %v611
        %1432 = vmatprep.subr.mxu0 0.0
        %1433 = vmatpush1.msra.mxu0 %v612
        %1434 = vmatprep.subr.mxu0 0.0
        %1435 = vmatpush1.msra.mxu0 %v613
        %1436 = vmatprep.subr.mxu0 0.0
        %1437 = vmatpush1.msra.mxu0 %v614
        %1438 = vmatprep.subr.mxu0 0.0
        %1439 = vmatpush1.msra.mxu0 %v615
        %1440 = vmatprep.subr.mxu0 0.0
        %1441 = vmatpush1.msra.mxu0 %v616
        %1442 = vmatprep.subr.mxu0 0.0
        %1443 = vmatpush1.msra.mxu0 %v617
        %1444 = vmatprep.subr.mxu0 0.0
        %1445 = vmatpush1.msra.mxu0 %v618
        %1446 = vmatprep.subr.mxu0 0.0
        %1447 = vmatpush1.msra.mxu0 %v619
        %1448 = vmatprep.subr.mxu0 0.0
        %1449 = vmatpush1.msra.mxu0 %v620
        %1450 = vmatprep.subr.mxu0 0.0
        %1451 = vmatpush1.msra.mxu0 %v621
        %1452 = vmatprep.subr.mxu0 0.0
        %1453 = vmatpush1.msra.mxu0 %v622
        %1454 = vmatprep.subr.mxu0 0.0
        %1455 = vmatpush1.msra.mxu0 %v623
        %1456 = vmatprep.subr.mxu0 0.0
        %1457 = vmatpush1.msra.mxu0 0.0
        %1458 = vmatprep.subr.mxu0 0.0
        %1459 = vmatpush1.msra.mxu0 0.0
        %1460 = vmatprep.subr.mxu0 0.0
        %1461 = vmatpush1.msra.mxu0 0.0
        %1462 = vmatprep.subr.mxu0 0.0
        %1463 = vmatpush1.msra.mxu0 0.0
        %1464 = vmatprep.subr.mxu0 0.0
        %1465 = vmatpush1.msra.mxu0 0.0
        %1466 = vmatprep.subr.mxu0 0.0
        %1467 = vmatpush1.msra.mxu0 0.0
        %1468 = vmatprep.subr.mxu0 0.0
        %1469 = vmatpush1.msra.mxu0 0.0
        %1470 = vmatprep.subr.mxu0 0.0
        %1471 = vmatpush1.msra.mxu0 0.0
        %1472 = vmatprep.subr.mxu0 0.0
        %1473 = vmatpush1.msra.mxu0 0.0
        %1474 = vmatprep.subr.mxu0 0.0
        %1475 = vmatpush1.msra.mxu0 0.0
        %1476 = vmatprep.subr.mxu0 0.0
        %1477 = vmatpush1.msra.mxu0 0.0
        %1478 = vmatprep.subr.mxu0 0.0
        %1479 = vmatpush1.msra.mxu0 0.0
        %1480 = vmatprep.subr.mxu0 0.0
        %1481 = vmatpush1.msra.mxu0 0.0
        %1482 = vmatprep.subr.mxu0 0.0
        %1483 = vmatpush1.msra.mxu0 0.0
        %1484 = vmatprep.subr.mxu0 0.0
        %1485 = vmatpush1.msra.mxu0 0.0
        %1486 = vmatprep.subr.mxu0 0.0
        %1487 = vmatpush1.msra.mxu0 0.0
        %1488 = vmatprep.mubr.f32.mxu0 0.0
        %1489 = vmatmul.mubr.f32.gmra.mrb[0].mxu0 %v1423
        %v1490 = vpop.f32.mrb[0].mxu0
        %v1491 = vadd.f32 0.0, %v1490
        %v1492 = vpop.f32.mrb[0].mxu0
        %1493 = vdwg.mxu0
        %v1494 = vadd.f32 %v505, %v1491
        %v1495 = vtanh.pop %v1494
        %v1496 = vsel %vm1276, %v1495, %v1201
        %1497 = vmatprep.subr.mxu0 0.0
        %1498 = vmatpush1.msra.mxu0 %v608
        %1499 = vmatprep.subr.mxu0 0.0
        %1500 = vmatpush1.msra.mxu0 %v609
        %1501 = vmatprep.subr.mxu0 0.0
        %1502 = vmatpush1.msra.mxu0 %v610
        %1503 = vmatprep.subr.mxu0 0.0
        %1504 = vmatpush1.msra.mxu0 %v611
        %1505 = vmatprep.subr.mxu0 0.0
        %1506 = vmatpush1.msra.mxu0 %v612
        %1507 = vmatprep.subr.mxu0 0.0
        %1508 = vmatpush1.msra.mxu0 %v613
        %1509 = vmatprep.subr.mxu0 0.0
        %1510 = vmatpush1.msra.mxu0 %v614
        %1511 = vmatprep.subr.mxu0 0.0
        %1512 = vmatpush1.msra.mxu0 %v615
        %1513 = vmatprep.subr.mxu0 0.0
        %1514 = vmatpush1.msra.mxu0 %v616
        %1515 = vmatprep.subr.mxu0 0.0
        %1516 = vmatpush1.msra.mxu0 %v617
        %1517 = vmatprep.subr.mxu0 0.0
        %1518 = vmatpush1.msra.mxu0 %v618
        %1519 = vmatprep.subr.mxu0 0.0
        %1520 = vmatpush1.msra.mxu0 %v619
        %1521 = vmatprep.subr.mxu0 0.0
        %1522 = vmatpush1.msra.mxu0 %v620
        %1523 = vmatprep.subr.mxu0 0.0
        %1524 = vmatpush1.msra.mxu0 %v621
        %1525 = vmatprep.subr.mxu0 0.0
        %1526 = vmatpush1.msra.mxu0 %v622
        %1527 = vmatprep.subr.mxu0 0.0
        %1528 = vmatpush1.msra.mxu0 %v623
        %1529 = vmatprep.subr.mxu0 0.0
        %1530 = vmatpush1.msra.mxu0 0.0
        %1531 = vmatprep.subr.mxu0 0.0
        %1532 = vmatpush1.msra.mxu0 0.0
        %1533 = vmatprep.subr.mxu0 0.0
        %1534 = vmatpush1.msra.mxu0 0.0
        %1535 = vmatprep.subr.mxu0 0.0
        %1536 = vmatpush1.msra.mxu0 0.0
        %1537 = vmatprep.subr.mxu0 0.0
        %1538 = vmatpush1.msra.mxu0 0.0
        %1539 = vmatprep.subr.mxu0 0.0
        %1540 = vmatpush1.msra.mxu0 0.0
        %1541 = vmatprep.subr.mxu0 0.0
        %1542 = vmatpush1.msra.mxu0 0.0
        %1543 = vmatprep.subr.mxu0 0.0
        %1544 = vmatpush1.msra.mxu0 0.0
        %1545 = vmatprep.subr.mxu0 0.0
        %1546 = vmatpush1.msra.mxu0 0.0
        %1547 = vmatprep.subr.mxu0 0.0
        %1548 = vmatpush1.msra.mxu0 0.0
        %1549 = vmatprep.subr.mxu0 0.0
        %1550 = vmatpush1.msra.mxu0 0.0
        %1551 = vmatprep.subr.mxu0 0.0
        %1552 = vmatpush1.msra.mxu0 0.0
        %1553 = vmatprep.subr.mxu0 0.0
        %1554 = vmatpush1.msra.mxu0 0.0
        %1555 = vmatprep.subr.mxu0 0.0
        %1556 = vmatpush1.msra.mxu0 0.0
        %1557 = vmatprep.subr.mxu0 0.0
        %1558 = vmatpush1.msra.mxu0 0.0
        %1559 = vmatprep.subr.mxu0 0.0
        %1560 = vmatpush1.msra.mxu0 0.0
        %1561 = vmatprep.mubr.f32.mxu0 0.0
        %1562 = vmatmul.mubr.f32.gmra.mrb[0].mxu0 %v1496
        %v1563 = vpop.f32.mrb[0].mxu0
        %v1564 = vadd.f32 0.0, %v1563
        %v1565 = vpop.f32.mrb[0].mxu0
        %1566 = vdwg.mxu0
        %v1567 = vadd.f32 %v510, %v1564
        %v1568 = vtanh.pop %v1567
        %v1569 = vsel %vm1276, %v1568, %v1201
        %1570 = vmatprep.subr.mxu0 0.0
        %1571 = vmatpush1.msra.mxu0 %v608
        %1572 = vmatprep.subr.mxu0 0.0
        %1573 = vmatpush1.msra.mxu0 %v609
        %1574 = vmatprep.subr.mxu0 0.0
        %1575 = vmatpush1.msra.mxu0 %v610
        %1576 = vmatprep.subr.mxu0 0.0
        %1577 = vmatpush1.msra.mxu0 %v611
        %1578 = vmatprep.subr.mxu0 0.0
        %1579 = vmatpush1.msra.mxu0 %v612
        %1580 = vmatprep.subr.mxu0 0.0
        %1581 = vmatpush1.msra.mxu0 %v613
        %1582 = vmatprep.subr.mxu0 0.0
        %1583 = vmatpush1.msra.mxu0 %v614
        %1584 = vmatprep.subr.mxu0 0.0
        %1585 = vmatpush1.msra.mxu0 %v615
        %1586 = vmatprep.subr.mxu0 0.0
        %1587 = vmatpush1.msra.mxu0 %v616
        %1588 = vmatprep.subr.mxu0 0.0
        %1589 = vmatpush1.msra.mxu0 %v617
        %1590 = vmatprep.subr.mxu0 0.0
        %1591 = vmatpush1.msra.mxu0 %v618
        %1592 = vmatprep.subr.mxu0 0.0
        %1593 = vmatpush1.msra.mxu0 %v619
        %1594 = vmatprep.subr.mxu0 0.0
        %1595 = vmatpush1.msra.mxu0 %v620
        %1596 = vmatprep.subr.mxu0 0.0
        %1597 = vmatpush1.msra.mxu0 %v621
        %1598 = vmatprep.subr.mxu0 0.0
        %1599 = vmatpush1.msra.mxu0 %v622
        %1600 = vmatprep.subr.mxu0 0.0
        %1601 = vmatpush1.msra.mxu0 %v623
        %1602 = vmatprep.subr.mxu0 0.0
        %1603 = vmatpush1.msra.mxu0 0.0
        %1604 = vmatprep.subr.mxu0 0.0
        %1605 = vmatpush1.msra.mxu0 0.0
        %1606 = vmatprep.subr.mxu0 0.0
        %1607 = vmatpush1.msra.mxu0 0.0
        %1608 = vmatprep.subr.mxu0 0.0
        %1609 = vmatpush1.msra.mxu0 0.0
        %1610 = vmatprep.subr.mxu0 0.0
        %1611 = vmatpush1.msra.mxu0 0.0
        %1612 = vmatprep.subr.mxu0 0.0
        %1613 = vmatpush1.msra.mxu0 0.0
        %1614 = vmatprep.subr.mxu0 0.0
        %1615 = vmatpush1.msra.mxu0 0.0
        %1616 = vmatprep.subr.mxu0 0.0
        %1617 = vmatpush1.msra.mxu0 0.0
        %1618 = vmatprep.subr.mxu0 0.0
        %1619 = vmatpush1.msra.mxu0 0.0
        %1620 = vmatprep.subr.mxu0 0.0
        %1621 = vmatpush1.msra.mxu0 0.0
        %1622 = vmatprep.subr.mxu0 0.0
        %1623 = vmatpush1.msra.mxu0 0.0
        %1624 = vmatprep.subr.mxu0 0.0
        %1625 = vmatpush1.msra.mxu0 0.0
        %1626 = vmatprep.subr.mxu0 0.0
        %1627 = vmatpush1.msra.mxu0 0.0
        %1628 = vmatprep.subr.mxu0 0.0
        %1629 = vmatpush1.msra.mxu0 0.0
        %1630 = vmatprep.subr.mxu0 0.0
        %1631 = vmatpush1.msra.mxu0 0.0
        %1632 = vmatprep.subr.mxu0 0.0
        %1633 = vmatpush1.msra.mxu0 0.0
        %1634 = vmatprep.mubr.f32.mxu0 0.0
        %1635 = vmatmul.mubr.f32.gmra.mrb[0].mxu0 %v1569
        %v1636 = vpop.f32.mrb[0].mxu0
        %v1637 = vadd.f32 0.0, %v1636
        %v1638 = vpop.f32.mrb[0].mxu0
        %1639 = vdwg.mxu0
        %v1640 = vadd.f32 %v515, %v1637
        %v1641 = vtanh.pop %v1640
        %v1642 = vsel %vm1276, %v1641, %v1201
        %1643 = vmatprep.subr.mxu0 0.0
        %1644 = vmatpush1.msra.mxu0 %v608
        %1645 = vmatprep.subr.mxu0 0.0
        %1646 = vmatpush1.msra.mxu0 %v609
        %1647 = vmatprep.subr.mxu0 0.0
        %1648 = vmatpush1.msra.mxu0 %v610
        %1649 = vmatprep.subr.mxu0 0.0
        %1650 = vmatpush1.msra.mxu0 %v611
        %1651 = vmatprep.subr.mxu0 0.0
        %1652 = vmatpush1.msra.mxu0 %v612
        %1653 = vmatprep.subr.mxu0 0.0
        %1654 = vmatpush1.msra.mxu0 %v613
        %1655 = vmatprep.subr.mxu0 0.0
        %1656 = vmatpush1.msra.mxu0 %v614
        %1657 = vmatprep.subr.mxu0 0.0
        %1658 = vmatpush1.msra.mxu0 %v615
        %1659 = vmatprep.subr.mxu0 0.0
        %1660 = vmatpush1.msra.mxu0 %v616
        %1661 = vmatprep.subr.mxu0 0.0
        %1662 = vmatpush1.msra.mxu0 %v617
        %1663 = vmatprep.subr.mxu0 0.0
        %1664 = vmatpush1.msra.mxu0 %v618
        %1665 = vmatprep.subr.mxu0 0.0
        %1666 = vmatpush1.msra.mxu0 %v619
        %1667 = vmatprep.subr.mxu0 0.0
        %1668 = vmatpush1.msra.mxu0 %v620
        %1669 = vmatprep.subr.mxu0 0.0
        %1670 = vmatpush1.msra.mxu0 %v621
        %1671 = vmatprep.subr.mxu0 0.0
        %1672 = vmatpush1.msra.mxu0 %v622
        %1673 = vmatprep.subr.mxu0 0.0
        %1674 = vmatpush1.msra.mxu0 %v623
        %1675 = vmatprep.subr.mxu0 0.0
        %1676 = vmatpush1.msra.mxu0 0.0
        %1677 = vmatprep.subr.mxu0 0.0
        %1678 = vmatpush1.msra.mxu0 0.0
        %1679 = vmatprep.subr.mxu0 0.0
        %1680 = vmatpush1.msra.mxu0 0.0
        %1681 = vmatprep.subr.mxu0 0.0
        %1682 = vmatpush1.msra.mxu0 0.0
        %1683 = vmatprep.subr.mxu0 0.0
        %1684 = vmatpush1.msra.mxu0 0.0
        %1685 = vmatprep.subr.mxu0 0.0
        %1686 = vmatpush1.msra.mxu0 0.0
        %1687 = vmatprep.subr.mxu0 0.0
        %1688 = vmatpush1.msra.mxu0 0.0
        %1689 = vmatprep.subr.mxu0 0.0
        %1690 = vmatpush1.msra.mxu0 0.0
        %1691 = vmatprep.subr.mxu0 0.0
        %1692 = vmatpush1.msra.mxu0 0.0
        %1693 = vmatprep.subr.mxu0 0.0
        %1694 = vmatpush1.msra.mxu0 0.0
        %1695 = vmatprep.subr.mxu0 0.0
        %1696 = vmatpush1.msra.mxu0 0.0
        %1697 = vmatprep.subr.mxu0 0.0
        %1698 = vmatpush1.msra.mxu0 0.0
        %1699 = vmatprep.subr.mxu0 0.0
        %1700 = vmatpush1.msra.mxu0 0.0
        %1701 = vmatprep.subr.mxu0 0.0
        %1702 = vmatpush1.msra.mxu0 0.0
        %1703 = vmatprep.subr.mxu0 0.0
        %1704 = vmatpush1.msra.mxu0 0.0
        %1705 = vmatprep.subr.mxu0 0.0
        %1706 = vmatpush1.msra.mxu0 0.0
        %1707 = vmatprep.mubr.f32.mxu0 0.0
        %1708 = vmatmul.mubr.f32.gmra.mrb[0].mxu0 %v1642
        %v1709 = vpop.f32.mrb[0].mxu0
        %v1710 = vadd.f32 0.0, %v1709
        %v1711 = vpop.f32.mrb[0].mxu0
        %1712 = vdwg.mxu0
        %v1713 = vadd.f32 %v520, %v1710
        %v1714 = vtanh.pop %v1713
        %v1715 = vsel %vm1276, %v1714, %v1201
        %1716 = vmatprep.subr.mxu0 0.0
        %1717 = vmatpush1.msra.mxu0 %v608
        %1718 = vmatprep.subr.mxu0 0.0
        %1719 = vmatpush1.msra.mxu0 %v609
        %1720 = vmatprep.subr.mxu0 0.0
        %1721 = vmatpush1.msra.mxu0 %v610
        %1722 = vmatprep.subr.mxu0 0.0
        %1723 = vmatpush1.msra.mxu0 %v611
        %1724 = vmatprep.subr.mxu0 0.0
        %1725 = vmatpush1.msra.mxu0 %v612
        %1726 = vmatprep.subr.mxu0 0.0
        %1727 = vmatpush1.msra.mxu0 %v613
        %1728 = vmatprep.subr.mxu0 0.0
        %1729 = vmatpush1.msra.mxu0 %v614
        %1730 = vmatprep.subr.mxu0 0.0
        %1731 = vmatpush1.msra.mxu0 %v615
        %1732 = vmatprep.subr.mxu0 0.0
        %1733 = vmatpush1.msra.mxu0 %v616
        %1734 = vmatprep.subr.mxu0 0.0
        %1735 = vmatpush1.msra.mxu0 %v617
        %1736 = vmatprep.subr.mxu0 0.0
        %1737 = vmatpush1.msra.mxu0 %v618
        %1738 = vmatprep.subr.mxu0 0.0
        %1739 = vmatpush1.msra.mxu0 %v619
        %1740 = vmatprep.subr.mxu0 0.0
        %1741 = vmatpush1.msra.mxu0 %v620
        %1742 = vmatprep.subr.mxu0 0.0
        %1743 = vmatpush1.msra.mxu0 %v621
        %1744 = vmatprep.subr.mxu0 0.0
        %1745 = vmatpush1.msra.mxu0 %v622
        %1746 = vmatprep.subr.mxu0 0.0
        %1747 = vmatpush1.msra.mxu0 %v623
        %1748 = vmatprep.subr.mxu0 0.0
        %1749 = vmatpush1.msra.mxu0 0.0
        %1750 = vmatprep.subr.mxu0 0.0
        %1751 = vmatpush1.msra.mxu0 0.0
        %1752 = vmatprep.subr.mxu0 0.0
        %1753 = vmatpush1.msra.mxu0 0.0
        %1754 = vmatprep.subr.mxu0 0.0
        %1755 = vmatpush1.msra.mxu0 0.0
        %1756 = vmatprep.subr.mxu0 0.0
        %1757 = vmatpush1.msra.mxu0 0.0
        %1758 = vmatprep.subr.mxu0 0.0
        %1759 = vmatpush1.msra.mxu0 0.0
        %1760 = vmatprep.subr.mxu0 0.0
        %1761 = vmatpush1.msra.mxu0 0.0
        %1762 = vmatprep.subr.mxu0 0.0
        %1763 = vmatpush1.msra.mxu0 0.0
        %1764 = vmatprep.subr.mxu0 0.0
        %1765 = vmatpush1.msra.mxu0 0.0
        %1766 = vmatprep.subr.mxu0 0.0
        %1767 = vmatpush1.msra.mxu0 0.0
        %1768 = vmatprep.subr.mxu0 0.0
        %1769 = vmatpush1.msra.mxu0 0.0
        %1770 = vmatprep.subr.mxu0 0.0
        %1771 = vmatpush1.msra.mxu0 0.0
        %1772 = vmatprep.subr.mxu0 0.0
        %1773 = vmatpush1.msra.mxu0 0.0
        %1774 = vmatprep.subr.mxu0 0.0
        %1775 = vmatpush1.msra.mxu0 0.0
        %1776 = vmatprep.subr.mxu0 0.0
        %1777 = vmatpush1.msra.mxu0 0.0
        %1778 = vmatprep.subr.mxu0 0.0
        %1779 = vmatpush1.msra.mxu0 0.0
        %1780 = vmatprep.mubr.f32.mxu0 0.0
        %1781 = vmatmul.mubr.f32.gmra.mrb[0].mxu0 %v1715
        %v1782 = vpop.f32.mrb[0].mxu0
        %v1783 = vadd.f32 0.0, %v1782
        %v1784 = vpop.f32.mrb[0].mxu0
        %1785 = vdwg.mxu0
        %v1786 = vadd.f32 %v525, %v1783
        %v1787 = vtanh.pop %v1786
        %v1788 = vsel %vm1276, %v1787, %v1201
        %1789 = vmatprep.subr.mxu0 0.0
        %1790 = vmatpush1.msra.mxu0 %v608
        %1791 = vmatprep.subr.mxu0 0.0
        %1792 = vmatpush1.msra.mxu0 %v609
        %1793 = vmatprep.subr.mxu0 0.0
        %1794 = vmatpush1.msra.mxu0 %v610
        %1795 = vmatprep.subr.mxu0 0.0
        %1796 = vmatpush1.msra.mxu0 %v611
        %1797 = vmatprep.subr.mxu0 0.0
        %1798 = vmatpush1.msra.mxu0 %v612
        %1799 = vmatprep.subr.mxu0 0.0
        %1800 = vmatpush1.msra.mxu0 %v613
        %1801 = vmatprep.subr.mxu0 0.0
        %1802 = vmatpush1.msra.mxu0 %v614
        %1803 = vmatprep.subr.mxu0 0.0
        %1804 = vmatpush1.msra.mxu0 %v615
        %1805 = vmatprep.subr.mxu0 0.0
        %1806 = vmatpush1.msra.mxu0 %v616
        %1807 = vmatprep.subr.mxu0 0.0
        %1808 = vmatpush1.msra.mxu0 %v617
        %1809 = vmatprep.subr.mxu0 0.0
        %1810 = vmatpush1.msra.mxu0 %v618
        %1811 = vmatprep.subr.mxu0 0.0
        %1812 = vmatpush1.msra.mxu0 %v619
        %1813 = vmatprep.subr.mxu0 0.0
        %1814 = vmatpush1.msra.mxu0 %v620
        %1815 = vmatprep.subr.mxu0 0.0
        %1816 = vmatpush1.msra.mxu0 %v621
        %1817 = vmatprep.subr.mxu0 0.0
        %1818 = vmatpush1.msra.mxu0 %v622
        %1819 = vmatprep.subr.mxu0 0.0
        %1820 = vmatpush1.msra.mxu0 %v623
        %1821 = vmatprep.subr.mxu0 0.0
        %1822 = vmatpush1.msra.mxu0 0.0
        %1823 = vmatprep.subr.mxu0 0.0
        %1824 = vmatpush1.msra.mxu0 0.0
        %1825 = vmatprep.subr.mxu0 0.0
        %1826 = vmatpush1.msra.mxu0 0.0
        %1827 = vmatprep.subr.mxu0 0.0
        %1828 = vmatpush1.msra.mxu0 0.0
        %1829 = vmatprep.subr.mxu0 0.0
        %1830 = vmatpush1.msra.mxu0 0.0
        %1831 = vmatprep.subr.mxu0 0.0
        %1832 = vmatpush1.msra.mxu0 0.0
        %1833 = vmatprep.subr.mxu0 0.0
        %1834 = vmatpush1.msra.mxu0 0.0
        %1835 = vmatprep.subr.mxu0 0.0
        %1836 = vmatpush1.msra.mxu0 0.0
        %1837 = vmatprep.subr.mxu0 0.0
        %1838 = vmatpush1.msra.mxu0 0.0
        %1839 = vmatprep.subr.mxu0 0.0
        %1840 = vmatpush1.msra.mxu0 0.0
        %1841 = vmatprep.subr.mxu0 0.0
        %1842 = vmatpush1.msra.mxu0 0.0
        %1843 = vmatprep.subr.mxu0 0.0
        %1844 = vmatpush1.msra.mxu0 0.0
        %1845 = vmatprep.subr.mxu0 0.0
        %1846 = vmatpush1.msra.mxu0 0.0
        %1847 = vmatprep.subr.mxu0 0.0
        %1848 = vmatpush1.msra.mxu0 0.0
        %1849 = vmatprep.subr.mxu0 0.0
        %1850 = vmatpush1.msra.mxu0 0.0
        %1851 = vmatprep.subr.mxu0 0.0
        %1852 = vmatpush1.msra.mxu0 0.0
        %1853 = vmatprep.mubr.f32.mxu0 0.0
        %1854 = vmatmul.mubr.f32.gmra.mrb[0].mxu0 %v1788
        %v1855 = vpop.f32.mrb[0].mxu0
        %v1856 = vadd.f32 0.0, %v1855
        %v1857 = vpop.f32.mrb[0].mxu0
        %1858 = vdwg.mxu0
        %v1859 = vadd.f32 %v530, %v1856
        %v1860 = vtanh.pop %v1859
        %v1861 = vsel %vm1276, %v1860, %v1201
        %1862 = vmatprep.subr.mxu0 0.0
        %1863 = vmatpush1.msra.mxu0 %v608
        %1864 = vmatprep.subr.mxu0 0.0
        %1865 = vmatpush1.msra.mxu0 %v609
        %1866 = vmatprep.subr.mxu0 0.0
        %1867 = vmatpush1.msra.mxu0 %v610
        %1868 = vmatprep.subr.mxu0 0.0
        %1869 = vmatpush1.msra.mxu0 %v611
        %1870 = vmatprep.subr.mxu0 0.0
        %1871 = vmatpush1.msra.mxu0 %v612
        %1872 = vmatprep.subr.mxu0 0.0
        %1873 = vmatpush1.msra.mxu0 %v613
        %1874 = vmatprep.subr.mxu0 0.0
        %1875 = vmatpush1.msra.mxu0 %v614
        %1876 = vmatprep.subr.mxu0 0.0
        %1877 = vmatpush1.msra.mxu0 %v615
        %1878 = vmatprep.subr.mxu0 0.0
        %1879 = vmatpush1.msra.mxu0 %v616
        %1880 = vmatprep.subr.mxu0 0.0
        %1881 = vmatpush1.msra.mxu0 %v617
        %1882 = vmatprep.subr.mxu0 0.0
        %1883 = vmatpush1.msra.mxu0 %v618
        %1884 = vmatprep.subr.mxu0 0.0
        %1885 = vmatpush1.msra.mxu0 %v619
        %1886 = vmatprep.subr.mxu0 0.0
        %1887 = vmatpush1.msra.mxu0 %v620
        %1888 = vmatprep.subr.mxu0 0.0
        %1889 = vmatpush1.msra.mxu0 %v621
        %1890 = vmatprep.subr.mxu0 0.0
        %1891 = vmatpush1.msra.mxu0 %v622
        %1892 = vmatprep.subr.mxu0 0.0
        %1893 = vmatpush1.msra.mxu0 %v623
        %1894 = vmatprep.subr.mxu0 0.0
        %1895 = vmatpush1.msra.mxu0 0.0
        %1896 = vmatprep.subr.mxu0 0.0
        %1897 = vmatpush1.msra.mxu0 0.0
        %1898 = vmatprep.subr.mxu0 0.0
        %1899 = vmatpush1.msra.mxu0 0.0
        %1900 = vmatprep.subr.mxu0 0.0
        %1901 = vmatpush1.msra.mxu0 0.0
        %1902 = vmatprep.subr.mxu0 0.0
        %1903 = vmatpush1.msra.mxu0 0.0
        %1904 = vmatprep.subr.mxu0 0.0
        %1905 = vmatpush1.msra.mxu0 0.0
        %1906 = vmatprep.subr.mxu0 0.0
        %1907 = vmatpush1.msra.mxu0 0.0
        %1908 = vmatprep.subr.mxu0 0.0
        %1909 = vmatpush1.msra.mxu0 0.0
        %1910 = vmatprep.subr.mxu0 0.0
        %1911 = vmatpush1.msra.mxu0 0.0
        %1912 = vmatprep.subr.mxu0 0.0
        %1913 = vmatpush1.msra.mxu0 0.0
        %1914 = vmatprep.subr.mxu0 0.0
        %1915 = vmatpush1.msra.mxu0 0.0
        %1916 = vmatprep.subr.mxu0 0.0
        %1917 = vmatpush1.msra.mxu0 0.0
        %1918 = vmatprep.subr.mxu0 0.0
        %1919 = vmatpush1.msra.mxu0 0.0
        %1920 = vmatprep.subr.mxu0 0.0
        %1921 = vmatpush1.msra.mxu0 0.0
        %1922 = vmatprep.subr.mxu0 0.0
        %1923 = vmatpush1.msra.mxu0 0.0
        %1924 = vmatprep.subr.mxu0 0.0
        %1925 = vmatpush1.msra.mxu0 0.0
        %1926 = vmatprep.mubr.f32.mxu0 0.0
        %1927 = vmatmul.mubr.f32.gmra.mrb[0].mxu0 %v1861
        %v1928 = vpop.f32.mrb[0].mxu0
        %v1929 = vadd.f32 0.0, %v1928
        %v1930 = vpop.f32.mrb[0].mxu0
        %1931 = vdwg.mxu0
        %v1932 = vadd.f32 %v535, %v1929
        %v1933 = vtanh.pop %v1932
        %v1934 = vsel %vm1276, %v1933, %v1201
        %1935 = vmatprep.subr.mxu0 0.0
        %1936 = vmatpush1.msra.mxu0 %v608
        %1937 = vmatprep.subr.mxu0 0.0
        %1938 = vmatpush1.msra.mxu0 %v609
        %1939 = vmatprep.subr.mxu0 0.0
        %1940 = vmatpush1.msra.mxu0 %v610
        %1941 = vmatprep.subr.mxu0 0.0
        %1942 = vmatpush1.msra.mxu0 %v611
        %1943 = vmatprep.subr.mxu0 0.0
        %1944 = vmatpush1.msra.mxu0 %v612
        %1945 = vmatprep.subr.mxu0 0.0
        %1946 = vmatpush1.msra.mxu0 %v613
        %1947 = vmatprep.subr.mxu0 0.0
        %1948 = vmatpush1.msra.mxu0 %v614
        %1949 = vmatprep.subr.mxu0 0.0
        %1950 = vmatpush1.msra.mxu0 %v615
        %1951 = vmatprep.subr.mxu0 0.0
        %1952 = vmatpush1.msra.mxu0 %v616
        %1953 = vmatprep.subr.mxu0 0.0
        %1954 = vmatpush1.msra.mxu0 %v617
        %1955 = vmatprep.subr.mxu0 0.0
        %1956 = vmatpush1.msra.mxu0 %v618
        %1957 = vmatprep.subr.mxu0 0.0
        %1958 = vmatpush1.msra.mxu0 %v619
        %1959 = vmatprep.subr.mxu0 0.0
        %1960 = vmatpush1.msra.mxu0 %v620
        %1961 = vmatprep.subr.mxu0 0.0
        %1962 = vmatpush1.msra.mxu0 %v621
        %1963 = vmatprep.subr.mxu0 0.0
        %1964 = vmatpush1.msra.mxu0 %v622
        %1965 = vmatprep.subr.mxu0 0.0
        %1966 = vmatpush1.msra.mxu0 %v623
        %1967 = vmatprep.subr.mxu0 0.0
        %1968 = vmatpush1.msra.mxu0 0.0
        %1969 = vmatprep.subr.mxu0 0.0
        %1970 = vmatpush1.msra.mxu0 0.0
        %1971 = vmatprep.subr.mxu0 0.0
        %1972 = vmatpush1.msra.mxu0 0.0
        %1973 = vmatprep.subr.mxu0 0.0
        %1974 = vmatpush1.msra.mxu0 0.0
        %1975 = vmatprep.subr.mxu0 0.0
        %1976 = vmatpush1.msra.mxu0 0.0
        %1977 = vmatprep.subr.mxu0 0.0
        %1978 = vmatpush1.msra.mxu0 0.0
        %1979 = vmatprep.subr.mxu0 0.0
        %1980 = vmatpush1.msra.mxu0 0.0
        %1981 = vmatprep.subr.mxu0 0.0
        %1982 = vmatpush1.msra.mxu0 0.0
        %1983 = vmatprep.subr.mxu0 0.0
        %1984 = vmatpush1.msra.mxu0 0.0
        %1985 = vmatprep.subr.mxu0 0.0
        %1986 = vmatpush1.msra.mxu0 0.0
        %1987 = vmatprep.subr.mxu0 0.0
        %1988 = vmatpush1.msra.mxu0 0.0
        %1989 = vmatprep.subr.mxu0 0.0
        %1990 = vmatpush1.msra.mxu0 0.0
        %1991 = vmatprep.subr.mxu0 0.0
        %1992 = vmatpush1.msra.mxu0 0.0
        %1993 = vmatprep.subr.mxu0 0.0
        %1994 = vmatpush1.msra.mxu0 0.0
        %1995 = vmatprep.subr.mxu0 0.0
        %1996 = vmatpush1.msra.mxu0 0.0
        %1997 = vmatprep.subr.mxu0 0.0
        %1998 = vmatpush1.msra.mxu0 0.0
        %1999 = vmatprep.mubr.f32.mxu0 0.0
        %2000 = vmatmul.mubr.f32.gmra.mrb[0].mxu0 %v1934
        %v2001 = vpop.f32.mrb[0].mxu0
        %v2002 = vadd.f32 0.0, %v2001
        %v2003 = vpop.f32.mrb[0].mxu0
        %2004 = vdwg.mxu0
        %v2005 = vadd.f32 %v540, %v2002
        %v2006 = vtanh.pop %v2005
        %v2007 = vsel %vm1276, %v2006, %v1201
        %2008 = vmatprep.subr.mxu0 0.0
        %2009 = vmatpush1.msra.mxu0 %v608
        %2010 = vmatprep.subr.mxu0 0.0
        %2011 = vmatpush1.msra.mxu0 %v609
        %2012 = vmatprep.subr.mxu0 0.0
        %2013 = vmatpush1.msra.mxu0 %v610
        %2014 = vmatprep.subr.mxu0 0.0
        %2015 = vmatpush1.msra.mxu0 %v611
        %2016 = vmatprep.subr.mxu0 0.0
        %2017 = vmatpush1.msra.mxu0 %v612
        %2018 = vmatprep.subr.mxu0 0.0
        %2019 = vmatpush1.msra.mxu0 %v613
        %2020 = vmatprep.subr.mxu0 0.0
        %2021 = vmatpush1.msra.mxu0 %v614
        %2022 = vmatprep.subr.mxu0 0.0
        %2023 = vmatpush1.msra.mxu0 %v615
        %2024 = vmatprep.subr.mxu0 0.0
        %2025 = vmatpush1.msra.mxu0 %v616
        %2026 = vmatprep.subr.mxu0 0.0
        %2027 = vmatpush1.msra.mxu0 %v617
        %2028 = vmatprep.subr.mxu0 0.0
        %2029 = vmatpush1.msra.mxu0 %v618
        %2030 = vmatprep.subr.mxu0 0.0
        %2031 = vmatpush1.msra.mxu0 %v619
        %2032 = vmatprep.subr.mxu0 0.0
        %2033 = vmatpush1.msra.mxu0 %v620
        %2034 = vmatprep.subr.mxu0 0.0
        %2035 = vmatpush1.msra.mxu0 %v621
        %2036 = vmatprep.subr.mxu0 0.0
        %2037 = vmatpush1.msra.mxu0 %v622
        %2038 = vmatprep.subr.mxu0 0.0
        %2039 = vmatpush1.msra.mxu0 %v623
        %2040 = vmatprep.subr.mxu0 0.0
        %2041 = vmatpush1.msra.mxu0 0.0
        %2042 = vmatprep.subr.mxu0 0.0
        %2043 = vmatpush1.msra.mxu0 0.0
        %2044 = vmatprep.subr.mxu0 0.0
        %2045 = vmatpush1.msra.mxu0 0.0
        %2046 = vmatprep.subr.mxu0 0.0
        %2047 = vmatpush1.msra.mxu0 0.0
        %2048 = vmatprep.subr.mxu0 0.0
        %2049 = vmatpush1.msra.mxu0 0.0
        %2050 = vmatprep.subr.mxu0 0.0
        %2051 = vmatpush1.msra.mxu0 0.0
        %2052 = vmatprep.subr.mxu0 0.0
        %2053 = vmatpush1.msra.mxu0 0.0
        %2054 = vmatprep.subr.mxu0 0.0
        %2055 = vmatpush1.msra.mxu0 0.0
        %2056 = vmatprep.subr.mxu0 0.0
        %2057 = vmatpush1.msra.mxu0 0.0
        %2058 = vmatprep.subr.mxu0 0.0
        %2059 = vmatpush1.msra.mxu0 0.0
        %2060 = vmatprep.subr.mxu0 0.0
        %2061 = vmatpush1.msra.mxu0 0.0
        %2062 = vmatprep.subr.mxu0 0.0
        %2063 = vmatpush1.msra.mxu0 0.0
        %2064 = vmatprep.subr.mxu0 0.0
        %2065 = vmatpush1.msra.mxu0 0.0
        %2066 = vmatprep.subr.mxu0 0.0
        %2067 = vmatpush1.msra.mxu0 0.0
        %2068 = vmatprep.subr.mxu0 0.0
        %2069 = vmatpush1.msra.mxu0 0.0
        %2070 = vmatprep.subr.mxu0 0.0
        %2071 = vmatpush1.msra.mxu0 0.0
        %2072 = vmatprep.mubr.f32.mxu0 0.0
        %2073 = vmatmul.mubr.f32.gmra.mrb[0].mxu0 %v2007
        %v2074 = vpop.f32.mrb[0].mxu0
        %v2075 = vadd.f32 0.0, %v2074
        %v2076 = vpop.f32.mrb[0].mxu0
        %2077 = vdwg.mxu0
        %v2078 = vadd.f32 %v545, %v2075
        %v2079 = vtanh.pop %v2078
        %v2080 = vsel %vm1276, %v2079, %v1201
        %2081 = vmatprep.subr.mxu0 0.0
        %2082 = vmatpush1.msra.mxu0 %v608
        %2083 = vmatprep.subr.mxu0 0.0
        %2084 = vmatpush1.msra.mxu0 %v609
        %2085 = vmatprep.subr.mxu0 0.0
        %2086 = vmatpush1.msra.mxu0 %v610
        %2087 = vmatprep.subr.mxu0 0.0
        %2088 = vmatpush1.msra.mxu0 %v611
        %2089 = vmatprep.subr.mxu0 0.0
        %2090 = vmatpush1.msra.mxu0 %v612
        %2091 = vmatprep.subr.mxu0 0.0
        %2092 = vmatpush1.msra.mxu0 %v613
        %2093 = vmatprep.subr.mxu0 0.0
        %2094 = vmatpush1.msra.mxu0 %v614
        %2095 = vmatprep.subr.mxu0 0.0
        %2096 = vmatpush1.msra.mxu0 %v615
        %2097 = vmatprep.subr.mxu0 0.0
        %2098 = vmatpush1.msra.mxu0 %v616
        %2099 = vmatprep.subr.mxu0 0.0
        %2100 = vmatpush1.msra.mxu0 %v617
        %2101 = vmatprep.subr.mxu0 0.0
        %2102 = vmatpush1.msra.mxu0 %v618
        %2103 = vmatprep.subr.mxu0 0.0
        %2104 = vmatpush1.msra.mxu0 %v619
        %2105 = vmatprep.subr.mxu0 0.0
        %2106 = vmatpush1.msra.mxu0 %v620
        %2107 = vmatprep.subr.mxu0 0.0
        %2108 = vmatpush1.msra.mxu0 %v621
        %2109 = vmatprep.subr.mxu0 0.0
        %2110 = vmatpush1.msra.mxu0 %v622
        %2111 = vmatprep.subr.mxu0 0.0
        %2112 = vmatpush1.msra.mxu0 %v623
        %2113 = vmatprep.subr.mxu0 0.0
        %2114 = vmatpush1.msra.mxu0 0.0
        %2115 = vmatprep.subr.mxu0 0.0
        %2116 = vmatpush1.msra.mxu0 0.0
        %2117 = vmatprep.subr.mxu0 0.0
        %2118 = vmatpush1.msra.mxu0 0.0
        %2119 = vmatprep.subr.mxu0 0.0
        %2120 = vmatpush1.msra.mxu0 0.0
        %2121 = vmatprep.subr.mxu0 0.0
        %2122 = vmatpush1.msra.mxu0 0.0
        %2123 = vmatprep.subr.mxu0 0.0
        %2124 = vmatpush1.msra.mxu0 0.0
        %2125 = vmatprep.subr.mxu0 0.0
        %2126 = vmatpush1.msra.mxu0 0.0
        %2127 = vmatprep.subr.mxu0 0.0
        %2128 = vmatpush1.msra.mxu0 0.0
        %2129 = vmatprep.subr.mxu0 0.0
        %2130 = vmatpush1.msra.mxu0 0.0
        %2131 = vmatprep.subr.mxu0 0.0
        %2132 = vmatpush1.msra.mxu0 0.0
        %2133 = vmatprep.subr.mxu0 0.0
        %2134 = vmatpush1.msra.mxu0 0.0
        %2135 = vmatprep.subr.mxu0 0.0
        %2136 = vmatpush1.msra.mxu0 0.0
        %2137 = vmatprep.subr.mxu0 0.0
        %2138 = vmatpush1.msra.mxu0 0.0
        %2139 = vmatprep.subr.mxu0 0.0
        %2140 = vmatpush1.msra.mxu0 0.0
        %2141 = vmatprep.subr.mxu0 0.0
        %2142 = vmatpush1.msra.mxu0 0.0
        %2143 = vmatprep.subr.mxu0 0.0
        %2144 = vmatpush1.msra.mxu0 0.0
        %2145 = vmatprep.mubr.f32.mxu0 0.0
        %2146 = vmatmul.mubr.f32.gmra.mrb[0].mxu0 %v2080
        %v2147 = vpop.f32.mrb[0].mxu0
        %v2148 = vadd.f32 0.0, %v2147
        %v2149 = vpop.f32.mrb[0].mxu0
        %2150 = vdwg.mxu0
        %v2151 = vadd.f32 %v550, %v2148
        %v2152 = vtanh.pop %v2151
        %v2153 = vsel %vm1276, %v2152, %v1201
        %2154 = vmatprep.subr.mxu0 0.0
        %2155 = vmatpush1.msra.mxu0 %v608
        %2156 = vmatprep.subr.mxu0 0.0
        %2157 = vmatpush1.msra.mxu0 %v609
        %2158 = vmatprep.subr.mxu0 0.0
        %2159 = vmatpush1.msra.mxu0 %v610
        %2160 = vmatprep.subr.mxu0 0.0
        %2161 = vmatpush1.msra.mxu0 %v611
        %2162 = vmatprep.subr.mxu0 0.0
        %2163 = vmatpush1.msra.mxu0 %v612
        %2164 = vmatprep.subr.mxu0 0.0
        %2165 = vmatpush1.msra.mxu0 %v613
        %2166 = vmatprep.subr.mxu0 0.0
        %2167 = vmatpush1.msra.mxu0 %v614
        %2168 = vmatprep.subr.mxu0 0.0
        %2169 = vmatpush1.msra.mxu0 %v615
        %2170 = vmatprep.subr.mxu0 0.0
        %2171 = vmatpush1.msra.mxu0 %v616
        %2172 = vmatprep.subr.mxu0 0.0
        %2173 = vmatpush1.msra.mxu0 %v617
        %2174 = vmatprep.subr.mxu0 0.0
        %2175 = vmatpush1.msra.mxu0 %v618
        %2176 = vmatprep.subr.mxu0 0.0
        %2177 = vmatpush1.msra.mxu0 %v619
        %2178 = vmatprep.subr.mxu0 0.0
        %2179 = vmatpush1.msra.mxu0 %v620
        %2180 = vmatprep.subr.mxu0 0.0
        %2181 = vmatpush1.msra.mxu0 %v621
        %2182 = vmatprep.subr.mxu0 0.0
        %2183 = vmatpush1.msra.mxu0 %v622
        %2184 = vmatprep.subr.mxu0 0.0
        %2185 = vmatpush1.msra.mxu0 %v623
        %2186 = vmatprep.subr.mxu0 0.0
        %2187 = vmatpush1.msra.mxu0 0.0
        %2188 = vmatprep.subr.mxu0 0.0
        %2189 = vmatpush1.msra.mxu0 0.0
        %2190 = vmatprep.subr.mxu0 0.0
        %2191 = vmatpush1.msra.mxu0 0.0
        %2192 = vmatprep.subr.mxu0 0.0
        %2193 = vmatpush1.msra.mxu0 0.0
        %2194 = vmatprep.subr.mxu0 0.0
        %2195 = vmatpush1.msra.mxu0 0.0
        %2196 = vmatprep.subr.mxu0 0.0
        %2197 = vmatpush1.msra.mxu0 0.0
        %2198 = vmatprep.subr.mxu0 0.0
        %2199 = vmatpush1.msra.mxu0 0.0
        %2200 = vmatprep.subr.mxu0 0.0
        %2201 = vmatpush1.msra.mxu0 0.0
        %2202 = vmatprep.subr.mxu0 0.0
        %2203 = vmatpush1.msra.mxu0 0.0
        %2204 = vmatprep.subr.mxu0 0.0
        %2205 = vmatpush1.msra.mxu0 0.0
        %2206 = vmatprep.subr.mxu0 0.0
        %2207 = vmatpush1.msra.mxu0 0.0
        %2208 = vmatprep.subr.mxu0 0.0
        %2209 = vmatpush1.msra.mxu0 0.0
        %2210 = vmatprep.subr.mxu0 0.0
        %2211 = vmatpush1.msra.mxu0 0.0
        %2212 = vmatprep.subr.mxu0 0.0
        %2213 = vmatpush1.msra.mxu0 0.0
        %2214 = vmatprep.subr.mxu0 0.0
        %2215 = vmatpush1.msra.mxu0 0.0
        %2216 = vmatprep.subr.mxu0 0.0
        %2217 = vmatpush1.msra.mxu0 0.0
        %2218 = vmatprep.mubr.f32.mxu0 0.0
        %2219 = vmatmul.mubr.f32.gmra.mrb[0].mxu0 %v2153
        %v2220 = vpop.f32.mrb[0].mxu0
        %v2221 = vadd.f32 0.0, %v2220
        %v2222 = vpop.f32.mrb[0].mxu0
        %2223 = vdwg.mxu0
        %v2224 = vadd.f32 %v555, %v2221
        %v2225 = vtanh.pop %v2224
        %v2226 = vsel %vm1276, %v2225, %v1201
        %2227 = vmatprep.subr.mxu0 0.0
        %2228 = vmatpush1.msra.mxu0 %v608
        %2229 = vmatprep.subr.mxu0 0.0
        %2230 = vmatpush1.msra.mxu0 %v609
        %2231 = vmatprep.subr.mxu0 0.0
        %2232 = vmatpush1.msra.mxu0 %v610
        %2233 = vmatprep.subr.mxu0 0.0
        %2234 = vmatpush1.msra.mxu0 %v611
        %2235 = vmatprep.subr.mxu0 0.0
        %2236 = vmatpush1.msra.mxu0 %v612
        %2237 = vmatprep.subr.mxu0 0.0
        %2238 = vmatpush1.msra.mxu0 %v613
        %2239 = vmatprep.subr.mxu0 0.0
        %2240 = vmatpush1.msra.mxu0 %v614
        %2241 = vmatprep.subr.mxu0 0.0
        %2242 = vmatpush1.msra.mxu0 %v615
        %2243 = vmatprep.subr.mxu0 0.0
        %2244 = vmatpush1.msra.mxu0 %v616
        %2245 = vmatprep.subr.mxu0 0.0
        %2246 = vmatpush1.msra.mxu0 %v617
        %2247 = vmatprep.subr.mxu0 0.0
        %2248 = vmatpush1.msra.mxu0 %v618
        %2249 = vmatprep.subr.mxu0 0.0
        %2250 = vmatpush1.msra.mxu0 %v619
        %2251 = vmatprep.subr.mxu0 0.0
        %2252 = vmatpush1.msra.mxu0 %v620
        %2253 = vmatprep.subr.mxu0 0.0
        %2254 = vmatpush1.msra.mxu0 %v621
        %2255 = vmatprep.subr.mxu0 0.0
        %2256 = vmatpush1.msra.mxu0 %v622
        %2257 = vmatprep.subr.mxu0 0.0
        %2258 = vmatpush1.msra.mxu0 %v623
        %2259 = vmatprep.subr.mxu0 0.0
        %2260 = vmatpush1.msra.mxu0 0.0
        %2261 = vmatprep.subr.mxu0 0.0
        %2262 = vmatpush1.msra.mxu0 0.0
        %2263 = vmatprep.subr.mxu0 0.0
        %2264 = vmatpush1.msra.mxu0 0.0
        %2265 = vmatprep.subr.mxu0 0.0
        %2266 = vmatpush1.msra.mxu0 0.0
        %2267 = vmatprep.subr.mxu0 0.0
        %2268 = vmatpush1.msra.mxu0 0.0
        %2269 = vmatprep.subr.mxu0 0.0
        %2270 = vmatpush1.msra.mxu0 0.0
        %2271 = vmatprep.subr.mxu0 0.0
        %2272 = vmatpush1.msra.mxu0 0.0
        %2273 = vmatprep.subr.mxu0 0.0
        %2274 = vmatpush1.msra.mxu0 0.0
        %2275 = vmatprep.subr.mxu0 0.0
        %2276 = vmatpush1.msra.mxu0 0.0
        %2277 = vmatprep.subr.mxu0 0.0
        %2278 = vmatpush1.msra.mxu0 0.0
        %2279 = vmatprep.subr.mxu0 0.0
        %2280 = vmatpush1.msra.mxu0 0.0
        %2281 = vmatprep.subr.mxu0 0.0
        %2282 = vmatpush1.msra.mxu0 0.0
        %2283 = vmatprep.subr.mxu0 0.0
        %2284 = vmatpush1.msra.mxu0 0.0
        %2285 = vmatprep.subr.mxu0 0.0
        %2286 = vmatpush1.msra.mxu0 0.0
        %2287 = vmatprep.subr.mxu0 0.0
        %2288 = vmatpush1.msra.mxu0 0.0
        %2289 = vmatprep.subr.mxu0 0.0
        %2290 = vmatpush1.msra.mxu0 0.0
        %2291 = vmatprep.mubr.f32.mxu0 0.0
        %2292 = vmatmul.mubr.f32.gmra.mrb[0].mxu0 %v2226
        %v2293 = vpop.f32.mrb[0].mxu0
        %v2294 = vadd.f32 0.0, %v2293
        %v2295 = vpop.f32.mrb[0].mxu0
        %2296 = vdwg.mxu0
        %v2297 = vadd.f32 %v560, %v2294
        %v2298 = vtanh.pop %v2297
        %v2299 = vsel %vm1276, %v2298, %v1201
        %2300 = vmatprep.subr.mxu0 0.0
        %2301 = vmatpush1.msra.mxu0 %v608
        %2302 = vmatprep.subr.mxu0 0.0
        %2303 = vmatpush1.msra.mxu0 %v609
        %2304 = vmatprep.subr.mxu0 0.0
        %2305 = vmatpush1.msra.mxu0 %v610
        %2306 = vmatprep.subr.mxu0 0.0
        %2307 = vmatpush1.msra.mxu0 %v611
        %2308 = vmatprep.subr.mxu0 0.0
        %2309 = vmatpush1.msra.mxu0 %v612
        %2310 = vmatprep.subr.mxu0 0.0
        %2311 = vmatpush1.msra.mxu0 %v613
        %2312 = vmatprep.subr.mxu0 0.0
        %2313 = vmatpush1.msra.mxu0 %v614
        %2314 = vmatprep.subr.mxu0 0.0
        %2315 = vmatpush1.msra.mxu0 %v615
        %2316 = vmatprep.subr.mxu0 0.0
        %2317 = vmatpush1.msra.mxu0 %v616
        %2318 = vmatprep.subr.mxu0 0.0
        %2319 = vmatpush1.msra.mxu0 %v617
        %2320 = vmatprep.subr.mxu0 0.0
        %2321 = vmatpush1.msra.mxu0 %v618
        %2322 = vmatprep.subr.mxu0 0.0
        %2323 = vmatpush1.msra.mxu0 %v619
        %2324 = vmatprep.subr.mxu0 0.0
        %2325 = vmatpush1.msra.mxu0 %v620
        %2326 = vmatprep.subr.mxu0 0.0
        %2327 = vmatpush1.msra.mxu0 %v621
        %2328 = vmatprep.subr.mxu0 0.0
        %2329 = vmatpush1.msra.mxu0 %v622
        %2330 = vmatprep.subr.mxu0 0.0
        %2331 = vmatpush1.msra.mxu0 %v623
        %2332 = vmatprep.subr.mxu0 0.0
        %2333 = vmatpush1.msra.mxu0 0.0
        %2334 = vmatprep.subr.mxu0 0.0
        %2335 = vmatpush1.msra.mxu0 0.0
        %2336 = vmatprep.subr.mxu0 0.0
        %2337 = vmatpush1.msra.mxu0 0.0
        %2338 = vmatprep.subr.mxu0 0.0
        %2339 = vmatpush1.msra.mxu0 0.0
        %2340 = vmatprep.subr.mxu0 0.0
        %2341 = vmatpush1.msra.mxu0 0.0
        %2342 = vmatprep.subr.mxu0 0.0
        %2343 = vmatpush1.msra.mxu0 0.0
        %2344 = vmatprep.subr.mxu0 0.0
        %2345 = vmatpush1.msra.mxu0 0.0
        %2346 = vmatprep.subr.mxu0 0.0
        %2347 = vmatpush1.msra.mxu0 0.0
        %2348 = vmatprep.subr.mxu0 0.0
        %2349 = vmatpush1.msra.mxu0 0.0
        %2350 = vmatprep.subr.mxu0 0.0
        %2351 = vmatpush1.msra.mxu0 0.0
        %2352 = vmatprep.subr.mxu0 0.0
        %2353 = vmatpush1.msra.mxu0 0.0
        %2354 = vmatprep.subr.mxu0 0.0
        %2355 = vmatpush1.msra.mxu0 0.0
        %2356 = vmatprep.subr.mxu0 0.0
        %2357 = vmatpush1.msra.mxu0 0.0
        %2358 = vmatprep.subr.mxu0 0.0
        %2359 = vmatpush1.msra.mxu0 0.0
        %2360 = vmatprep.subr.mxu0 0.0
        %2361 = vmatpush1.msra.mxu0 0.0
        %2362 = vmatprep.subr.mxu0 0.0
        %2363 = vmatpush1.msra.mxu0 0.0
        %2364 = vmatprep.mubr.f32.mxu0 0.0
        %2365 = vmatmul.mubr.f32.gmra.mrb[0].mxu0 %v2299
        %v2366 = vpop.f32.mrb[0].mxu0
        %v2367 = vadd.f32 0.0, %v2366
        %v2368 = vpop.f32.mrb[0].mxu0
        %2369 = vdwg.mxu0
        %v2370 = vadd.f32 %v565, %v2367
        %v2371 = vtanh.pop %v2370
        %v2372 = vsel %vm1276, %v2371, %v1201
        %2373 = vmatprep.subr.mxu0 0.0
        %2374 = vmatpush1.msra.mxu0 %v608
        %2375 = vmatprep.subr.mxu0 0.0
        %2376 = vmatpush1.msra.mxu0 %v609
        %2377 = vmatprep.subr.mxu0 0.0
        %2378 = vmatpush1.msra.mxu0 %v610
        %2379 = vmatprep.subr.mxu0 0.0
        %2380 = vmatpush1.msra.mxu0 %v611
        %2381 = vmatprep.subr.mxu0 0.0
        %2382 = vmatpush1.msra.mxu0 %v612
        %2383 = vmatprep.subr.mxu0 0.0
        %2384 = vmatpush1.msra.mxu0 %v613
        %2385 = vmatprep.subr.mxu0 0.0
        %2386 = vmatpush1.msra.mxu0 %v614
        %2387 = vmatprep.subr.mxu0 0.0
        %2388 = vmatpush1.msra.mxu0 %v615
        %2389 = vmatprep.subr.mxu0 0.0
        %2390 = vmatpush1.msra.mxu0 %v616
        %2391 = vmatprep.subr.mxu0 0.0
        %2392 = vmatpush1.msra.mxu0 %v617
        %2393 = vmatprep.subr.mxu0 0.0
        %2394 = vmatpush1.msra.mxu0 %v618
        %2395 = vmatprep.subr.mxu0 0.0
        %2396 = vmatpush1.msra.mxu0 %v619
        %2397 = vmatprep.subr.mxu0 0.0
        %2398 = vmatpush1.msra.mxu0 %v620
        %2399 = vmatprep.subr.mxu0 0.0
        %2400 = vmatpush1.msra.mxu0 %v621
        %2401 = vmatprep.subr.mxu0 0.0
        %2402 = vmatpush1.msra.mxu0 %v622
        %2403 = vmatprep.subr.mxu0 0.0
        %2404 = vmatpush1.msra.mxu0 %v623
        %2405 = vmatprep.subr.mxu0 0.0
        %2406 = vmatpush1.msra.mxu0 0.0
        %2407 = vmatprep.subr.mxu0 0.0
        %2408 = vmatpush1.msra.mxu0 0.0
        %2409 = vmatprep.subr.mxu0 0.0
        %2410 = vmatpush1.msra.mxu0 0.0
        %2411 = vmatprep.subr.mxu0 0.0
        %2412 = vmatpush1.msra.mxu0 0.0
        %2413 = vmatprep.subr.mxu0 0.0
        %2414 = vmatpush1.msra.mxu0 0.0
        %2415 = vmatprep.subr.mxu0 0.0
        %2416 = vmatpush1.msra.mxu0 0.0
        %2417 = vmatprep.subr.mxu0 0.0
        %2418 = vmatpush1.msra.mxu0 0.0
        %2419 = vmatprep.subr.mxu0 0.0
        %2420 = vmatpush1.msra.mxu0 0.0
        %2421 = vmatprep.subr.mxu0 0.0
        %2422 = vmatpush1.msra.mxu0 0.0
        %2423 = vmatprep.subr.mxu0 0.0
        %2424 = vmatpush1.msra.mxu0 0.0
        %2425 = vmatprep.subr.mxu0 0.0
        %2426 = vmatpush1.msra.mxu0 0.0
        %2427 = vmatprep.subr.mxu0 0.0
        %2428 = vmatpush1.msra.mxu0 0.0
        %2429 = vmatprep.subr.mxu0 0.0
        %2430 = vmatpush1.msra.mxu0 0.0
        %2431 = vmatprep.subr.mxu0 0.0
        %2432 = vmatpush1.msra.mxu0 0.0
        %2433 = vmatprep.subr.mxu0 0.0
        %2434 = vmatpush1.msra.mxu0 0.0
        %2435 = vmatprep.subr.mxu0 0.0
        %2436 = vmatpush1.msra.mxu0 0.0
        %2437 = vmatprep.mubr.f32.mxu0 0.0
        %2438 = vmatmul.mubr.f32.gmra.mrb[0].mxu0 %v2372
        %v2439 = vpop.f32.mrb[0].mxu0
        %v2440 = vadd.f32 0.0, %v2439
        %v2441 = vpop.f32.mrb[0].mxu0
        %2442 = vdwg.mxu0
        %v2443 = vadd.f32 %v570, %v2440
        %v2444 = vtanh.pop %v2443
        %v2445 = vsel %vm1276, %v2444, %v1201
        %2446 = vmatprep.subr.mxu0 0.0
        %2447 = vmatpush1.msra.mxu0 %v608
        %2448 = vmatprep.subr.mxu0 0.0
        %2449 = vmatpush1.msra.mxu0 %v609
        %2450 = vmatprep.subr.mxu0 0.0
        %2451 = vmatpush1.msra.mxu0 %v610
        %2452 = vmatprep.subr.mxu0 0.0
        %2453 = vmatpush1.msra.mxu0 %v611
        %2454 = vmatprep.subr.mxu0 0.0
        %2455 = vmatpush1.msra.mxu0 %v612
        %2456 = vmatprep.subr.mxu0 0.0
        %2457 = vmatpush1.msra.mxu0 %v613
        %2458 = vmatprep.subr.mxu0 0.0
        %2459 = vmatpush1.msra.mxu0 %v614
        %2460 = vmatprep.subr.mxu0 0.0
        %2461 = vmatpush1.msra.mxu0 %v615
        %2462 = vmatprep.subr.mxu0 0.0
        %2463 = vmatpush1.msra.mxu0 %v616
        %2464 = vmatprep.subr.mxu0 0.0
        %2465 = vmatpush1.msra.mxu0 %v617
        %2466 = vmatprep.subr.mxu0 0.0
        %2467 = vmatpush1.msra.mxu0 %v618
        %2468 = vmatprep.subr.mxu0 0.0
        %2469 = vmatpush1.msra.mxu0 %v619
        %2470 = vmatprep.subr.mxu0 0.0
        %2471 = vmatpush1.msra.mxu0 %v620
        %2472 = vmatprep.subr.mxu0 0.0
        %2473 = vmatpush1.msra.mxu0 %v621
        %2474 = vmatprep.subr.mxu0 0.0
        %2475 = vmatpush1.msra.mxu0 %v622
        %2476 = vmatprep.subr.mxu0 0.0
        %2477 = vmatpush1.msra.mxu0 %v623
        %2478 = vmatprep.subr.mxu0 0.0
        %2479 = vmatpush1.msra.mxu0 0.0
        %2480 = vmatprep.subr.mxu0 0.0
        %2481 = vmatpush1.msra.mxu0 0.0
        %2482 = vmatprep.subr.mxu0 0.0
        %2483 = vmatpush1.msra.mxu0 0.0
        %2484 = vmatprep.subr.mxu0 0.0
        %2485 = vmatpush1.msra.mxu0 0.0
        %2486 = vmatprep.subr.mxu0 0.0
        %2487 = vmatpush1.msra.mxu0 0.0
        %2488 = vmatprep.subr.mxu0 0.0
        %2489 = vmatpush1.msra.mxu0 0.0
        %2490 = vmatprep.subr.mxu0 0.0
        %2491 = vmatpush1.msra.mxu0 0.0
        %2492 = vmatprep.subr.mxu0 0.0
        %2493 = vmatpush1.msra.mxu0 0.0
        %2494 = vmatprep.subr.mxu0 0.0
        %2495 = vmatpush1.msra.mxu0 0.0
        %2496 = vmatprep.subr.mxu0 0.0
        %2497 = vmatpush1.msra.mxu0 0.0
        %2498 = vmatprep.subr.mxu0 0.0
        %2499 = vmatpush1.msra.mxu0 0.0
        %2500 = vmatprep.subr.mxu0 0.0
        %2501 = vmatpush1.msra.mxu0 0.0
        %2502 = vmatprep.subr.mxu0 0.0
        %2503 = vmatpush1.msra.mxu0 0.0
        %2504 = vmatprep.subr.mxu0 0.0
        %2505 = vmatpush1.msra.mxu0 0.0
        %2506 = vmatprep.subr.mxu0 0.0
        %2507 = vmatpush1.msra.mxu0 0.0
        %2508 = vmatprep.subr.mxu0 0.0
        %2509 = vmatpush1.msra.mxu0 0.0
        %2510 = vmatprep.mubr.f32.mxu0 0.0
        %2511 = vmatmul.mubr.f32.gmra.mrb[0].mxu0 %v2445
        %v2512 = vpop.f32.mrb[0].mxu0
        %v2513 = vadd.f32 0.0, %v2512
        %v2514 = vpop.f32.mrb[0].mxu0
        %2515 = vdwg.mxu0
        %v2516 = vadd.f32 %v575, %v2513
        %v2517 = vtanh.pop %v2516
        %v2518 = vsel %vm1276, %v2517, %v1201
        %2519 = vmatprep.subr.mxu0 0.0
        %2520 = vmatpush1.msra.mxu0 %v608
        %2521 = vmatprep.subr.mxu0 0.0
        %2522 = vmatpush1.msra.mxu0 %v609
        %2523 = vmatprep.subr.mxu0 0.0
        %2524 = vmatpush1.msra.mxu0 %v610
        %2525 = vmatprep.subr.mxu0 0.0
        %2526 = vmatpush1.msra.mxu0 %v611
        %2527 = vmatprep.subr.mxu0 0.0
        %2528 = vmatpush1.msra.mxu0 %v612
        %2529 = vmatprep.subr.mxu0 0.0
        %2530 = vmatpush1.msra.mxu0 %v613
        %2531 = vmatprep.subr.mxu0 0.0
        %2532 = vmatpush1.msra.mxu0 %v614
        %2533 = vmatprep.subr.mxu0 0.0
        %2534 = vmatpush1.msra.mxu0 %v615
        %2535 = vmatprep.subr.mxu0 0.0
        %2536 = vmatpush1.msra.mxu0 %v616
        %2537 = vmatprep.subr.mxu0 0.0
        %2538 = vmatpush1.msra.mxu0 %v617
        %2539 = vmatprep.subr.mxu0 0.0
        %2540 = vmatpush1.msra.mxu0 %v618
        %2541 = vmatprep.subr.mxu0 0.0
        %2542 = vmatpush1.msra.mxu0 %v619
        %2543 = vmatprep.subr.mxu0 0.0
        %2544 = vmatpush1.msra.mxu0 %v620
        %2545 = vmatprep.subr.mxu0 0.0
        %2546 = vmatpush1.msra.mxu0 %v621
        %2547 = vmatprep.subr.mxu0 0.0
        %2548 = vmatpush1.msra.mxu0 %v622
        %2549 = vmatprep.subr.mxu0 0.0
        %2550 = vmatpush1.msra.mxu0 %v623
        %2551 = vmatprep.subr.mxu0 0.0
        %2552 = vmatpush1.msra.mxu0 0.0
        %2553 = vmatprep.subr.mxu0 0.0
        %2554 = vmatpush1.msra.mxu0 0.0
        %2555 = vmatprep.subr.mxu0 0.0
        %2556 = vmatpush1.msra.mxu0 0.0
        %2557 = vmatprep.subr.mxu0 0.0
        %2558 = vmatpush1.msra.mxu0 0.0
        %2559 = vmatprep.subr.mxu0 0.0
        %2560 = vmatpush1.msra.mxu0 0.0
        %2561 = vmatprep.subr.mxu0 0.0
        %2562 = vmatpush1.msra.mxu0 0.0
        %2563 = vmatprep.subr.mxu0 0.0
        %2564 = vmatpush1.msra.mxu0 0.0
        %2565 = vmatprep.subr.mxu0 0.0
        %2566 = vmatpush1.msra.mxu0 0.0
        %2567 = vmatprep.subr.mxu0 0.0
        %2568 = vmatpush1.msra.mxu0 0.0
        %2569 = vmatprep.subr.mxu0 0.0
        %2570 = vmatpush1.msra.mxu0 0.0
        %2571 = vmatprep.subr.mxu0 0.0
        %2572 = vmatpush1.msra.mxu0 0.0
        %2573 = vmatprep.subr.mxu0 0.0
        %2574 = vmatpush1.msra.mxu0 0.0
        %2575 = vmatprep.subr.mxu0 0.0
        %2576 = vmatpush1.msra.mxu0 0.0
        %2577 = vmatprep.subr.mxu0 0.0
        %2578 = vmatpush1.msra.mxu0 0.0
        %2579 = vmatprep.subr.mxu0 0.0
        %2580 = vmatpush1.msra.mxu0 0.0
        %2581 = vmatprep.subr.mxu0 0.0
        %2582 = vmatpush1.msra.mxu0 0.0
        %2583 = vmatprep.mubr.f32.mxu0 0.0
        %2584 = vmatmul.mubr.f32.gmra.mrb[0].mxu0 %v2518
        %v2585 = vpop.f32.mrb[0].mxu0
        %v2586 = vadd.f32 0.0, %v2585
        %v2587 = vpop.f32.mrb[0].mxu0
        %2588 = vdwg.mxu0
        %v2589 = vadd.f32 %v580, %v2586
        %v2590 = vtanh.pop %v2589
        %v2591 = vsel %vm1276, %v2590, %v1201
        %2592 = vmatprep.subr.mxu0 0.0
        %2593 = vmatpush1.msra.mxu0 %v608
        %2594 = vmatprep.subr.mxu0 0.0
        %2595 = vmatpush1.msra.mxu0 %v609
        %2596 = vmatprep.subr.mxu0 0.0
        %2597 = vmatpush1.msra.mxu0 %v610
        %2598 = vmatprep.subr.mxu0 0.0
        %2599 = vmatpush1.msra.mxu0 %v611
        %2600 = vmatprep.subr.mxu0 0.0
        %2601 = vmatpush1.msra.mxu0 %v612
        %2602 = vmatprep.subr.mxu0 0.0
        %2603 = vmatpush1.msra.mxu0 %v613
        %2604 = vmatprep.subr.mxu0 0.0
        %2605 = vmatpush1.msra.mxu0 %v614
        %2606 = vmatprep.subr.mxu0 0.0
        %2607 = vmatpush1.msra.mxu0 %v615
        %2608 = vmatprep.subr.mxu0 0.0
        %2609 = vmatpush1.msra.mxu0 %v616
        %2610 = vmatprep.subr.mxu0 0.0
        %2611 = vmatpush1.msra.mxu0 %v617
        %2612 = vmatprep.subr.mxu0 0.0
        %2613 = vmatpush1.msra.mxu0 %v618
        %2614 = vmatprep.subr.mxu0 0.0
        %2615 = vmatpush1.msra.mxu0 %v619
        %2616 = vmatprep.subr.mxu0 0.0
        %2617 = vmatpush1.msra.mxu0 %v620
        %2618 = vmatprep.subr.mxu0 0.0
        %2619 = vmatpush1.msra.mxu0 %v621
        %2620 = vmatprep.subr.mxu0 0.0
        %2621 = vmatpush1.msra.mxu0 %v622
        %2622 = vmatprep.subr.mxu0 0.0
        %2623 = vmatpush1.msra.mxu0 %v623
        %2624 = vmatprep.subr.mxu0 0.0
        %2625 = vmatpush1.msra.mxu0 0.0
        %2626 = vmatprep.subr.mxu0 0.0
        %2627 = vmatpush1.msra.mxu0 0.0
        %2628 = vmatprep.subr.mxu0 0.0
        %2629 = vmatpush1.msra.mxu0 0.0
        %2630 = vmatprep.subr.mxu0 0.0
        %2631 = vmatpush1.msra.mxu0 0.0
        %2632 = vmatprep.subr.mxu0 0.0
        %2633 = vmatpush1.msra.mxu0 0.0
        %2634 = vmatprep.subr.mxu0 0.0
        %2635 = vmatpush1.msra.mxu0 0.0
        %2636 = vmatprep.subr.mxu0 0.0
        %2637 = vmatpush1.msra.mxu0 0.0
        %2638 = vmatprep.subr.mxu0 0.0
        %2639 = vmatpush1.msra.mxu0 0.0
        %2640 = vmatprep.subr.mxu0 0.0
        %2641 = vmatpush1.msra.mxu0 0.0
        %2642 = vmatprep.subr.mxu0 0.0
        %2643 = vmatpush1.msra.mxu0 0.0
        %2644 = vmatprep.subr.mxu0 0.0
        %2645 = vmatpush1.msra.mxu0 0.0
        %2646 = vmatprep.subr.mxu0 0.0
        %2647 = vmatpush1.msra.mxu0 0.0
        %2648 = vmatprep.subr.mxu0 0.0
        %2649 = vmatpush1.msra.mxu0 0.0
        %2650 = vmatprep.subr.mxu0 0.0
        %2651 = vmatpush1.msra.mxu0 0.0
        %2652 = vmatprep.subr.mxu0 0.0
        %2653 = vmatpush1.msra.mxu0 0.0
        %2654 = vmatprep.subr.mxu0 0.0
        %2655 = vmatpush1.msra.mxu0 0.0
        %2656 = vmatprep.mubr.f32.mxu0 0.0
        %2657 = vmatmul.mubr.f32.gmra.mrb[0].mxu0 %v2591
        %v2658 = vpop.f32.mrb[0].mxu0
        %v2659 = vadd.f32 0.0, %v2658
        %v2660 = vpop.f32.mrb[0].mxu0
        %2661 = vdwg.mxu0
        %v2662 = vadd.f32 %v585, %v2659
        %v2663 = vtanh.pop %v2662
        %v2664 = vsel %vm1276, %v2663, %v1201
        %2665 = vmatprep.subr.mxu0 0.0
        %2666 = vmatpush1.msra.mxu0 %v608
        %2667 = vmatprep.subr.mxu0 0.0
        %2668 = vmatpush1.msra.mxu0 %v609
        %2669 = vmatprep.subr.mxu0 0.0
        %2670 = vmatpush1.msra.mxu0 %v610
        %2671 = vmatprep.subr.mxu0 0.0
        %2672 = vmatpush1.msra.mxu0 %v611
        %2673 = vmatprep.subr.mxu0 0.0
        %2674 = vmatpush1.msra.mxu0 %v612
        %2675 = vmatprep.subr.mxu0 0.0
        %2676 = vmatpush1.msra.mxu0 %v613
        %2677 = vmatprep.subr.mxu0 0.0
        %2678 = vmatpush1.msra.mxu0 %v614
        %2679 = vmatprep.subr.mxu0 0.0
        %2680 = vmatpush1.msra.mxu0 %v615
        %2681 = vmatprep.subr.mxu0 0.0
        %2682 = vmatpush1.msra.mxu0 %v616
        %2683 = vmatprep.subr.mxu0 0.0
        %2684 = vmatpush1.msra.mxu0 %v617
        %2685 = vmatprep.subr.mxu0 0.0
        %2686 = vmatpush1.msra.mxu0 %v618
        %2687 = vmatprep.subr.mxu0 0.0
        %2688 = vmatpush1.msra.mxu0 %v619
        %2689 = vmatprep.subr.mxu0 0.0
        %2690 = vmatpush1.msra.mxu0 %v620
        %2691 = vmatprep.subr.mxu0 0.0
        %2692 = vmatpush1.msra.mxu0 %v621
        %2693 = vmatprep.subr.mxu0 0.0
        %2694 = vmatpush1.msra.mxu0 %v622
        %2695 = vmatprep.subr.mxu0 0.0
        %2696 = vmatpush1.msra.mxu0 %v623
        %2697 = vmatprep.subr.mxu0 0.0
        %2698 = vmatpush1.msra.mxu0 0.0
        %2699 = vmatprep.subr.mxu0 0.0
        %2700 = vmatpush1.msra.mxu0 0.0
        %2701 = vmatprep.subr.mxu0 0.0
        %2702 = vmatpush1.msra.mxu0 0.0
        %2703 = vmatprep.subr.mxu0 0.0
        %2704 = vmatpush1.msra.mxu0 0.0
        %2705 = vmatprep.subr.mxu0 0.0
        %2706 = vmatpush1.msra.mxu0 0.0
        %2707 = vmatprep.subr.mxu0 0.0
        %2708 = vmatpush1.msra.mxu0 0.0
        %2709 = vmatprep.subr.mxu0 0.0
        %2710 = vmatpush1.msra.mxu0 0.0
        %2711 = vmatprep.subr.mxu0 0.0
        %2712 = vmatpush1.msra.mxu0 0.0
        %2713 = vmatprep.subr.mxu0 0.0
        %2714 = vmatpush1.msra.mxu0 0.0
        %2715 = vmatprep.subr.mxu0 0.0
        %2716 = vmatpush1.msra.mxu0 0.0
        %2717 = vmatprep.subr.mxu0 0.0
        %2718 = vmatpush1.msra.mxu0 0.0
        %2719 = vmatprep.subr.mxu0 0.0
        %2720 = vmatpush1.msra.mxu0 0.0
        %2721 = vmatprep.subr.mxu0 0.0
        %2722 = vmatpush1.msra.mxu0 0.0
        %2723 = vmatprep.subr.mxu0 0.0
        %2724 = vmatpush1.msra.mxu0 0.0
        %2725 = vmatprep.subr.mxu0 0.0
        %2726 = vmatpush1.msra.mxu0 0.0
        %2727 = vmatprep.subr.mxu0 0.0
        %2728 = vmatpush1.msra.mxu0 0.0
        %2729 = vmatprep.mubr.f32.mxu0 0.0
        %2730 = vmatmul.mubr.f32.gmra.mrb[0].mxu0 %v2664
        %v2731 = vpop.f32.mrb[0].mxu0
        %v2732 = vadd.f32 0.0, %v2731
        %v2733 = vpop.f32.mrb[0].mxu0
        %2734 = vdwg.mxu0
        %v2735 = vadd.f32 %v590, %v2732
        %v2736 = vtanh.pop %v2735
        %v2737 = vsel %vm1276, %v2736, %v1201
        %2738 = vmatprep.subr.mxu0 0.0
        %2739 = vmatpush1.msra.mxu0 %v608
        %2740 = vmatprep.subr.mxu0 0.0
        %2741 = vmatpush1.msra.mxu0 %v609
        %2742 = vmatprep.subr.mxu0 0.0
        %2743 = vmatpush1.msra.mxu0 %v610
        %2744 = vmatprep.subr.mxu0 0.0
        %2745 = vmatpush1.msra.mxu0 %v611
        %2746 = vmatprep.subr.mxu0 0.0
        %2747 = vmatpush1.msra.mxu0 %v612
        %2748 = vmatprep.subr.mxu0 0.0
        %2749 = vmatpush1.msra.mxu0 %v613
        %2750 = vmatprep.subr.mxu0 0.0
        %2751 = vmatpush1.msra.mxu0 %v614
        %2752 = vmatprep.subr.mxu0 0.0
        %2753 = vmatpush1.msra.mxu0 %v615
        %2754 = vmatprep.subr.mxu0 0.0
        %2755 = vmatpush1.msra.mxu0 %v616
        %2756 = vmatprep.subr.mxu0 0.0
        %2757 = vmatpush1.msra.mxu0 %v617
        %2758 = vmatprep.subr.mxu0 0.0
        %2759 = vmatpush1.msra.mxu0 %v618
        %2760 = vmatprep.subr.mxu0 0.0
        %2761 = vmatpush1.msra.mxu0 %v619
        %2762 = vmatprep.subr.mxu0 0.0
        %2763 = vmatpush1.msra.mxu0 %v620
        %2764 = vmatprep.subr.mxu0 0.0
        %2765 = vmatpush1.msra.mxu0 %v621
        %2766 = vmatprep.subr.mxu0 0.0
        %2767 = vmatpush1.msra.mxu0 %v622
        %2768 = vmatprep.subr.mxu0 0.0
        %2769 = vmatpush1.msra.mxu0 %v623
        %2770 = vmatprep.subr.mxu0 0.0
        %2771 = vmatpush1.msra.mxu0 0.0
        %2772 = vmatprep.subr.mxu0 0.0
        %2773 = vmatpush1.msra.mxu0 0.0
        %2774 = vmatprep.subr.mxu0 0.0
        %2775 = vmatpush1.msra.mxu0 0.0
        %2776 = vmatprep.subr.mxu0 0.0
        %2777 = vmatpush1.msra.mxu0 0.0
        %2778 = vmatprep.subr.mxu0 0.0
        %2779 = vmatpush1.msra.mxu0 0.0
        %2780 = vmatprep.subr.mxu0 0.0
        %2781 = vmatpush1.msra.mxu0 0.0
        %2782 = vmatprep.subr.mxu0 0.0
        %2783 = vmatpush1.msra.mxu0 0.0
        %2784 = vmatprep.subr.mxu0 0.0
        %2785 = vmatpush1.msra.mxu0 0.0
        %2786 = vmatprep.subr.mxu0 0.0
        %2787 = vmatpush1.msra.mxu0 0.0
        %2788 = vmatprep.subr.mxu0 0.0
        %2789 = vmatpush1.msra.mxu0 0.0
        %2790 = vmatprep.subr.mxu0 0.0
        %2791 = vmatpush1.msra.mxu0 0.0
        %2792 = vmatprep.subr.mxu0 0.0
        %2793 = vmatpush1.msra.mxu0 0.0
        %2794 = vmatprep.subr.mxu0 0.0
        %2795 = vmatpush1.msra.mxu0 0.0
        %2796 = vmatprep.subr.mxu0 0.0
        %2797 = vmatpush1.msra.mxu0 0.0
        %2798 = vmatprep.subr.mxu0 0.0
        %2799 = vmatpush1.msra.mxu0 0.0
        %2800 = vmatprep.subr.mxu0 0.0
        %2801 = vmatpush1.msra.mxu0 0.0
        %2802 = vmatprep.mubr.f32.mxu0 0.0
        %2803 = vmatmul.mubr.f32.gmra.mrb[0].mxu0 %v2737
        %v2804 = vpop.f32.mrb[0].mxu0
        %v2805 = vadd.f32 0.0, %v2804
        %v2806 = vpop.f32.mrb[0].mxu0
        %2807 = vdwg.mxu0
        %v2808 = vadd.f32 %v595, %v2805
        %v2809 = vtanh.pop %v2808
        %v2810 = vsel %vm1276, %v2809, %v1201
        %2811 = vmatprep.subr.mxu0 0.0
        %2812 = vmatpush1.msra.mxu0 %v608
        %2813 = vmatprep.subr.mxu0 0.0
        %2814 = vmatpush1.msra.mxu0 %v609
        %2815 = vmatprep.subr.mxu0 0.0
        %2816 = vmatpush1.msra.mxu0 %v610
        %2817 = vmatprep.subr.mxu0 0.0
        %2818 = vmatpush1.msra.mxu0 %v611
        %2819 = vmatprep.subr.mxu0 0.0
        %2820 = vmatpush1.msra.mxu0 %v612
        %2821 = vmatprep.subr.mxu0 0.0
        %2822 = vmatpush1.msra.mxu0 %v613
        %2823 = vmatprep.subr.mxu0 0.0
        %2824 = vmatpush1.msra.mxu0 %v614
        %2825 = vmatprep.subr.mxu0 0.0
        %2826 = vmatpush1.msra.mxu0 %v615
        %2827 = vmatprep.subr.mxu0 0.0
        %2828 = vmatpush1.msra.mxu0 %v616
        %2829 = vmatprep.subr.mxu0 0.0
        %2830 = vmatpush1.msra.mxu0 %v617
        %2831 = vmatprep.subr.mxu0 0.0
        %2832 = vmatpush1.msra.mxu0 %v618
        %2833 = vmatprep.subr.mxu0 0.0
        %2834 = vmatpush1.msra.mxu0 %v619
        %2835 = vmatprep.subr.mxu0 0.0
        %2836 = vmatpush1.msra.mxu0 %v620
        %2837 = vmatprep.subr.mxu0 0.0
        %2838 = vmatpush1.msra.mxu0 %v621
        %2839 = vmatprep.subr.mxu0 0.0
        %2840 = vmatpush1.msra.mxu0 %v622
        %2841 = vmatprep.subr.mxu0 0.0
        %2842 = vmatpush1.msra.mxu0 %v623
        %2843 = vmatprep.subr.mxu0 0.0
        %2844 = vmatpush1.msra.mxu0 0.0
        %2845 = vmatprep.subr.mxu0 0.0
        %2846 = vmatpush1.msra.mxu0 0.0
        %2847 = vmatprep.subr.mxu0 0.0
        %2848 = vmatpush1.msra.mxu0 0.0
        %2849 = vmatprep.subr.mxu0 0.0
        %2850 = vmatpush1.msra.mxu0 0.0
        %2851 = vmatprep.subr.mxu0 0.0
        %2852 = vmatpush1.msra.mxu0 0.0
        %2853 = vmatprep.subr.mxu0 0.0
        %2854 = vmatpush1.msra.mxu0 0.0
        %2855 = vmatprep.subr.mxu0 0.0
        %2856 = vmatpush1.msra.mxu0 0.0
        %2857 = vmatprep.subr.mxu0 0.0
        %2858 = vmatpush1.msra.mxu0 0.0
        %2859 = vmatprep.subr.mxu0 0.0
        %2860 = vmatpush1.msra.mxu0 0.0
        %2861 = vmatprep.subr.mxu0 0.0
        %2862 = vmatpush1.msra.mxu0 0.0
        %2863 = vmatprep.subr.mxu0 0.0
        %2864 = vmatpush1.msra.mxu0 0.0
        %2865 = vmatprep.subr.mxu0 0.0
        %2866 = vmatpush1.msra.mxu0 0.0
        %2867 = vmatprep.subr.mxu0 0.0
        %2868 = vmatpush1.msra.mxu0 0.0
        %2869 = vmatprep.subr.mxu0 0.0
        %2870 = vmatpush1.msra.mxu0 0.0
        %2871 = vmatprep.subr.mxu0 0.0
        %2872 = vmatpush1.msra.mxu0 0.0
        %2873 = vmatprep.subr.mxu0 0.0
        %2874 = vmatpush1.msra.mxu0 0.0
        %2875 = vmatprep.mubr.f32.mxu0 0.0
        %2876 = vmatmul.mubr.f32.gmra.mrb[0].mxu0 %v2810
        %v2877 = vpop.f32.mrb[0].mxu0
        %v2878 = vadd.f32 0.0, %v2877
        %v2879 = vpop.f32.mrb[0].mxu0
        %2880 = vdwg.mxu0
        %v2881 = vadd.f32 %v600, %v2878
        %v2882 = vtanh.pop %v2881
        %v2883 = vsel %vm1276, %v2882, %v1201
        %2884 = vmatprep.subr.mxu0 0.0
        %2885 = vmatpush1.msra.mxu0 %v608
        %2886 = vmatprep.subr.mxu0 0.0
        %2887 = vmatpush1.msra.mxu0 %v609
        %2888 = vmatprep.subr.mxu0 0.0
        %2889 = vmatpush1.msra.mxu0 %v610
        %2890 = vmatprep.subr.mxu0 0.0
        %2891 = vmatpush1.msra.mxu0 %v611
        %2892 = vmatprep.subr.mxu0 0.0
        %2893 = vmatpush1.msra.mxu0 %v612
        %2894 = vmatprep.subr.mxu0 0.0
        %2895 = vmatpush1.msra.mxu0 %v613
        %2896 = vmatprep.subr.mxu0 0.0
        %2897 = vmatpush1.msra.mxu0 %v614
        %2898 = vmatprep.subr.mxu0 0.0
        %2899 = vmatpush1.msra.mxu0 %v615
        %2900 = vmatprep.subr.mxu0 0.0
        %2901 = vmatpush1.msra.mxu0 %v616
        %2902 = vmatprep.subr.mxu0 0.0
        %2903 = vmatpush1.msra.mxu0 %v617
        %2904 = vmatprep.subr.mxu0 0.0
        %2905 = vmatpush1.msra.mxu0 %v618
        %2906 = vmatprep.subr.mxu0 0.0
        %2907 = vmatpush1.msra.mxu0 %v619
        %2908 = vmatprep.subr.mxu0 0.0
        %2909 = vmatpush1.msra.mxu0 %v620
        %2910 = vmatprep.subr.mxu0 0.0
        %2911 = vmatpush1.msra.mxu0 %v621
        %2912 = vmatprep.subr.mxu0 0.0
        %2913 = vmatpush1.msra.mxu0 %v622
        %2914 = vmatprep.subr.mxu0 0.0
        %2915 = vmatpush1.msra.mxu0 %v623
        %2916 = vmatprep.subr.mxu0 0.0
        %2917 = vmatpush1.msra.mxu0 0.0
        %2918 = vmatprep.subr.mxu0 0.0
        %2919 = vmatpush1.msra.mxu0 0.0
        %2920 = vmatprep.subr.mxu0 0.0
        %2921 = vmatpush1.msra.mxu0 0.0
        %2922 = vmatprep.subr.mxu0 0.0
        %2923 = vmatpush1.msra.mxu0 0.0
        %2924 = vmatprep.subr.mxu0 0.0
        %2925 = vmatpush1.msra.mxu0 0.0
        %2926 = vmatprep.subr.mxu0 0.0
        %2927 = vmatpush1.msra.mxu0 0.0
        %2928 = vmatprep.subr.mxu0 0.0
        %2929 = vmatpush1.msra.mxu0 0.0
        %2930 = vmatprep.subr.mxu0 0.0
        %2931 = vmatpush1.msra.mxu0 0.0
        %2932 = vmatprep.subr.mxu0 0.0
        %2933 = vmatpush1.msra.mxu0 0.0
        %2934 = vmatprep.subr.mxu0 0.0
        %2935 = vmatpush1.msra.mxu0 0.0
        %2936 = vmatprep.subr.mxu0 0.0
        %2937 = vmatpush1.msra.mxu0 0.0
        %2938 = vmatprep.subr.mxu0 0.0
        %2939 = vmatpush1.msra.mxu0 0.0
        %2940 = vmatprep.subr.mxu0 0.0
        %2941 = vmatpush1.msra.mxu0 0.0
        %2942 = vmatprep.subr.mxu0 0.0
        %2943 = vmatpush1.msra.mxu0 0.0
        %2944 = vmatprep.subr.mxu0 0.0
        %2945 = vmatpush1.msra.mxu0 0.0
        %2946 = vmatprep.subr.mxu0 0.0
        %2947 = vmatpush1.msra.mxu0 0.0
        %2948 = vmatprep.mubr.f32.mxu0 0.0
        %2949 = vmatmul.mubr.f32.gmra.mrb[0].mxu0 %v2883
        %v2950 = vpop.f32.mrb[0].mxu0
        %v2951 = vadd.f32 0.0, %v2950
        %v2952 = vpop.f32.mrb[0].mxu0
        %2953 = vdwg.mxu0
        %v2954 = vadd.f32 %v605, %v2951
        %v2955 = vtanh.pop %v2954
        %v2956 = vsel %vm1276, %v2955, %v1201
        %2957 = vst [vmem:[#allocation2] sm:$0xff] %v2956
        %p2958 = scmp.eq.s32.totalorder %s18, 1
        // Predicated region
        $region49: #{tpu_custom_call.1} parent=43 // pred_check
          %p2959 = pneg %p2958
        $region50: #{tpu_custom_call.1} parent=43 // pred_check_branch
          %2961 = sbr.rel (%p2959) target = $region52
        $region51: #{tpu_custom_call.1} parent=43 // pred_region
          %v2962 = vld [vmem:[%s4] sm:$0xff]
          %v2963 = vld [vmem:[%s4 + $0x8] sm:$0xff]
          %v2964 = vld [vmem:[%s4 + $0x10] sm:$0xff]
          %v2965 = vld [vmem:[%s4 + $0x18] sm:$0xff]
          %v2966 = vld [vmem:[%s4 + $0x20] sm:$0xff]
          %v2967 = vld [vmem:[%s4 + $0x28] sm:$0xff]
          %v2968 = vld [vmem:[%s4 + $0x30] sm:$0xff]
          %v2969 = vld [vmem:[%s4 + $0x38] sm:$0xff]
          %v2970 = vld [vmem:[%s4 + $0x40] sm:$0xff]
          %v2971 = vld [vmem:[%s4 + $0x48] sm:$0xff]
          %v2972 = vld [vmem:[%s4 + $0x50] sm:$0xff]
          %v2973 = vld [vmem:[%s4 + $0x58] sm:$0xff]
          %v2974 = vld [vmem:[%s4 + $0x60] sm:$0xff]
          %v2975 = vld [vmem:[%s4 + $0x68] sm:$0xff]
          %v2976 = vld [vmem:[%s4 + $0x70] sm:$0xff]
          %v2977 = vld [vmem:[%s4 + $0x78] sm:$0xff]
          %v2978 = vld [vmem:[%s5] sm:$0x1]
          %v2980 = vlaneseq
          %v2981 = vshrl.u32 %v2980, 7
          %v2982 = vsub.s32 0, %v2981
          %v2983 = vrot.slane %v2978, %v2982
          %2985 = vmatprep.subr.mxu0 0.0
          %2986 = vmatpush1.msra.mxu0 %v2962
          %2987 = vmatprep.subr.mxu0 0.0
          %2988 = vmatpush1.msra.mxu0 %v2963
          %2989 = vmatprep.subr.mxu0 0.0
          %2990 = vmatpush1.msra.mxu0 %v2964
          %2991 = vmatprep.subr.mxu0 0.0
          %2992 = vmatpush1.msra.mxu0 %v2965
          %2993 = vmatprep.subr.mxu0 0.0
          %2994 = vmatpush1.msra.mxu0 %v2966
          %2995 = vmatprep.subr.mxu0 0.0
          %2996 = vmatpush1.msra.mxu0 %v2967
          %2997 = vmatprep.subr.mxu0 0.0
          %2998 = vmatpush1.msra.mxu0 %v2968
          %2999 = vmatprep.subr.mxu0 0.0
          %3000 = vmatpush1.msra.mxu0 %v2969
          %3001 = vmatprep.subr.mxu0 0.0
          %3002 = vmatpush1.msra.mxu0 %v2970
          %3003 = vmatprep.subr.mxu0 0.0
          %3004 = vmatpush1.msra.mxu0 %v2971
          %3005 = vmatprep.subr.mxu0 0.0
          %3006 = vmatpush1.msra.mxu0 %v2972
          %3007 = vmatprep.subr.mxu0 0.0
          %3008 = vmatpush1.msra.mxu0 %v2973
          %3009 = vmatprep.subr.mxu0 0.0
          %3010 = vmatpush1.msra.mxu0 %v2974
          %3011 = vmatprep.subr.mxu0 0.0
          %3012 = vmatpush1.msra.mxu0 %v2975
          %3013 = vmatprep.subr.mxu0 0.0
          %3014 = vmatpush1.msra.mxu0 %v2976
          %3015 = vmatprep.subr.mxu0 0.0
          %3016 = vmatpush1.msra.mxu0 %v2977
          %3017 = vmatprep.subr.mxu0 0.0
          %3018 = vmatpush1.msra.mxu0 0.0
          %3019 = vmatprep.subr.mxu0 0.0
          %3020 = vmatpush1.msra.mxu0 0.0
          %3021 = vmatprep.subr.mxu0 0.0
          %3022 = vmatpush1.msra.mxu0 0.0
          %3023 = vmatprep.subr.mxu0 0.0
          %3024 = vmatpush1.msra.mxu0 0.0
          %3025 = vmatprep.subr.mxu0 0.0
          %3026 = vmatpush1.msra.mxu0 0.0
          %3027 = vmatprep.subr.mxu0 0.0
          %3028 = vmatpush1.msra.mxu0 0.0
          %3029 = vmatprep.subr.mxu0 0.0
          %3030 = vmatpush1.msra.mxu0 0.0
          %3031 = vmatprep.subr.mxu0 0.0
          %3032 = vmatpush1.msra.mxu0 0.0
          %3033 = vmatprep.subr.mxu0 0.0
          %3034 = vmatpush1.msra.mxu0 0.0
          %3035 = vmatprep.subr.mxu0 0.0
          %3036 = vmatpush1.msra.mxu0 0.0
          %3037 = vmatprep.subr.mxu0 0.0
          %3038 = vmatpush1.msra.mxu0 0.0
          %3039 = vmatprep.subr.mxu0 0.0
          %3040 = vmatpush1.msra.mxu0 0.0
          %3041 = vmatprep.subr.mxu0 0.0
          %3042 = vmatpush1.msra.mxu0 0.0
          %3043 = vmatprep.subr.mxu0 0.0
          %3044 = vmatpush1.msra.mxu0 0.0
          %3045 = vmatprep.subr.mxu0 0.0
          %3046 = vmatpush1.msra.mxu0 0.0
          %3047 = vmatprep.subr.mxu0 0.0
          %3048 = vmatpush1.msra.mxu0 0.0
          %3049 = vmatprep.mubr.f32.mxu0 0.0
          %3050 = vmatmul.mubr.f32.gmra.mrb[0].mxu0 %v2956
          %v3051 = vpop.f32.mrb[0].mxu0
          %v3052 = vadd.f32 %v2983, %v3051
          %v3053 = vpop.f32.mrb[0].mxu0
          %3054 = vdwg.mxu0
          %3055 = vst [vmem:[#allocation3] sm:$0xff] %v3052
        $region52: #{tpu_custom_call.1} parent=43 // pred_fallthru
          _
        // Predicated region
        $region53: #{tpu_custom_call.1} parent=43 // pred_check
          %p3056 = pneg %p162
        $region54: #{tpu_custom_call.1} parent=43 // pred_check_branch
          %3058 = sbr.rel (%p3056) target = $region56
        $region55: #{tpu_custom_call.1} parent=43 // pred_region
          %s3060 = ssub.s32 128, 128
          %3061 = vsyncadd [#allocation4], %s3060
          %s3063 = sshll.u32 [#allocation3], 4
          %s3064 = int_to_ptr.vmem [resolvable:$true] %s3063
          %3066 = dma.vmem_to_hbm [thread:$0]  %s3064, 128, %s6, [#allocation4]
        $region56: #{tpu_custom_call.1} parent=43 // pred_fallthru
          _
        // Predicated region
        $region57: #{tpu_custom_call.1} parent=43 // pred_check
          %p3067 = pneg %p162
        $region58: #{tpu_custom_call.1} parent=43 // pred_check_branch
          %3069 = sbr.rel (%p3067) target = $region60
        $region59: #{tpu_custom_call.1} parent=43 // pred_region
          %3070 = dma.done [#allocation4], 128
        $region60: #{tpu_custom_call.1} parent=43 // pred_fallthru
          _
      $region44: #{tpu_custom_call.1} parent=5 // pred_fallthru
        _
      %p3071 = scmp.le.s32.totalorder 2, %s13
      // Predicated region
      $region61: #{tpu_custom_call.1} parent=5 // pred_check
        %p3072 = pneg %p3071
      $region62: #{tpu_custom_call.1} parent=5 // pred_check_branch
        %3074 = sbr.rel (%p3072) target = $region64
      $region63: #{tpu_custom_call.1} parent=5 // pred_region
        %s3075 = ssub.s32 %s13, 2
      $region64: #{tpu_custom_call.1} parent=5 // pred_fallthru
        _
    $region6: #{tpu_custom_call.1} parent=1 // loop_footer
      %s17 = sadd.s32 1, %s13
    $region7: #{tpu_custom_call.1} parent=1 // loop_footer_branch
      %12 = sbr.rel target = $region3
    $region8: #{tpu_custom_call.1} parent=1 // loop_exit
      _
    %3076 = vsyncpa [#allocation4], 1
    %s3077 = scalar_lea.sflag [#allocation4], 1
    %3078 = vsyncpa %s3077, 1

</llo_original>
